<compile_context>
chip_gen: v7x
topology: tpu7x:2x2x1
jax: 0.10.0
libtpu: 0.0.40
codegen_flags: <defaults>
</compile_context>

<pallas_src>
import jax
import jax.numpy as jnp
from jax.experimental import pallas as pl
from jax.experimental.pallas import tpu as pltpu

# ---------------- model hyper-parameters (small, synthetic) ----------------
NUM_NODES = 8
NUM_EDGES = 16
NUM_FEAT = 32          # == out_channels (required by the module)
N_RBF = 20
CUT_OFF = 5.0
NUM_INTERACTIONS = 3
DTYPE = jnp.float32


# ------------------------------- fused kernel -------------------------------
def painn_fused_kernel(gather_ref, scatter_ref, gather3_ref, scatter3_ref,
                       evec_ref, freqs_ref, s_ref, v_ref,
                       w1_ref, b1_ref, w2_ref, b2_ref, wr_ref, br_ref,
                       wu_ref, wv_ref, wups_ref, wupn_ref, bup_ref,
                       w2u_ref, b2u_ref, wl_ref, bl_ref,
                       out_ref):
    F = NUM_FEAT
    N = NUM_NODES

    gather = gather_ref[...]        # (E, N)   one-hot of source nodes
    scatter = scatter_ref[...]      # (N, E)   one-hot^T of target nodes
    gather3 = gather3_ref[...]      # (3E, 3N) block-diag(gather)
    scatter3 = scatter3_ref[...]    # (3N, 3E) block-diag(scatter)

    s = s_ref[...]                  # (N, F)
    v = v_ref[...]                  # (3N, F)  component-major rows

    # ---- edge geometry: interaction-invariant, computed ONCE ----
    evec = evec_ref[...]                                        # (E, 3)
    d2 = jnp.sum(evec * evec, axis=-1, keepdims=True)           # (E, 1)
    d = jnp.sqrt(d2)
    inv_d = pl.reciprocal(jnp.maximum(d, 1e-12), approx=True)   # EUP slot
    rbf = jnp.sin(d * freqs_ref[...]) * inv_d                   # (E, R)
    fcut = 0.5 * (jnp.cos(jnp.pi * d * (1.0 / CUT_OFF)) + 1.0)
    fcut = fcut * (d < CUT_OFF).astype(jnp.float32)             # (E, 1)
    dirn = evec * inv_d                                         # (E, 3)
    # component-major stack of direction components: (3E, 1)
    dcol3 = jnp.concatenate([dirn[:, 0:1], dirn[:, 1:2], dirn[:, 2:3]], axis=0)

    for i in range(NUM_INTERACTIONS):          # static unroll, weights in VMEM
        # ---------------- message block (+ residual) ----------------
        # radial filter  W_ij = lin_rbf(rbf) * fcut           (E, 3F)
        W = (jnp.dot(rbf, wr_ref[i], preferred_element_type=jnp.float32)
             + br_ref[i]) * fcut

        # scalar MLP hoisted to node level (gather == row selection)
        h = jnp.dot(s, w1_ref[i], preferred_element_type=jnp.float32) + b1_ref[i]
        h = h * jax.nn.sigmoid(h)                               # silu
        phi_node = (jnp.dot(h, w2_ref[i], preferred_element_type=jnp.float32)
                    + b2_ref[i])                                # (N, 3F)
        phi = jnp.dot(gather, phi_node,
                      preferred_element_type=jnp.float32)       # (E, 3F)

        x = phi * W                                             # (E, 3F)
        left = x[:, :F]
        dsm = x[:, F:2 * F]
        right = x[:, 2 * F:]

        # scalar message scatter-add
        s = s + jnp.dot(scatter, dsm, preferred_element_type=jnp.float32)

        # vector message: all 3 spatial components in ONE gather/scatter matmul
        v_j3 = jnp.dot(gather3, v, preferred_element_type=jnp.float32)  # (3E,F)
        left3 = jnp.concatenate([left, left, left], axis=0)             # (3E,F)
        right3 = jnp.concatenate([right, right, right], axis=0)         # (3E,F)
        dvm = left3 * v_j3 + right3 * dcol3                             # (3E,F)
        v = v + jnp.dot(scatter3, dvm, preferred_element_type=jnp.float32)

        # ---------------- update block (+ residual) ----------------
        u = jnp.dot(v, wu_ref[i], preferred_element_type=jnp.float32)   # (3N,F)
        vv = jnp.dot(v, wv_ref[i], preferred_element_type=jnp.float32)  # (3N,F)

        uv = (u[0:N] * vv[0:N] + u[N:2 * N] * vv[N:2 * N]
              + u[2 * N:] * vv[2 * N:])                                 # <U,V>
        n_v = jnp.sqrt(vv[0:N] ** 2 + vv[N:2 * N] ** 2 + vv[2 * N:] ** 2)

        # lin_up([s, ||V||]) split into two matmuls to avoid in-kernel concat
        hu = (jnp.dot(s, wups_ref[i], preferred_element_type=jnp.float32)
              + jnp.dot(n_v, wupn_ref[i], preferred_element_type=jnp.float32)
              + bup_ref[i])
        hu = hu * jax.nn.sigmoid(hu)                            # silu
        a = jnp.dot(hu, w2u_ref[i], preferred_element_type=jnp.float32) + b2u_ref[i]

        top = a[:, :F]          # a_vv
        mid = a[:, F:2 * F]     # a_sv
        bot = a[:, 2 * F:]      # a_ss

        s = s + mid * uv + bot
        top3 = jnp.concatenate([top, top, top], axis=0)         # (3N, F)
        v = v + u * top3

    # -------- readout: s = lin(s); silu; lin(s)  (same Linear twice) --------
    wl = wl_ref[...]
    bl = bl_ref[...]
    h = jnp.dot(s, wl, preferred_element_type=jnp.float32) + bl
    h = h * jax.nn.sigmoid(h)
    out_ref[...] = jnp.dot(h, wl, preferred_element_type=jnp.float32) + bl


# ---------------------------- pallas_call glue ------------------------------
def _vmem_spec(shape):
    nd = len(shape)
    return pl.BlockSpec(shape, lambda i, _nd=nd: (0,) * _nd)


# ------------------------------ parameters ----------------------------------
def _uniform(key, shape, fan_in):
    bound = 1.0 / float(fan_in) ** 0.5
    return jax.random.uniform(key, shape, DTYPE, -bound, bound)


def init_params(key):
    """All per-interaction weights stacked along a leading (NUM_INTERACTIONS,)
    axis so the fused kernel DMAs them exactly once."""
    F, R, T = NUM_FEAT, N_RBF, NUM_INTERACTIONS
    keys = jax.random.split(key, 15)
    p = {}
    # message blocks: lin1, lin2, lin_rbf
    p["W1"] = _uniform(keys[0], (T, F, F), F)
    p["B1"] = _uniform(keys[1], (T, 1, F), F)
    p["W2"] = _uniform(keys[2], (T, F, 3 * F), F)
    p["B2"] = _uniform(keys[3], (T, 1, 3 * F), F)
    p["WR"] = _uniform(keys[4], (T, R, 3 * F), R)
    p["BR"] = _uniform(keys[5], (T, 1, 3 * F), R)
    # update blocks: denseU, denseV, lin_up (split into s / ||V|| halves), lin2
    p["WU"] = _uniform(keys[6], (T, F, F), F)
    p["WV"] = _uniform(keys[7], (T, F, F), F)
    p["WUPS"] = _uniform(keys[8], (T, F, F), 2 * F)
    p["WUPN"] = _uniform(keys[9], (T, F, F), 2 * F)
    p["BUP"] = _uniform(keys[10], (T, 1, F), 2 * F)
    p["W2U"] = _uniform(keys[11], (T, F, 3 * F), F)
    p["B2U"] = _uniform(keys[12], (T, 1, 3 * F), F)
    # final readout Linear (applied twice)
    p["WL"] = _uniform(keys[13], (F, F), F)
    p["BL"] = _uniform(keys[14], (1, F), F)
    return p


# -------------------------------- forward -----------------------------------
@jax.jit
def painn_forward(params, s, v, edge_index, edge_attr):
    """Matches PaiNN.forward: 3 x (message + residual, update + residual),
    then lin -> silu -> lin (same weights twice). Returns s of shape (N, F)."""
    s = s.astype(DTYPE)
    # (N, F, 3) -> (3, N, F) -> (3N, F), component-major rows
    v3 = jnp.transpose(v.astype(DTYPE), (2, 0, 1)).reshape(3 * NUM_NODES,
                                                           NUM_FEAT)

    src, dst = edge_index[0], edge_index[1]
    gather = jax.nn.one_hot(src, NUM_NODES, dtype=DTYPE)          # (E, N)
    scatter = jax.nn.one_hot(dst, NUM_NODES, dtype=DTYPE).T       # (N, E)
    eye3 = jnp.eye(3, dtype=DTYPE)
    gather3 = jnp.kron(eye3, gather)                              # (3E, 3N)
    scatter3 = jnp.kron(eye3, scatter)                            # (3N, 3E)
    freqs = (jnp.arange(1, N_RBF + 1, dtype=DTYPE)
             * jnp.pi / CUT_OFF).reshape(1, N_RBF)
    evec = edge_attr.astype(DTYPE)

    inputs = [gather, scatter, gather3, scatter3, evec, freqs, s, v3,
              params["W1"], params["B1"], params["W2"], params["B2"],
              params["WR"], params["BR"], params["WU"], params["WV"],
              params["WUPS"], params["WUPN"], params["BUP"],
              params["W2U"], params["B2U"], params["WL"], params["BL"]]

    out = pl.pallas_call(
        painn_fused_kernel,
        out_shape=jax.ShapeDtypeStruct((NUM_NODES, NUM_FEAT), DTYPE),
        grid=(1,),
        in_specs=[_vmem_spec(x.shape) for x in inputs],
        out_specs=_vmem_spec((NUM_NODES, NUM_FEAT)),
        compiler_params=pltpu.CompilerParams(
            dimension_semantics=("arbitrary",)),
    )(*inputs)
    return out


# --------------------------------- main --------------------------------------
if __name__ == "__main__":
    key = jax.random.PRNGKey(0)
    kp, ks, kv, ke, ka = jax.random.split(key, 5)

    params = init_params(kp)
    s = jax.random.normal(ks, (NUM_NODES, NUM_FEAT), DTYPE)
    v = jax.random.normal(kv, (NUM_NODES, NUM_FEAT, 3), DTYPE)
    edge_index = jax.random.randint(ke, (2, NUM_EDGES), 0, NUM_NODES,
                                    dtype=jnp.int32)
    edge_attr = jax.random.normal(ka, (NUM_EDGES, 3), DTYPE)

    out = painn_forward(params, s, v, edge_index, edge_attr)
    out = jax.block_until_ready(out)
    assert out.shape == (NUM_NODES, NUM_FEAT)
    assert jnp.all(jnp.isfinite(out))
    print("KERNEL_OK")
</pallas_src>

<mosaic_0001>
module attributes {stable_mosaic.version = 11 : i64} {
  func.func @painn_fused_kernel(%arg0: i32, %arg1: memref<16x8xf32, #tpu.memory_space<vmem>>, %arg2: memref<8x16xf32, #tpu.memory_space<vmem>>, %arg3: memref<48x24xf32, #tpu.memory_space<vmem>>, %arg4: memref<24x48xf32, #tpu.memory_space<vmem>>, %arg5: memref<16x3xf32, #tpu.memory_space<vmem>>, %arg6: memref<1x20xf32, #tpu.memory_space<vmem>>, %arg7: memref<8x32xf32, #tpu.memory_space<vmem>>, %arg8: memref<24x32xf32, #tpu.memory_space<vmem>>, %arg9: memref<3x32x32xf32, #tpu.memory_space<vmem>>, %arg10: memref<3x1x32xf32, #tpu.memory_space<vmem>>, %arg11: memref<3x32x96xf32, #tpu.memory_space<vmem>>, %arg12: memref<3x1x96xf32, #tpu.memory_space<vmem>>, %arg13: memref<3x20x96xf32, #tpu.memory_space<vmem>>, %arg14: memref<3x1x96xf32, #tpu.memory_space<vmem>>, %arg15: memref<3x32x32xf32, #tpu.memory_space<vmem>>, %arg16: memref<3x32x32xf32, #tpu.memory_space<vmem>>, %arg17: memref<3x32x32xf32, #tpu.memory_space<vmem>>, %arg18: memref<3x32x32xf32, #tpu.memory_space<vmem>>, %arg19: memref<3x1x32xf32, #tpu.memory_space<vmem>>, %arg20: memref<3x32x96xf32, #tpu.memory_space<vmem>>, %arg21: memref<3x1x96xf32, #tpu.memory_space<vmem>>, %arg22: memref<32x32xf32, #tpu.memory_space<vmem>>, %arg23: memref<1x32xf32, #tpu.memory_space<vmem>>, %arg24: memref<8x32xf32, #tpu.memory_space<vmem>>) attributes {dimension_semantics = [#tpu.dimension_semantics<arbitrary>], iteration_bounds = array<i64: 1>, scalar_prefetch = 0 : i64, scratch_operands = 0 : i64, tpu.core_type = #tpu.core_type<tc>, window_params = [{pipeline_mode = #tpu.pipeline_mode<synchronous>, transform_indices = @transform_0, window_bounds = array<i64: 16, 8>}, {pipeline_mode = #tpu.pipeline_mode<synchronous>, transform_indices = @transform_1, window_bounds = array<i64: 8, 16>}, {pipeline_mode = #tpu.pipeline_mode<synchronous>, transform_indices = @transform_2, window_bounds = array<i64: 48, 24>}, {pipeline_mode = #tpu.pipeline_mode<synchronous>, transform_indices = @transform_3, window_bounds = array<i64: 24, 48>}, {pipeline_mode = #tpu.pipeline_mode<synchronous>, transform_indices = @transform_4, window_bounds = array<i64: 16, 3>}, {pipeline_mode = #tpu.pipeline_mode<synchronous>, transform_indices = @transform_5, window_bounds = array<i64: 1, 20>}, {pipeline_mode = #tpu.pipeline_mode<synchronous>, transform_indices = @transform_6, window_bounds = array<i64: 8, 32>}, {pipeline_mode = #tpu.pipeline_mode<synchronous>, transform_indices = @transform_7, window_bounds = array<i64: 24, 32>}, {pipeline_mode = #tpu.pipeline_mode<synchronous>, transform_indices = @transform_8, window_bounds = array<i64: 3, 32, 32>}, {pipeline_mode = #tpu.pipeline_mode<synchronous>, transform_indices = @transform_9, window_bounds = array<i64: 3, 1, 32>}, {pipeline_mode = #tpu.pipeline_mode<synchronous>, transform_indices = @transform_10, window_bounds = array<i64: 3, 32, 96>}, {pipeline_mode = #tpu.pipeline_mode<synchronous>, transform_indices = @transform_11, window_bounds = array<i64: 3, 1, 96>}, {pipeline_mode = #tpu.pipeline_mode<synchronous>, transform_indices = @transform_12, window_bounds = array<i64: 3, 20, 96>}, {pipeline_mode = #tpu.pipeline_mode<synchronous>, transform_indices = @transform_13, window_bounds = array<i64: 3, 1, 96>}, {pipeline_mode = #tpu.pipeline_mode<synchronous>, transform_indices = @transform_14, window_bounds = array<i64: 3, 32, 32>}, {pipeline_mode = #tpu.pipeline_mode<synchronous>, transform_indices = @transform_15, window_bounds = array<i64: 3, 32, 32>}, {pipeline_mode = #tpu.pipeline_mode<synchronous>, transform_indices = @transform_16, window_bounds = array<i64: 3, 32, 32>}, {pipeline_mode = #tpu.pipeline_mode<synchronous>, transform_indices = @transform_17, window_bounds = array<i64: 3, 32, 32>}, {pipeline_mode = #tpu.pipeline_mode<synchronous>, transform_indices = @transform_18, window_bounds = array<i64: 3, 1, 32>}, {pipeline_mode = #tpu.pipeline_mode<synchronous>, transform_indices = @transform_19, window_bounds = array<i64: 3, 32, 96>}, {pipeline_mode = #tpu.pipeline_mode<synchronous>, transform_indices = @transform_20, window_bounds = array<i64: 3, 1, 96>}, {pipeline_mode = #tpu.pipeline_mode<synchronous>, transform_indices = @transform_21, window_bounds = array<i64: 32, 32>}, {pipeline_mode = #tpu.pipeline_mode<synchronous>, transform_indices = @transform_22, window_bounds = array<i64: 1, 32>}, {pipeline_mode = #tpu.pipeline_mode<synchronous>, transform_indices = @transform_23, window_bounds = array<i64: 8, 32>}]} {
    %c0 = arith.constant 0 : index
    %c0_0 = arith.constant 0 : index
    %0 = vector.load %arg1[%c0, %c0_0] : memref<16x8xf32, #tpu.memory_space<vmem>>, vector<16x8xf32>
    %c0_1 = arith.constant 0 : index
    %c0_2 = arith.constant 0 : index
    %1 = vector.load %arg2[%c0_1, %c0_2] : memref<8x16xf32, #tpu.memory_space<vmem>>, vector<8x16xf32>
    %c0_3 = arith.constant 0 : index
    %c0_4 = arith.constant 0 : index
    %2 = vector.load %arg3[%c0_3, %c0_4] : memref<48x24xf32, #tpu.memory_space<vmem>>, vector<48x24xf32>
    %c0_5 = arith.constant 0 : index
    %c0_6 = arith.constant 0 : index
    %3 = vector.load %arg4[%c0_5, %c0_6] : memref<24x48xf32, #tpu.memory_space<vmem>>, vector<24x48xf32>
    %c0_7 = arith.constant 0 : index
    %c0_8 = arith.constant 0 : index
    %4 = vector.load %arg7[%c0_7, %c0_8] : memref<8x32xf32, #tpu.memory_space<vmem>>, vector<8x32xf32>
    %c0_9 = arith.constant 0 : index
    %c0_10 = arith.constant 0 : index
    %5 = vector.load %arg8[%c0_9, %c0_10] : memref<24x32xf32, #tpu.memory_space<vmem>>, vector<24x32xf32>
    %c0_11 = arith.constant 0 : index
    %c0_12 = arith.constant 0 : index
    %6 = vector.load %arg5[%c0_11, %c0_12] : memref<16x3xf32, #tpu.memory_space<vmem>>, vector<16x3xf32>
    %7 = arith.mulf %6, %6 : vector<16x3xf32>
    %cst = arith.constant dense<0.000000e+00> : vector<16xf32>
    %8 = vector.multi_reduction <add>, %7, %cst [1] : vector<16x3xf32> to vector<16xf32>
    %9 = vector.shape_cast %8 : vector<16xf32> to vector<16x1xf32>
    %10 = math.sqrt %9 : vector<16x1xf32>
    %cst_13 = arith.constant 9.99999996E-13 : f32
    %11 = vector.broadcast %cst_13 : f32 to vector<16x1xf32>
    %12 = arith.maximumf %10, %11 : vector<16x1xf32>
    %13 = tpu.reciprocal %12 {approx = true} : vector<16x1xf32> -> vector<16x1xf32>
    %c0_14 = arith.constant 0 : index
    %c0_15 = arith.constant 0 : index
    %14 = vector.load %arg6[%c0_14, %c0_15] : memref<1x20xf32, #tpu.memory_space<vmem>>, vector<1x20xf32>
    %15 = vector.broadcast %10 : vector<16x1xf32> to vector<16x20xf32>
    %16 = vector.broadcast %14 : vector<1x20xf32> to vector<16x20xf32>
    %17 = arith.mulf %15, %16 : vector<16x20xf32>
    %18 = math.sin %17 : vector<16x20xf32>
    %19 = vector.broadcast %13 : vector<16x1xf32> to vector<16x20xf32>
    %20 = arith.mulf %18, %19 : vector<16x20xf32>
    %cst_16 = arith.constant 3.14159274 : f32
    %21 = vector.broadcast %cst_16 : f32 to vector<16x1xf32>
    %22 = arith.mulf %21, %10 : vector<16x1xf32>
    %cst_17 = arith.constant 2.000000e-01 : f32
    %23 = vector.broadcast %cst_17 : f32 to vector<16x1xf32>
    %24 = arith.mulf %22, %23 : vector<16x1xf32>
    %25 = math.cos %24 : vector<16x1xf32>
    %cst_18 = arith.constant 1.000000e+00 : f32
    %26 = vector.broadcast %cst_18 : f32 to vector<16x1xf32>
    %27 = arith.addf %25, %26 : vector<16x1xf32>
    %cst_19 = arith.constant 5.000000e-01 : f32
    %28 = vector.broadcast %cst_19 : f32 to vector<16x1xf32>
    %29 = arith.mulf %28, %27 : vector<16x1xf32>
    %cst_20 = arith.constant 5.000000e+00 : f32
    %30 = vector.broadcast %cst_20 : f32 to vector<16x1xf32>
    %31 = arith.cmpf olt, %10, %30 : vector<16x1xf32>
    %32 = arith.extui %31 : vector<16x1xi1> to vector<16x1xi32>
    %33 = arith.sitofp %32 : vector<16x1xi32> to vector<16x1xf32>
    %34 = arith.mulf %29, %33 : vector<16x1xf32>
    %35 = vector.broadcast %13 : vector<16x1xf32> to vector<16x3xf32>
    %36 = arith.mulf %6, %35 : vector<16x3xf32>
    %37 = vector.extract_strided_slice %36 {offsets = [0, 0], sizes = [16, 1], strides = [1, 1]} : vector<16x3xf32> to vector<16x1xf32>
    %38 = vector.extract_strided_slice %36 {offsets = [0, 1], sizes = [16, 1], strides = [1, 1]} : vector<16x3xf32> to vector<16x1xf32>
    %39 = vector.extract_strided_slice %36 {offsets = [0, 2], sizes = [16, 1], strides = [1, 1]} : vector<16x3xf32> to vector<16x1xf32>
    %40 = tpu.concatenate %37, %38, %39 in 0 : vector<16x1xf32>, vector<16x1xf32>, vector<16x1xf32> -> vector<48x1xf32>
    %c0_21 = arith.constant 0 : index
    %c0_22 = arith.constant 0 : index
    %c0_23 = arith.constant 0 : index
    %41 = vector.load %arg13[%c0_21, %c0_22, %c0_23] : memref<3x20x96xf32, #tpu.memory_space<vmem>>, vector<1x20x96xf32>
    %42 = vector.shape_cast %41 : vector<1x20x96xf32> to vector<20x96xf32>
    %cst_24 = arith.constant dense<0.000000e+00> : vector<16x96xf32>
    %43 = tpu.matmul %20, %42, %cst_24 {dimension_numbers = #tpu.dot_dimension_numbers<[1], [0], [0], [1], [0, 0, 1, 1], [], []>} : vector<16x20xf32>, vector<20x96xf32>, vector<16x96xf32> -> vector<16x96xf32>
    %c0_25 = arith.constant 0 : index
    %c0_26 = arith.constant 0 : index
    %c0_27 = arith.constant 0 : index
    %44 = vector.load %arg14[%c0_25, %c0_26, %c0_27] : memref<3x1x96xf32, #tpu.memory_space<vmem>>, vector<1x1x96xf32>
    %45 = vector.shape_cast %44 : vector<1x1x96xf32> to vector<1x96xf32>
    %46 = vector.broadcast %45 : vector<1x96xf32> to vector<16x96xf32>
    %47 = arith.addf %43, %46 : vector<16x96xf32>
    %48 = vector.broadcast %34 : vector<16x1xf32> to vector<16x96xf32>
    %49 = arith.mulf %47, %48 : vector<16x96xf32>
    %c0_28 = arith.constant 0 : index
    %c0_29 = arith.constant 0 : index
    %c0_30 = arith.constant 0 : index
    %50 = vector.load %arg9[%c0_28, %c0_29, %c0_30] : memref<3x32x32xf32, #tpu.memory_space<vmem>>, vector<1x32x32xf32>
    %51 = vector.shape_cast %50 : vector<1x32x32xf32> to vector<32x32xf32>
    %cst_31 = arith.constant dense<0.000000e+00> : vector<8x32xf32>
    %52 = tpu.matmul %4, %51, %cst_31 {dimension_numbers = #tpu.dot_dimension_numbers<[1], [0], [0], [1], [0, 0, 1, 1], [], []>} : vector<8x32xf32>, vector<32x32xf32>, vector<8x32xf32> -> vector<8x32xf32>
    %c0_32 = arith.constant 0 : index
    %c0_33 = arith.constant 0 : index
    %c0_34 = arith.constant 0 : index
    %53 = vector.load %arg10[%c0_32, %c0_33, %c0_34] : memref<3x1x32xf32, #tpu.memory_space<vmem>>, vector<1x1x32xf32>
    %54 = vector.shape_cast %53 : vector<1x1x32xf32> to vector<1x32xf32>
    %55 = vector.broadcast %54 : vector<1x32xf32> to vector<8x32xf32>
    %56 = arith.addf %52, %55 : vector<8x32xf32>
    %57 = arith.negf %56 : vector<8x32xf32>
    %58 = math.exp %57 : vector<8x32xf32>
    %cst_35 = arith.constant 1.000000e+00 : f32
    %59 = vector.broadcast %cst_35 : f32 to vector<8x32xf32>
    %60 = arith.addf %59, %58 : vector<8x32xf32>
    %61 = arith.divf %59, %60 : vector<8x32xf32>
    %62 = arith.mulf %56, %61 : vector<8x32xf32>
    %c0_36 = arith.constant 0 : index
    %c0_37 = arith.constant 0 : index
    %c0_38 = arith.constant 0 : index
    %63 = vector.load %arg11[%c0_36, %c0_37, %c0_38] : memref<3x32x96xf32, #tpu.memory_space<vmem>>, vector<1x32x96xf32>
    %64 = vector.shape_cast %63 : vector<1x32x96xf32> to vector<32x96xf32>
    %cst_39 = arith.constant dense<0.000000e+00> : vector<8x96xf32>
    %65 = tpu.matmul %62, %64, %cst_39 {dimension_numbers = #tpu.dot_dimension_numbers<[1], [0], [0], [1], [0, 0, 1, 1], [], []>} : vector<8x32xf32>, vector<32x96xf32>, vector<8x96xf32> -> vector<8x96xf32>
    %c0_40 = arith.constant 0 : index
    %c0_41 = arith.constant 0 : index
    %c0_42 = arith.constant 0 : index
    %66 = vector.load %arg12[%c0_40, %c0_41, %c0_42] : memref<3x1x96xf32, #tpu.memory_space<vmem>>, vector<1x1x96xf32>
    %67 = vector.shape_cast %66 : vector<1x1x96xf32> to vector<1x96xf32>
    %68 = vector.broadcast %67 : vector<1x96xf32> to vector<8x96xf32>
    %69 = arith.addf %65, %68 : vector<8x96xf32>
    %cst_43 = arith.constant dense<0.000000e+00> : vector<16x96xf32>
    %70 = tpu.matmul %0, %69, %cst_43 {dimension_numbers = #tpu.dot_dimension_numbers<[1], [0], [0], [1], [0, 0, 1, 1], [], []>} : vector<16x8xf32>, vector<8x96xf32>, vector<16x96xf32> -> vector<16x96xf32>
    %71 = arith.mulf %70, %49 : vector<16x96xf32>
    %72 = vector.extract_strided_slice %71 {offsets = [0, 0], sizes = [16, 32], strides = [1, 1]} : vector<16x96xf32> to vector<16x32xf32>
    %73 = vector.extract_strided_slice %71 {offsets = [0, 32], sizes = [16, 32], strides = [1, 1]} : vector<16x96xf32> to vector<16x32xf32>
    %74 = vector.extract_strided_slice %71 {offsets = [0, 64], sizes = [16, 32], strides = [1, 1]} : vector<16x96xf32> to vector<16x32xf32>
    %cst_44 = arith.constant dense<0.000000e+00> : vector<8x32xf32>
    %75 = tpu.matmul %1, %73, %cst_44 {dimension_numbers = #tpu.dot_dimension_numbers<[1], [0], [0], [1], [0, 0, 1, 1], [], []>} : vector<8x16xf32>, vector<16x32xf32>, vector<8x32xf32> -> vector<8x32xf32>
    %76 = arith.addf %4, %75 : vector<8x32xf32>
    %cst_45 = arith.constant dense<0.000000e+00> : vector<48x32xf32>
    %77 = tpu.matmul %2, %5, %cst_45 {dimension_numbers = #tpu.dot_dimension_numbers<[1], [0], [0], [1], [0, 0, 1, 1], [], []>} : vector<48x24xf32>, vector<24x32xf32>, vector<48x32xf32> -> vector<48x32xf32>
    %78 = tpu.concatenate %72, %72, %72 in 0 : vector<16x32xf32>, vector<16x32xf32>, vector<16x32xf32> -> vector<48x32xf32>
    %79 = tpu.concatenate %74, %74, %74 in 0 : vector<16x32xf32>, vector<16x32xf32>, vector<16x32xf32> -> vector<48x32xf32>
    %80 = arith.mulf %78, %77 : vector<48x32xf32>
    %81 = vector.broadcast %40 : vector<48x1xf32> to vector<48x32xf32>
    %82 = arith.mulf %79, %81 : vector<48x32xf32>
    %83 = arith.addf %80, %82 : vector<48x32xf32>
    %cst_46 = arith.constant dense<0.000000e+00> : vector<24x32xf32>
    %84 = tpu.matmul %3, %83, %cst_46 {dimension_numbers = #tpu.dot_dimension_numbers<[1], [0], [0], [1], [0, 0, 1, 1], [], []>} : vector<24x48xf32>, vector<48x32xf32>, vector<24x32xf32> -> vector<24x32xf32>
    %85 = arith.addf %5, %84 : vector<24x32xf32>
    %c0_47 = arith.constant 0 : index
    %c0_48 = arith.constant 0 : index
    %c0_49 = arith.constant 0 : index
    %86 = vector.load %arg15[%c0_47, %c0_48, %c0_49] : memref<3x32x32xf32, #tpu.memory_space<vmem>>, vector<1x32x32xf32>
    %87 = vector.shape_cast %86 : vector<1x32x32xf32> to vector<32x32xf32>
    %cst_50 = arith.constant dense<0.000000e+00> : vector<24x32xf32>
    %88 = tpu.matmul %85, %87, %cst_50 {dimension_numbers = #tpu.dot_dimension_numbers<[1], [0], [0], [1], [0, 0, 1, 1], [], []>} : vector<24x32xf32>, vector<32x32xf32>, vector<24x32xf32> -> vector<24x32xf32>
    %c0_51 = arith.constant 0 : index
    %c0_52 = arith.constant 0 : index
    %c0_53 = arith.constant 0 : index
    %89 = vector.load %arg16[%c0_51, %c0_52, %c0_53] : memref<3x32x32xf32, #tpu.memory_space<vmem>>, vector<1x32x32xf32>
    %90 = vector.shape_cast %89 : vector<1x32x32xf32> to vector<32x32xf32>
    %cst_54 = arith.constant dense<0.000000e+00> : vector<24x32xf32>
    %91 = tpu.matmul %85, %90, %cst_54 {dimension_numbers = #tpu.dot_dimension_numbers<[1], [0], [0], [1], [0, 0, 1, 1], [], []>} : vector<24x32xf32>, vector<32x32xf32>, vector<24x32xf32> -> vector<24x32xf32>
    %92 = vector.extract_strided_slice %88 {offsets = [0, 0], sizes = [8, 32], strides = [1, 1]} : vector<24x32xf32> to vector<8x32xf32>
    %93 = vector.extract_strided_slice %91 {offsets = [0, 0], sizes = [8, 32], strides = [1, 1]} : vector<24x32xf32> to vector<8x32xf32>
    %94 = arith.mulf %92, %93 : vector<8x32xf32>
    %95 = vector.extract_strided_slice %88 {offsets = [8, 0], sizes = [8, 32], strides = [1, 1]} : vector<24x32xf32> to vector<8x32xf32>
    %96 = vector.extract_strided_slice %91 {offsets = [8, 0], sizes = [8, 32], strides = [1, 1]} : vector<24x32xf32> to vector<8x32xf32>
    %97 = arith.mulf %95, %96 : vector<8x32xf32>
    %98 = arith.addf %94, %97 : vector<8x32xf32>
    %99 = vector.extract_strided_slice %88 {offsets = [16, 0], sizes = [8, 32], strides = [1, 1]} : vector<24x32xf32> to vector<8x32xf32>
    %100 = vector.extract_strided_slice %91 {offsets = [16, 0], sizes = [8, 32], strides = [1, 1]} : vector<24x32xf32> to vector<8x32xf32>
    %101 = arith.mulf %99, %100 : vector<8x32xf32>
    %102 = arith.addf %98, %101 : vector<8x32xf32>
    %103 = vector.extract_strided_slice %91 {offsets = [0, 0], sizes = [8, 32], strides = [1, 1]} : vector<24x32xf32> to vector<8x32xf32>
    %104 = arith.mulf %103, %103 : vector<8x32xf32>
    %105 = vector.extract_strided_slice %91 {offsets = [8, 0], sizes = [8, 32], strides = [1, 1]} : vector<24x32xf32> to vector<8x32xf32>
    %106 = arith.mulf %105, %105 : vector<8x32xf32>
    %107 = arith.addf %104, %106 : vector<8x32xf32>
    %108 = vector.extract_strided_slice %91 {offsets = [16, 0], sizes = [8, 32], strides = [1, 1]} : vector<24x32xf32> to vector<8x32xf32>
    %109 = arith.mulf %108, %108 : vector<8x32xf32>
    %110 = arith.addf %107, %109 : vector<8x32xf32>
    %111 = math.sqrt %110 : vector<8x32xf32>
    %c0_55 = arith.constant 0 : index
    %c0_56 = arith.constant 0 : index
    %c0_57 = arith.constant 0 : index
    %112 = vector.load %arg17[%c0_55, %c0_56, %c0_57] : memref<3x32x32xf32, #tpu.memory_space<vmem>>, vector<1x32x32xf32>
    %113 = vector.shape_cast %112 : vector<1x32x32xf32> to vector<32x32xf32>
    %cst_58 = arith.constant dense<0.000000e+00> : vector<8x32xf32>
    %114 = tpu.matmul %76, %113, %cst_58 {dimension_numbers = #tpu.dot_dimension_numbers<[1], [0], [0], [1], [0, 0, 1, 1], [], []>} : vector<8x32xf32>, vector<32x32xf32>, vector<8x32xf32> -> vector<8x32xf32>
    %c0_59 = arith.constant 0 : index
    %c0_60 = arith.constant 0 : index
    %c0_61 = arith.constant 0 : index
    %115 = vector.load %arg18[%c0_59, %c0_60, %c0_61] : memref<3x32x32xf32, #tpu.memory_space<vmem>>, vector<1x32x32xf32>
    %116 = vector.shape_cast %115 : vector<1x32x32xf32> to vector<32x32xf32>
    %cst_62 = arith.constant dense<0.000000e+00> : vector<8x32xf32>
    %117 = tpu.matmul %111, %116, %cst_62 {dimension_numbers = #tpu.dot_dimension_numbers<[1], [0], [0], [1], [0, 0, 1, 1], [], []>} : vector<8x32xf32>, vector<32x32xf32>, vector<8x32xf32> -> vector<8x32xf32>
    %118 = arith.addf %114, %117 : vector<8x32xf32>
    %c0_63 = arith.constant 0 : index
    %c0_64 = arith.constant 0 : index
    %c0_65 = arith.constant 0 : index
    %119 = vector.load %arg19[%c0_63, %c0_64, %c0_65] : memref<3x1x32xf32, #tpu.memory_space<vmem>>, vector<1x1x32xf32>
    %120 = vector.shape_cast %119 : vector<1x1x32xf32> to vector<1x32xf32>
    %121 = vector.broadcast %120 : vector<1x32xf32> to vector<8x32xf32>
    %122 = arith.addf %118, %121 : vector<8x32xf32>
    %123 = arith.negf %122 : vector<8x32xf32>
    %124 = math.exp %123 : vector<8x32xf32>
    %cst_66 = arith.constant 1.000000e+00 : f32
    %125 = vector.broadcast %cst_66 : f32 to vector<8x32xf32>
    %126 = arith.addf %125, %124 : vector<8x32xf32>
    %127 = arith.divf %125, %126 : vector<8x32xf32>
    %128 = arith.mulf %122, %127 : vector<8x32xf32>
    %c0_67 = arith.constant 0 : index
    %c0_68 = arith.constant 0 : index
    %c0_69 = arith.constant 0 : index
    %129 = vector.load %arg20[%c0_67, %c0_68, %c0_69] : memref<3x32x96xf32, #tpu.memory_space<vmem>>, vector<1x32x96xf32>
    %130 = vector.shape_cast %129 : vector<1x32x96xf32> to vector<32x96xf32>
    %cst_70 = arith.constant dense<0.000000e+00> : vector<8x96xf32>
    %131 = tpu.matmul %128, %130, %cst_70 {dimension_numbers = #tpu.dot_dimension_numbers<[1], [0], [0], [1], [0, 0, 1, 1], [], []>} : vector<8x32xf32>, vector<32x96xf32>, vector<8x96xf32> -> vector<8x96xf32>
    %c0_71 = arith.constant 0 : index
    %c0_72 = arith.constant 0 : index
    %c0_73 = arith.constant 0 : index
    %132 = vector.load %arg21[%c0_71, %c0_72, %c0_73] : memref<3x1x96xf32, #tpu.memory_space<vmem>>, vector<1x1x96xf32>
    %133 = vector.shape_cast %132 : vector<1x1x96xf32> to vector<1x96xf32>
    %134 = vector.broadcast %133 : vector<1x96xf32> to vector<8x96xf32>
    %135 = arith.addf %131, %134 : vector<8x96xf32>
    %136 = vector.extract_strided_slice %135 {offsets = [0, 0], sizes = [8, 32], strides = [1, 1]} : vector<8x96xf32> to vector<8x32xf32>
    %137 = vector.extract_strided_slice %135 {offsets = [0, 32], sizes = [8, 32], strides = [1, 1]} : vector<8x96xf32> to vector<8x32xf32>
    %138 = vector.extract_strided_slice %135 {offsets = [0, 64], sizes = [8, 32], strides = [1, 1]} : vector<8x96xf32> to vector<8x32xf32>
    %139 = arith.mulf %137, %102 : vector<8x32xf32>
    %140 = arith.addf %76, %139 : vector<8x32xf32>
    %141 = arith.addf %140, %138 : vector<8x32xf32>
    %142 = tpu.concatenate %136, %136, %136 in 0 : vector<8x32xf32>, vector<8x32xf32>, vector<8x32xf32> -> vector<24x32xf32>
    %143 = arith.mulf %88, %142 : vector<24x32xf32>
    %144 = arith.addf %85, %143 : vector<24x32xf32>
    %c1 = arith.constant 1 : index
    %c0_74 = arith.constant 0 : index
    %c0_75 = arith.constant 0 : index
    %145 = vector.load %arg13[%c1, %c0_74, %c0_75] : memref<3x20x96xf32, #tpu.memory_space<vmem>>, vector<1x20x96xf32>
    %146 = vector.shape_cast %145 : vector<1x20x96xf32> to vector<20x96xf32>
    %cst_76 = arith.constant dense<0.000000e+00> : vector<16x96xf32>
    %147 = tpu.matmul %20, %146, %cst_76 {dimension_numbers = #tpu.dot_dimension_numbers<[1], [0], [0], [1], [0, 0, 1, 1], [], []>} : vector<16x20xf32>, vector<20x96xf32>, vector<16x96xf32> -> vector<16x96xf32>
    %c1_77 = arith.constant 1 : index
    %c0_78 = arith.constant 0 : index
    %c0_79 = arith.constant 0 : index
    %148 = vector.load %arg14[%c1_77, %c0_78, %c0_79] : memref<3x1x96xf32, #tpu.memory_space<vmem>>, vector<1x1x96xf32>
    %149 = vector.shape_cast %148 : vector<1x1x96xf32> to vector<1x96xf32>
    %150 = vector.broadcast %149 : vector<1x96xf32> to vector<16x96xf32>
    %151 = arith.addf %147, %150 : vector<16x96xf32>
    %152 = vector.broadcast %34 : vector<16x1xf32> to vector<16x96xf32>
    %153 = arith.mulf %151, %152 : vector<16x96xf32>
    %c1_80 = arith.constant 1 : index
    %c0_81 = arith.constant 0 : index
    %c0_82 = arith.constant 0 : index
    %154 = vector.load %arg9[%c1_80, %c0_81, %c0_82] : memref<3x32x32xf32, #tpu.memory_space<vmem>>, vector<1x32x32xf32>
    %155 = vector.shape_cast %154 : vector<1x32x32xf32> to vector<32x32xf32>
    %cst_83 = arith.constant dense<0.000000e+00> : vector<8x32xf32>
    %156 = tpu.matmul %141, %155, %cst_83 {dimension_numbers = #tpu.dot_dimension_numbers<[1], [0], [0], [1], [0, 0, 1, 1], [], []>} : vector<8x32xf32>, vector<32x32xf32>, vector<8x32xf32> -> vector<8x32xf32>
    %c1_84 = arith.constant 1 : index
    %c0_85 = arith.constant 0 : index
    %c0_86 = arith.constant 0 : index
    %157 = vector.load %arg10[%c1_84, %c0_85, %c0_86] : memref<3x1x32xf32, #tpu.memory_space<vmem>>, vector<1x1x32xf32>
    %158 = vector.shape_cast %157 : vector<1x1x32xf32> to vector<1x32xf32>
    %159 = vector.broadcast %158 : vector<1x32xf32> to vector<8x32xf32>
    %160 = arith.addf %156, %159 : vector<8x32xf32>
    %161 = arith.negf %160 : vector<8x32xf32>
    %162 = math.exp %161 : vector<8x32xf32>
    %cst_87 = arith.constant 1.000000e+00 : f32
    %163 = vector.broadcast %cst_87 : f32 to vector<8x32xf32>
    %164 = arith.addf %163, %162 : vector<8x32xf32>
    %165 = arith.divf %163, %164 : vector<8x32xf32>
    %166 = arith.mulf %160, %165 : vector<8x32xf32>
    %c1_88 = arith.constant 1 : index
    %c0_89 = arith.constant 0 : index
    %c0_90 = arith.constant 0 : index
    %167 = vector.load %arg11[%c1_88, %c0_89, %c0_90] : memref<3x32x96xf32, #tpu.memory_space<vmem>>, vector<1x32x96xf32>
    %168 = vector.shape_cast %167 : vector<1x32x96xf32> to vector<32x96xf32>
    %cst_91 = arith.constant dense<0.000000e+00> : vector<8x96xf32>
    %169 = tpu.matmul %166, %168, %cst_91 {dimension_numbers = #tpu.dot_dimension_numbers<[1], [0], [0], [1], [0, 0, 1, 1], [], []>} : vector<8x32xf32>, vector<32x96xf32>, vector<8x96xf32> -> vector<8x96xf32>
    %c1_92 = arith.constant 1 : index
    %c0_93 = arith.constant 0 : index
    %c0_94 = arith.constant 0 : index
    %170 = vector.load %arg12[%c1_92, %c0_93, %c0_94] : memref<3x1x96xf32, #tpu.memory_space<vmem>>, vector<1x1x96xf32>
    %171 = vector.shape_cast %170 : vector<1x1x96xf32> to vector<1x96xf32>
    %172 = vector.broadcast %171 : vector<1x96xf32> to vector<8x96xf32>
    %173 = arith.addf %169, %172 : vector<8x96xf32>
    %cst_95 = arith.constant dense<0.000000e+00> : vector<16x96xf32>
    %174 = tpu.matmul %0, %173, %cst_95 {dimension_numbers = #tpu.dot_dimension_numbers<[1], [0], [0], [1], [0, 0, 1, 1], [], []>} : vector<16x8xf32>, vector<8x96xf32>, vector<16x96xf32> -> vector<16x96xf32>
    %175 = arith.mulf %174, %153 : vector<16x96xf32>
    %176 = vector.extract_strided_slice %175 {offsets = [0, 0], sizes = [16, 32], strides = [1, 1]} : vector<16x96xf32> to vector<16x32xf32>
    %177 = vector.extract_strided_slice %175 {offsets = [0, 32], sizes = [16, 32], strides = [1, 1]} : vector<16x96xf32> to vector<16x32xf32>
    %178 = vector.extract_strided_slice %175 {offsets = [0, 64], sizes = [16, 32], strides = [1, 1]} : vector<16x96xf32> to vector<16x32xf32>
    %cst_96 = arith.constant dense<0.000000e+00> : vector<8x32xf32>
    %179 = tpu.matmul %1, %177, %cst_96 {dimension_numbers = #tpu.dot_dimension_numbers<[1], [0], [0], [1], [0, 0, 1, 1], [], []>} : vector<8x16xf32>, vector<16x32xf32>, vector<8x32xf32> -> vector<8x32xf32>
    %180 = arith.addf %141, %179 : vector<8x32xf32>
    %cst_97 = arith.constant dense<0.000000e+00> : vector<48x32xf32>
    %181 = tpu.matmul %2, %144, %cst_97 {dimension_numbers = #tpu.dot_dimension_numbers<[1], [0], [0], [1], [0, 0, 1, 1], [], []>} : vector<48x24xf32>, vector<24x32xf32>, vector<48x32xf32> -> vector<48x32xf32>
    %182 = tpu.concatenate %176, %176, %176 in 0 : vector<16x32xf32>, vector<16x32xf32>, vector<16x32xf32> -> vector<48x32xf32>
    %183 = tpu.concatenate %178, %178, %178 in 0 : vector<16x32xf32>, vector<16x32xf32>, vector<16x32xf32> -> vector<48x32xf32>
    %184 = arith.mulf %182, %181 : vector<48x32xf32>
    %185 = vector.broadcast %40 : vector<48x1xf32> to vector<48x32xf32>
    %186 = arith.mulf %183, %185 : vector<48x32xf32>
    %187 = arith.addf %184, %186 : vector<48x32xf32>
    %cst_98 = arith.constant dense<0.000000e+00> : vector<24x32xf32>
    %188 = tpu.matmul %3, %187, %cst_98 {dimension_numbers = #tpu.dot_dimension_numbers<[1], [0], [0], [1], [0, 0, 1, 1], [], []>} : vector<24x48xf32>, vector<48x32xf32>, vector<24x32xf32> -> vector<24x32xf32>
    %189 = arith.addf %144, %188 : vector<24x32xf32>
    %c1_99 = arith.constant 1 : index
    %c0_100 = arith.constant 0 : index
    %c0_101 = arith.constant 0 : index
    %190 = vector.load %arg15[%c1_99, %c0_100, %c0_101] : memref<3x32x32xf32, #tpu.memory_space<vmem>>, vector<1x32x32xf32>
    %191 = vector.shape_cast %190 : vector<1x32x32xf32> to vector<32x32xf32>
    %cst_102 = arith.constant dense<0.000000e+00> : vector<24x32xf32>
    %192 = tpu.matmul %189, %191, %cst_102 {dimension_numbers = #tpu.dot_dimension_numbers<[1], [0], [0], [1], [0, 0, 1, 1], [], []>} : vector<24x32xf32>, vector<32x32xf32>, vector<24x32xf32> -> vector<24x32xf32>
    %c1_103 = arith.constant 1 : index
    %c0_104 = arith.constant 0 : index
    %c0_105 = arith.constant 0 : index
    %193 = vector.load %arg16[%c1_103, %c0_104, %c0_105] : memref<3x32x32xf32, #tpu.memory_space<vmem>>, vector<1x32x32xf32>
    %194 = vector.shape_cast %193 : vector<1x32x32xf32> to vector<32x32xf32>
    %cst_106 = arith.constant dense<0.000000e+00> : vector<24x32xf32>
    %195 = tpu.matmul %189, %194, %cst_106 {dimension_numbers = #tpu.dot_dimension_numbers<[1], [0], [0], [1], [0, 0, 1, 1], [], []>} : vector<24x32xf32>, vector<32x32xf32>, vector<24x32xf32> -> vector<24x32xf32>
    %196 = vector.extract_strided_slice %192 {offsets = [0, 0], sizes = [8, 32], strides = [1, 1]} : vector<24x32xf32> to vector<8x32xf32>
    %197 = vector.extract_strided_slice %195 {offsets = [0, 0], sizes = [8, 32], strides = [1, 1]} : vector<24x32xf32> to vector<8x32xf32>
    %198 = arith.mulf %196, %197 : vector<8x32xf32>
    %199 = vector.extract_strided_slice %192 {offsets = [8, 0], sizes = [8, 32], strides = [1, 1]} : vector<24x32xf32> to vector<8x32xf32>
    %200 = vector.extract_strided_slice %195 {offsets = [8, 0], sizes = [8, 32], strides = [1, 1]} : vector<24x32xf32> to vector<8x32xf32>
    %201 = arith.mulf %199, %200 : vector<8x32xf32>
    %202 = arith.addf %198, %201 : vector<8x32xf32>
    %203 = vector.extract_strided_slice %192 {offsets = [16, 0], sizes = [8, 32], strides = [1, 1]} : vector<24x32xf32> to vector<8x32xf32>
    %204 = vector.extract_strided_slice %195 {offsets = [16, 0], sizes = [8, 32], strides = [1, 1]} : vector<24x32xf32> to vector<8x32xf32>
    %205 = arith.mulf %203, %204 : vector<8x32xf32>
    %206 = arith.addf %202, %205 : vector<8x32xf32>
    %207 = vector.extract_strided_slice %195 {offsets = [0, 0], sizes = [8, 32], strides = [1, 1]} : vector<24x32xf32> to vector<8x32xf32>
    %208 = arith.mulf %207, %207 : vector<8x32xf32>
    %209 = vector.extract_strided_slice %195 {offsets = [8, 0], sizes = [8, 32], strides = [1, 1]} : vector<24x32xf32> to vector<8x32xf32>
    %210 = arith.mulf %209, %209 : vector<8x32xf32>
    %211 = arith.addf %208, %210 : vector<8x32xf32>
    %212 = vector.extract_strided_slice %195 {offsets = [16, 0], sizes = [8, 32], strides = [1, 1]} : vector<24x32xf32> to vector<8x32xf32>
    %213 = arith.mulf %212, %212 : vector<8x32xf32>
    %214 = arith.addf %211, %213 : vector<8x32xf32>
    %215 = math.sqrt %214 : vector<8x32xf32>
    %c1_107 = arith.constant 1 : index
    %c0_108 = arith.constant 0 : index
    %c0_109 = arith.constant 0 : index
    %216 = vector.load %arg17[%c1_107, %c0_108, %c0_109] : memref<3x32x32xf32, #tpu.memory_space<vmem>>, vector<1x32x32xf32>
    %217 = vector.shape_cast %216 : vector<1x32x32xf32> to vector<32x32xf32>
    %cst_110 = arith.constant dense<0.000000e+00> : vector<8x32xf32>
    %218 = tpu.matmul %180, %217, %cst_110 {dimension_numbers = #tpu.dot_dimension_numbers<[1], [0], [0], [1], [0, 0, 1, 1], [], []>} : vector<8x32xf32>, vector<32x32xf32>, vector<8x32xf32> -> vector<8x32xf32>
    %c1_111 = arith.constant 1 : index
    %c0_112 = arith.constant 0 : index
    %c0_113 = arith.constant 0 : index
    %219 = vector.load %arg18[%c1_111, %c0_112, %c0_113] : memref<3x32x32xf32, #tpu.memory_space<vmem>>, vector<1x32x32xf32>
    %220 = vector.shape_cast %219 : vector<1x32x32xf32> to vector<32x32xf32>
    %cst_114 = arith.constant dense<0.000000e+00> : vector<8x32xf32>
    %221 = tpu.matmul %215, %220, %cst_114 {dimension_numbers = #tpu.dot_dimension_numbers<[1], [0], [0], [1], [0, 0, 1, 1], [], []>} : vector<8x32xf32>, vector<32x32xf32>, vector<8x32xf32> -> vector<8x32xf32>
    %222 = arith.addf %218, %221 : vector<8x32xf32>
    %c1_115 = arith.constant 1 : index
    %c0_116 = arith.constant 0 : index
    %c0_117 = arith.constant 0 : index
    %223 = vector.load %arg19[%c1_115, %c0_116, %c0_117] : memref<3x1x32xf32, #tpu.memory_space<vmem>>, vector<1x1x32xf32>
    %224 = vector.shape_cast %223 : vector<1x1x32xf32> to vector<1x32xf32>
    %225 = vector.broadcast %224 : vector<1x32xf32> to vector<8x32xf32>
    %226 = arith.addf %222, %225 : vector<8x32xf32>
    %227 = arith.negf %226 : vector<8x32xf32>
    %228 = math.exp %227 : vector<8x32xf32>
    %cst_118 = arith.constant 1.000000e+00 : f32
    %229 = vector.broadcast %cst_118 : f32 to vector<8x32xf32>
    %230 = arith.addf %229, %228 : vector<8x32xf32>
    %231 = arith.divf %229, %230 : vector<8x32xf32>
    %232 = arith.mulf %226, %231 : vector<8x32xf32>
    %c1_119 = arith.constant 1 : index
    %c0_120 = arith.constant 0 : index
    %c0_121 = arith.constant 0 : index
    %233 = vector.load %arg20[%c1_119, %c0_120, %c0_121] : memref<3x32x96xf32, #tpu.memory_space<vmem>>, vector<1x32x96xf32>
    %234 = vector.shape_cast %233 : vector<1x32x96xf32> to vector<32x96xf32>
    %cst_122 = arith.constant dense<0.000000e+00> : vector<8x96xf32>
    %235 = tpu.matmul %232, %234, %cst_122 {dimension_numbers = #tpu.dot_dimension_numbers<[1], [0], [0], [1], [0, 0, 1, 1], [], []>} : vector<8x32xf32>, vector<32x96xf32>, vector<8x96xf32> -> vector<8x96xf32>
    %c1_123 = arith.constant 1 : index
    %c0_124 = arith.constant 0 : index
    %c0_125 = arith.constant 0 : index
    %236 = vector.load %arg21[%c1_123, %c0_124, %c0_125] : memref<3x1x96xf32, #tpu.memory_space<vmem>>, vector<1x1x96xf32>
    %237 = vector.shape_cast %236 : vector<1x1x96xf32> to vector<1x96xf32>
    %238 = vector.broadcast %237 : vector<1x96xf32> to vector<8x96xf32>
    %239 = arith.addf %235, %238 : vector<8x96xf32>
    %240 = vector.extract_strided_slice %239 {offsets = [0, 0], sizes = [8, 32], strides = [1, 1]} : vector<8x96xf32> to vector<8x32xf32>
    %241 = vector.extract_strided_slice %239 {offsets = [0, 32], sizes = [8, 32], strides = [1, 1]} : vector<8x96xf32> to vector<8x32xf32>
    %242 = vector.extract_strided_slice %239 {offsets = [0, 64], sizes = [8, 32], strides = [1, 1]} : vector<8x96xf32> to vector<8x32xf32>
    %243 = arith.mulf %241, %206 : vector<8x32xf32>
    %244 = arith.addf %180, %243 : vector<8x32xf32>
    %245 = arith.addf %244, %242 : vector<8x32xf32>
    %246 = tpu.concatenate %240, %240, %240 in 0 : vector<8x32xf32>, vector<8x32xf32>, vector<8x32xf32> -> vector<24x32xf32>
    %247 = arith.mulf %192, %246 : vector<24x32xf32>
    %248 = arith.addf %189, %247 : vector<24x32xf32>
    %c2 = arith.constant 2 : index
    %c0_126 = arith.constant 0 : index
    %c0_127 = arith.constant 0 : index
    %249 = vector.load %arg13[%c2, %c0_126, %c0_127] : memref<3x20x96xf32, #tpu.memory_space<vmem>>, vector<1x20x96xf32>
    %250 = vector.shape_cast %249 : vector<1x20x96xf32> to vector<20x96xf32>
    %cst_128 = arith.constant dense<0.000000e+00> : vector<16x96xf32>
    %251 = tpu.matmul %20, %250, %cst_128 {dimension_numbers = #tpu.dot_dimension_numbers<[1], [0], [0], [1], [0, 0, 1, 1], [], []>} : vector<16x20xf32>, vector<20x96xf32>, vector<16x96xf32> -> vector<16x96xf32>
    %c2_129 = arith.constant 2 : index
    %c0_130 = arith.constant 0 : index
    %c0_131 = arith.constant 0 : index
    %252 = vector.load %arg14[%c2_129, %c0_130, %c0_131] : memref<3x1x96xf32, #tpu.memory_space<vmem>>, vector<1x1x96xf32>
    %253 = vector.shape_cast %252 : vector<1x1x96xf32> to vector<1x96xf32>
    %254 = vector.broadcast %253 : vector<1x96xf32> to vector<16x96xf32>
    %255 = arith.addf %251, %254 : vector<16x96xf32>
    %256 = vector.broadcast %34 : vector<16x1xf32> to vector<16x96xf32>
    %257 = arith.mulf %255, %256 : vector<16x96xf32>
    %c2_132 = arith.constant 2 : index
    %c0_133 = arith.constant 0 : index
    %c0_134 = arith.constant 0 : index
    %258 = vector.load %arg9[%c2_132, %c0_133, %c0_134] : memref<3x32x32xf32, #tpu.memory_space<vmem>>, vector<1x32x32xf32>
    %259 = vector.shape_cast %258 : vector<1x32x32xf32> to vector<32x32xf32>
    %cst_135 = arith.constant dense<0.000000e+00> : vector<8x32xf32>
    %260 = tpu.matmul %245, %259, %cst_135 {dimension_numbers = #tpu.dot_dimension_numbers<[1], [0], [0], [1], [0, 0, 1, 1], [], []>} : vector<8x32xf32>, vector<32x32xf32>, vector<8x32xf32> -> vector<8x32xf32>
    %c2_136 = arith.constant 2 : index
    %c0_137 = arith.constant 0 : index
    %c0_138 = arith.constant 0 : index
    %261 = vector.load %arg10[%c2_136, %c0_137, %c0_138] : memref<3x1x32xf32, #tpu.memory_space<vmem>>, vector<1x1x32xf32>
    %262 = vector.shape_cast %261 : vector<1x1x32xf32> to vector<1x32xf32>
    %263 = vector.broadcast %262 : vector<1x32xf32> to vector<8x32xf32>
    %264 = arith.addf %260, %263 : vector<8x32xf32>
    %265 = arith.negf %264 : vector<8x32xf32>
    %266 = math.exp %265 : vector<8x32xf32>
    %cst_139 = arith.constant 1.000000e+00 : f32
    %267 = vector.broadcast %cst_139 : f32 to vector<8x32xf32>
    %268 = arith.addf %267, %266 : vector<8x32xf32>
    %269 = arith.divf %267, %268 : vector<8x32xf32>
    %270 = arith.mulf %264, %269 : vector<8x32xf32>
    %c2_140 = arith.constant 2 : index
    %c0_141 = arith.constant 0 : index
    %c0_142 = arith.constant 0 : index
    %271 = vector.load %arg11[%c2_140, %c0_141, %c0_142] : memref<3x32x96xf32, #tpu.memory_space<vmem>>, vector<1x32x96xf32>
    %272 = vector.shape_cast %271 : vector<1x32x96xf32> to vector<32x96xf32>
    %cst_143 = arith.constant dense<0.000000e+00> : vector<8x96xf32>
    %273 = tpu.matmul %270, %272, %cst_143 {dimension_numbers = #tpu.dot_dimension_numbers<[1], [0], [0], [1], [0, 0, 1, 1], [], []>} : vector<8x32xf32>, vector<32x96xf32>, vector<8x96xf32> -> vector<8x96xf32>
    %c2_144 = arith.constant 2 : index
    %c0_145 = arith.constant 0 : index
    %c0_146 = arith.constant 0 : index
    %274 = vector.load %arg12[%c2_144, %c0_145, %c0_146] : memref<3x1x96xf32, #tpu.memory_space<vmem>>, vector<1x1x96xf32>
    %275 = vector.shape_cast %274 : vector<1x1x96xf32> to vector<1x96xf32>
    %276 = vector.broadcast %275 : vector<1x96xf32> to vector<8x96xf32>
    %277 = arith.addf %273, %276 : vector<8x96xf32>
    %cst_147 = arith.constant dense<0.000000e+00> : vector<16x96xf32>
    %278 = tpu.matmul %0, %277, %cst_147 {dimension_numbers = #tpu.dot_dimension_numbers<[1], [0], [0], [1], [0, 0, 1, 1], [], []>} : vector<16x8xf32>, vector<8x96xf32>, vector<16x96xf32> -> vector<16x96xf32>
    %279 = arith.mulf %278, %257 : vector<16x96xf32>
    %280 = vector.extract_strided_slice %279 {offsets = [0, 0], sizes = [16, 32], strides = [1, 1]} : vector<16x96xf32> to vector<16x32xf32>
    %281 = vector.extract_strided_slice %279 {offsets = [0, 32], sizes = [16, 32], strides = [1, 1]} : vector<16x96xf32> to vector<16x32xf32>
    %282 = vector.extract_strided_slice %279 {offsets = [0, 64], sizes = [16, 32], strides = [1, 1]} : vector<16x96xf32> to vector<16x32xf32>
    %cst_148 = arith.constant dense<0.000000e+00> : vector<8x32xf32>
    %283 = tpu.matmul %1, %281, %cst_148 {dimension_numbers = #tpu.dot_dimension_numbers<[1], [0], [0], [1], [0, 0, 1, 1], [], []>} : vector<8x16xf32>, vector<16x32xf32>, vector<8x32xf32> -> vector<8x32xf32>
    %284 = arith.addf %245, %283 : vector<8x32xf32>
    %cst_149 = arith.constant dense<0.000000e+00> : vector<48x32xf32>
    %285 = tpu.matmul %2, %248, %cst_149 {dimension_numbers = #tpu.dot_dimension_numbers<[1], [0], [0], [1], [0, 0, 1, 1], [], []>} : vector<48x24xf32>, vector<24x32xf32>, vector<48x32xf32> -> vector<48x32xf32>
    %286 = tpu.concatenate %280, %280, %280 in 0 : vector<16x32xf32>, vector<16x32xf32>, vector<16x32xf32> -> vector<48x32xf32>
    %287 = tpu.concatenate %282, %282, %282 in 0 : vector<16x32xf32>, vector<16x32xf32>, vector<16x32xf32> -> vector<48x32xf32>
    %288 = arith.mulf %286, %285 : vector<48x32xf32>
    %289 = vector.broadcast %40 : vector<48x1xf32> to vector<48x32xf32>
    %290 = arith.mulf %287, %289 : vector<48x32xf32>
    %291 = arith.addf %288, %290 : vector<48x32xf32>
    %cst_150 = arith.constant dense<0.000000e+00> : vector<24x32xf32>
    %292 = tpu.matmul %3, %291, %cst_150 {dimension_numbers = #tpu.dot_dimension_numbers<[1], [0], [0], [1], [0, 0, 1, 1], [], []>} : vector<24x48xf32>, vector<48x32xf32>, vector<24x32xf32> -> vector<24x32xf32>
    %293 = arith.addf %248, %292 : vector<24x32xf32>
    %c2_151 = arith.constant 2 : index
    %c0_152 = arith.constant 0 : index
    %c0_153 = arith.constant 0 : index
    %294 = vector.load %arg15[%c2_151, %c0_152, %c0_153] : memref<3x32x32xf32, #tpu.memory_space<vmem>>, vector<1x32x32xf32>
    %295 = vector.shape_cast %294 : vector<1x32x32xf32> to vector<32x32xf32>
    %cst_154 = arith.constant dense<0.000000e+00> : vector<24x32xf32>
    %296 = tpu.matmul %293, %295, %cst_154 {dimension_numbers = #tpu.dot_dimension_numbers<[1], [0], [0], [1], [0, 0, 1, 1], [], []>} : vector<24x32xf32>, vector<32x32xf32>, vector<24x32xf32> -> vector<24x32xf32>
    %c2_155 = arith.constant 2 : index
    %c0_156 = arith.constant 0 : index
    %c0_157 = arith.constant 0 : index
    %297 = vector.load %arg16[%c2_155, %c0_156, %c0_157] : memref<3x32x32xf32, #tpu.memory_space<vmem>>, vector<1x32x32xf32>
    %298 = vector.shape_cast %297 : vector<1x32x32xf32> to vector<32x32xf32>
    %cst_158 = arith.constant dense<0.000000e+00> : vector<24x32xf32>
    %299 = tpu.matmul %293, %298, %cst_158 {dimension_numbers = #tpu.dot_dimension_numbers<[1], [0], [0], [1], [0, 0, 1, 1], [], []>} : vector<24x32xf32>, vector<32x32xf32>, vector<24x32xf32> -> vector<24x32xf32>
    %300 = vector.extract_strided_slice %296 {offsets = [0, 0], sizes = [8, 32], strides = [1, 1]} : vector<24x32xf32> to vector<8x32xf32>
    %301 = vector.extract_strided_slice %299 {offsets = [0, 0], sizes = [8, 32], strides = [1, 1]} : vector<24x32xf32> to vector<8x32xf32>
    %302 = arith.mulf %300, %301 : vector<8x32xf32>
    %303 = vector.extract_strided_slice %296 {offsets = [8, 0], sizes = [8, 32], strides = [1, 1]} : vector<24x32xf32> to vector<8x32xf32>
    %304 = vector.extract_strided_slice %299 {offsets = [8, 0], sizes = [8, 32], strides = [1, 1]} : vector<24x32xf32> to vector<8x32xf32>
    %305 = arith.mulf %303, %304 : vector<8x32xf32>
    %306 = arith.addf %302, %305 : vector<8x32xf32>
    %307 = vector.extract_strided_slice %296 {offsets = [16, 0], sizes = [8, 32], strides = [1, 1]} : vector<24x32xf32> to vector<8x32xf32>
    %308 = vector.extract_strided_slice %299 {offsets = [16, 0], sizes = [8, 32], strides = [1, 1]} : vector<24x32xf32> to vector<8x32xf32>
    %309 = arith.mulf %307, %308 : vector<8x32xf32>
    %310 = arith.addf %306, %309 : vector<8x32xf32>
    %311 = vector.extract_strided_slice %299 {offsets = [0, 0], sizes = [8, 32], strides = [1, 1]} : vector<24x32xf32> to vector<8x32xf32>
    %312 = arith.mulf %311, %311 : vector<8x32xf32>
    %313 = vector.extract_strided_slice %299 {offsets = [8, 0], sizes = [8, 32], strides = [1, 1]} : vector<24x32xf32> to vector<8x32xf32>
    %314 = arith.mulf %313, %313 : vector<8x32xf32>
    %315 = arith.addf %312, %314 : vector<8x32xf32>
    %316 = vector.extract_strided_slice %299 {offsets = [16, 0], sizes = [8, 32], strides = [1, 1]} : vector<24x32xf32> to vector<8x32xf32>
    %317 = arith.mulf %316, %316 : vector<8x32xf32>
    %318 = arith.addf %315, %317 : vector<8x32xf32>
    %319 = math.sqrt %318 : vector<8x32xf32>
    %c2_159 = arith.constant 2 : index
    %c0_160 = arith.constant 0 : index
    %c0_161 = arith.constant 0 : index
    %320 = vector.load %arg17[%c2_159, %c0_160, %c0_161] : memref<3x32x32xf32, #tpu.memory_space<vmem>>, vector<1x32x32xf32>
    %321 = vector.shape_cast %320 : vector<1x32x32xf32> to vector<32x32xf32>
    %cst_162 = arith.constant dense<0.000000e+00> : vector<8x32xf32>
    %322 = tpu.matmul %284, %321, %cst_162 {dimension_numbers = #tpu.dot_dimension_numbers<[1], [0], [0], [1], [0, 0, 1, 1], [], []>} : vector<8x32xf32>, vector<32x32xf32>, vector<8x32xf32> -> vector<8x32xf32>
    %c2_163 = arith.constant 2 : index
    %c0_164 = arith.constant 0 : index
    %c0_165 = arith.constant 0 : index
    %323 = vector.load %arg18[%c2_163, %c0_164, %c0_165] : memref<3x32x32xf32, #tpu.memory_space<vmem>>, vector<1x32x32xf32>
    %324 = vector.shape_cast %323 : vector<1x32x32xf32> to vector<32x32xf32>
    %cst_166 = arith.constant dense<0.000000e+00> : vector<8x32xf32>
    %325 = tpu.matmul %319, %324, %cst_166 {dimension_numbers = #tpu.dot_dimension_numbers<[1], [0], [0], [1], [0, 0, 1, 1], [], []>} : vector<8x32xf32>, vector<32x32xf32>, vector<8x32xf32> -> vector<8x32xf32>
    %326 = arith.addf %322, %325 : vector<8x32xf32>
    %c2_167 = arith.constant 2 : index
    %c0_168 = arith.constant 0 : index
    %c0_169 = arith.constant 0 : index
    %327 = vector.load %arg19[%c2_167, %c0_168, %c0_169] : memref<3x1x32xf32, #tpu.memory_space<vmem>>, vector<1x1x32xf32>
    %328 = vector.shape_cast %327 : vector<1x1x32xf32> to vector<1x32xf32>
    %329 = vector.broadcast %328 : vector<1x32xf32> to vector<8x32xf32>
    %330 = arith.addf %326, %329 : vector<8x32xf32>
    %331 = arith.negf %330 : vector<8x32xf32>
    %332 = math.exp %331 : vector<8x32xf32>
    %cst_170 = arith.constant 1.000000e+00 : f32
    %333 = vector.broadcast %cst_170 : f32 to vector<8x32xf32>
    %334 = arith.addf %333, %332 : vector<8x32xf32>
    %335 = arith.divf %333, %334 : vector<8x32xf32>
    %336 = arith.mulf %330, %335 : vector<8x32xf32>
    %c2_171 = arith.constant 2 : index
    %c0_172 = arith.constant 0 : index
    %c0_173 = arith.constant 0 : index
    %337 = vector.load %arg20[%c2_171, %c0_172, %c0_173] : memref<3x32x96xf32, #tpu.memory_space<vmem>>, vector<1x32x96xf32>
    %338 = vector.shape_cast %337 : vector<1x32x96xf32> to vector<32x96xf32>
    %cst_174 = arith.constant dense<0.000000e+00> : vector<8x96xf32>
    %339 = tpu.matmul %336, %338, %cst_174 {dimension_numbers = #tpu.dot_dimension_numbers<[1], [0], [0], [1], [0, 0, 1, 1], [], []>} : vector<8x32xf32>, vector<32x96xf32>, vector<8x96xf32> -> vector<8x96xf32>
    %c2_175 = arith.constant 2 : index
    %c0_176 = arith.constant 0 : index
    %c0_177 = arith.constant 0 : index
    %340 = vector.load %arg21[%c2_175, %c0_176, %c0_177] : memref<3x1x96xf32, #tpu.memory_space<vmem>>, vector<1x1x96xf32>
    %341 = vector.shape_cast %340 : vector<1x1x96xf32> to vector<1x96xf32>
    %342 = vector.broadcast %341 : vector<1x96xf32> to vector<8x96xf32>
    %343 = arith.addf %339, %342 : vector<8x96xf32>
    %344 = vector.extract_strided_slice %343 {offsets = [0, 32], sizes = [8, 32], strides = [1, 1]} : vector<8x96xf32> to vector<8x32xf32>
    %345 = vector.extract_strided_slice %343 {offsets = [0, 64], sizes = [8, 32], strides = [1, 1]} : vector<8x96xf32> to vector<8x32xf32>
    %346 = arith.mulf %344, %310 : vector<8x32xf32>
    %347 = arith.addf %284, %346 : vector<8x32xf32>
    %348 = arith.addf %347, %345 : vector<8x32xf32>
    %c0_178 = arith.constant 0 : index
    %c0_179 = arith.constant 0 : index
    %349 = vector.load %arg22[%c0_178, %c0_179] : memref<32x32xf32, #tpu.memory_space<vmem>>, vector<32x32xf32>
    %c0_180 = arith.constant 0 : index
    %c0_181 = arith.constant 0 : index
    %350 = vector.load %arg23[%c0_180, %c0_181] : memref<1x32xf32, #tpu.memory_space<vmem>>, vector<1x32xf32>
    %cst_182 = arith.constant dense<0.000000e+00> : vector<8x32xf32>
    %351 = tpu.matmul %348, %349, %cst_182 {dimension_numbers = #tpu.dot_dimension_numbers<[1], [0], [0], [1], [0, 0, 1, 1], [], []>} : vector<8x32xf32>, vector<32x32xf32>, vector<8x32xf32> -> vector<8x32xf32>
    %352 = vector.broadcast %350 : vector<1x32xf32> to vector<8x32xf32>
    %353 = arith.addf %351, %352 : vector<8x32xf32>
    %354 = arith.negf %353 : vector<8x32xf32>
    %355 = math.exp %354 : vector<8x32xf32>
    %cst_183 = arith.constant 1.000000e+00 : f32
    %356 = vector.broadcast %cst_183 : f32 to vector<8x32xf32>
    %357 = arith.addf %356, %355 : vector<8x32xf32>
    %358 = arith.divf %356, %357 : vector<8x32xf32>
    %359 = arith.mulf %353, %358 : vector<8x32xf32>
    %cst_184 = arith.constant dense<0.000000e+00> : vector<8x32xf32>
    %360 = tpu.matmul %359, %349, %cst_184 {dimension_numbers = #tpu.dot_dimension_numbers<[1], [0], [0], [1], [0, 0, 1, 1], [], []>} : vector<8x32xf32>, vector<32x32xf32>, vector<8x32xf32> -> vector<8x32xf32>
    %361 = vector.broadcast %350 : vector<1x32xf32> to vector<8x32xf32>
    %362 = arith.addf %360, %361 : vector<8x32xf32>
    %c0_185 = arith.constant 0 : index
    %c0_186 = arith.constant 0 : index
    %363 = vector.load %arg24[%c0_185, %c0_186] : memref<8x32xf32, #tpu.memory_space<vmem>>, vector<8x32xf32>
    tpu.vector_store %arg24[%c0_185, %c0_186], %362 {strides = array<i32>} : memref<8x32xf32, #tpu.memory_space<vmem>>, vector<8x32xf32>,
    return
  }
  func.func @transform_0(%arg0: i32) -> (i32, i32) {
    %c0_i32 = arith.constant 0 : i32
    %c0_i32_0 = arith.constant 0 : i32
    %c0_i32_1 = arith.constant 0 : i32
    return %c0_i32, %c0_i32_0 : i32, i32
  }
  func.func @transform_1(%arg0: i32) -> (i32, i32) {
    %c0_i32 = arith.constant 0 : i32
    %c0_i32_0 = arith.constant 0 : i32
    %c0_i32_1 = arith.constant 0 : i32
    return %c0_i32, %c0_i32_0 : i32, i32
  }
  func.func @transform_2(%arg0: i32) -> (i32, i32) {
    %c0_i32 = arith.constant 0 : i32
    %c0_i32_0 = arith.constant 0 : i32
    %c0_i32_1 = arith.constant 0 : i32
    return %c0_i32, %c0_i32_0 : i32, i32
  }
  func.func @transform_3(%arg0: i32) -> (i32, i32) {
    %c0_i32 = arith.constant 0 : i32
    %c0_i32_0 = arith.constant 0 : i32
    %c0_i32_1 = arith.constant 0 : i32
    return %c0_i32, %c0_i32_0 : i32, i32
  }
  func.func @transform_4(%arg0: i32) -> (i32, i32) {
    %c0_i32 = arith.constant 0 : i32
    %c0_i32_0 = arith.constant 0 : i32
    %c0_i32_1 = arith.constant 0 : i32
    return %c0_i32, %c0_i32_0 : i32, i32
  }
  func.func @transform_5(%arg0: i32) -> (i32, i32) {
    %c0_i32 = arith.constant 0 : i32
    %c0_i32_0 = arith.constant 0 : i32
    %c0_i32_1 = arith.constant 0 : i32
    return %c0_i32, %c0_i32_0 : i32, i32
  }
  func.func @transform_6(%arg0: i32) -> (i32, i32) {
    %c0_i32 = arith.constant 0 : i32
    %c0_i32_0 = arith.constant 0 : i32
    %c0_i32_1 = arith.constant 0 : i32
    return %c0_i32, %c0_i32_0 : i32, i32
  }
  func.func @transform_7(%arg0: i32) -> (i32, i32) {
    %c0_i32 = arith.constant 0 : i32
    %c0_i32_0 = arith.constant 0 : i32
    %c0_i32_1 = arith.constant 0 : i32
    return %c0_i32, %c0_i32_0 : i32, i32
  }
  func.func @transform_8(%arg0: i32) -> (i32, i32, i32) {
    %c0_i32 = arith.constant 0 : i32
    %c0_i32_0 = arith.constant 0 : i32
    %c0_i32_1 = arith.constant 0 : i32
    %c0_i32_2 = arith.constant 0 : i32
    return %c0_i32, %c0_i32_0, %c0_i32_1 : i32, i32, i32
  }
  func.func @transform_9(%arg0: i32) -> (i32, i32, i32) {
    %c0_i32 = arith.constant 0 : i32
    %c0_i32_0 = arith.constant 0 : i32
    %c0_i32_1 = arith.constant 0 : i32
    %c0_i32_2 = arith.constant 0 : i32
    return %c0_i32, %c0_i32_0, %c0_i32_1 : i32, i32, i32
  }
  func.func @transform_10(%arg0: i32) -> (i32, i32, i32) {
    %c0_i32 = arith.constant 0 : i32
    %c0_i32_0 = arith.constant 0 : i32
    %c0_i32_1 = arith.constant 0 : i32
    %c0_i32_2 = arith.constant 0 : i32
    return %c0_i32, %c0_i32_0, %c0_i32_1 : i32, i32, i32
  }
  func.func @transform_11(%arg0: i32) -> (i32, i32, i32) {
    %c0_i32 = arith.constant 0 : i32
    %c0_i32_0 = arith.constant 0 : i32
    %c0_i32_1 = arith.constant 0 : i32
    %c0_i32_2 = arith.constant 0 : i32
    return %c0_i32, %c0_i32_0, %c0_i32_1 : i32, i32, i32
  }
  func.func @transform_12(%arg0: i32) -> (i32, i32, i32) {
    %c0_i32 = arith.constant 0 : i32
    %c0_i32_0 = arith.constant 0 : i32
    %c0_i32_1 = arith.constant 0 : i32
    %c0_i32_2 = arith.constant 0 : i32
    return %c0_i32, %c0_i32_0, %c0_i32_1 : i32, i32, i32
  }
  func.func @transform_13(%arg0: i32) -> (i32, i32, i32) {
    %c0_i32 = arith.constant 0 : i32
    %c0_i32_0 = arith.constant 0 : i32
    %c0_i32_1 = arith.constant 0 : i32
    %c0_i32_2 = arith.constant 0 : i32
    return %c0_i32, %c0_i32_0, %c0_i32_1 : i32, i32, i32
  }
  func.func @transform_14(%arg0: i32) -> (i32, i32, i32) {
    %c0_i32 = arith.constant 0 : i32
    %c0_i32_0 = arith.constant 0 : i32
    %c0_i32_1 = arith.constant 0 : i32
    %c0_i32_2 = arith.constant 0 : i32
    return %c0_i32, %c0_i32_0, %c0_i32_1 : i32, i32, i32
  }
  func.func @transform_15(%arg0: i32) -> (i32, i32, i32) {
    %c0_i32 = arith.constant 0 : i32
    %c0_i32_0 = arith.constant 0 : i32
    %c0_i32_1 = arith.constant 0 : i32
    %c0_i32_2 = arith.constant 0 : i32
    return %c0_i32, %c0_i32_0, %c0_i32_1 : i32, i32, i32
  }
  func.func @transform_16(%arg0: i32) -> (i32, i32, i32) {
    %c0_i32 = arith.constant 0 : i32
    %c0_i32_0 = arith.constant 0 : i32
    %c0_i32_1 = arith.constant 0 : i32
    %c0_i32_2 = arith.constant 0 : i32
    return %c0_i32, %c0_i32_0, %c0_i32_1 : i32, i32, i32
  }
  func.func @transform_17(%arg0: i32) -> (i32, i32, i32) {
    %c0_i32 = arith.constant 0 : i32
    %c0_i32_0 = arith.constant 0 : i32
    %c0_i32_1 = arith.constant 0 : i32
    %c0_i32_2 = arith.constant 0 : i32
    return %c0_i32, %c0_i32_0, %c0_i32_1 : i32, i32, i32
  }
  func.func @transform_18(%arg0: i32) -> (i32, i32, i32) {
    %c0_i32 = arith.constant 0 : i32
    %c0_i32_0 = arith.constant 0 : i32
    %c0_i32_1 = arith.constant 0 : i32
    %c0_i32_2 = arith.constant 0 : i32
    return %c0_i32, %c0_i32_0, %c0_i32_1 : i32, i32, i32
  }
  func.func @transform_19(%arg0: i32) -> (i32, i32, i32) {
    %c0_i32 = arith.constant 0 : i32
    %c0_i32_0 = arith.constant 0 : i32
    %c0_i32_1 = arith.constant 0 : i32
    %c0_i32_2 = arith.constant 0 : i32
    return %c0_i32, %c0_i32_0, %c0_i32_1 : i32, i32, i32
  }
  func.func @transform_20(%arg0: i32) -> (i32, i32, i32) {
    %c0_i32 = arith.constant 0 : i32
    %c0_i32_0 = arith.constant 0 : i32
    %c0_i32_1 = arith.constant 0 : i32
    %c0_i32_2 = arith.constant 0 : i32
    return %c0_i32, %c0_i32_0, %c0_i32_1 : i32, i32, i32
  }
  func.func @transform_21(%arg0: i32) -> (i32, i32) {
    %c0_i32 = arith.constant 0 : i32
    %c0_i32_0 = arith.constant 0 : i32
    %c0_i32_1 = arith.constant 0 : i32
    return %c0_i32, %c0_i32_0 : i32, i32
  }
  func.func @transform_22(%arg0: i32) -> (i32, i32) {
    %c0_i32 = arith.constant 0 : i32
    %c0_i32_0 = arith.constant 0 : i32
    %c0_i32_1 = arith.constant 0 : i32
    return %c0_i32, %c0_i32_0 : i32, i32
  }
  func.func @transform_23(%arg0: i32) -> (i32, i32) {
    %c0_i32 = arith.constant 0 : i32
    %c0_i32_0 = arith.constant 0 : i32
    %c0_i32_1 = arith.constant 0 : i32
    return %c0_i32, %c0_i32_0 : i32, i32
  }
}

</mosaic_0001>

<llo_original>
// kernel: painn_forward.1
$region0: #{painn_forward.1}
  #allocation0 [shape = 'u32[]', space=smem, size = 0x4, offset = 0x4, fixed_abs, tag = 'smem constant byte address 0x4 - core index']
  #allocation1 [shape = 'u32[144,128]{1,0:T(1,128)}', space=vmem, size = 0x12000, scoped, tag = 'internal scratch']
  %s0 = inlined_call_operand.vmem [shape: f32[16,8], index: 0, kind: input, shape index: {}]
  %s1 = inlined_call_operand.vmem [shape: f32[8,16], index: 1, kind: input, shape index: {}]
  %s2 = inlined_call_operand.vmem [shape: f32[48,24], index: 2, kind: input, shape index: {}]
  %s3 = inlined_call_operand.vmem [shape: f32[24,48], index: 3, kind: input, shape index: {}]
  %s4 = inlined_call_operand.vmem [shape: f32[16,3], index: 4, kind: input, shape index: {}]
  %s5 = inlined_call_operand.vmem [shape: f32[1,20], index: 5, kind: input, shape index: {}]
  %s6 = inlined_call_operand.hbm [shape: f32[8,32], index: 6, kind: input, shape index: {}]
  %s7 = inlined_call_operand.vmem [shape: f32[24,32], index: 7, kind: input, shape index: {}]
  %s8 = inlined_call_operand.vmem [shape: f32[3,32,32], index: 8, kind: input, shape index: {}]
  %s9 = inlined_call_operand.vmem [shape: f32[3,1,32], index: 9, kind: input, shape index: {}]
  %s10 = inlined_call_operand.vmem [shape: f32[3,32,96], index: 10, kind: input, shape index: {}]
  %s11 = inlined_call_operand.vmem [shape: f32[3,1,96], index: 11, kind: input, shape index: {}]
  %s12 = inlined_call_operand.hbm [shape: f32[3,20,96], index: 12, kind: input, shape index: {}]
  %s13 = inlined_call_operand.vmem [shape: f32[3,1,96], index: 13, kind: input, shape index: {}]
  %s14 = inlined_call_operand.vmem [shape: f32[3,32,32], index: 14, kind: input, shape index: {}]
  %s15 = inlined_call_operand.vmem [shape: f32[3,32,32], index: 15, kind: input, shape index: {}]
  %s16 = inlined_call_operand.vmem [shape: f32[3,32,32], index: 16, kind: input, shape index: {}]
  %s17 = inlined_call_operand.vmem [shape: f32[3,32,32], index: 17, kind: input, shape index: {}]
  %s18 = inlined_call_operand.vmem [shape: f32[3,1,32], index: 18, kind: input, shape index: {}]
  %s19 = inlined_call_operand.hbm [shape: f32[3,32,96], index: 19, kind: input, shape index: {}]
  %s20 = inlined_call_operand.vmem [shape: f32[3,1,96], index: 20, kind: input, shape index: {}]
  %s21 = inlined_call_operand.vmem [shape: f32[32,32], index: 21, kind: input, shape index: {}]
  %s22 = inlined_call_operand.vmem [shape: f32[1,32], index: 22, kind: input, shape index: {}]
  %s23 = inlined_call_operand.hbm [shape: f32[8,32], index: 23, kind: output, shape index: {}]
  %s24 = sld [smem:[#allocation0]]
  $region114: #{painn_forward.1} parent=0
    _
  %s26 = ssub.s32 1, %s24
  %s27 = scalar_select 0, %s26, %s24
  $region1: #{painn_forward.1} parent=0
    #allocation2 [shape = 'u8[4096]{0}', space=vmem, size = 0x1000, scoped, tag = 'input window, operand 6, single buffered']
    #allocation3 [shape = 's32[1]{0}', space=sflag, size = 0x4, scoped, tag = 'scoped memory for painn_forward.1']
    #allocation4 [shape = 's32[1]{0}', space=sflag, size = 0x4, scoped, tag = 'scoped memory for painn_forward.1']
    #allocation5 [shape = 'u8[36864]{0}', space=vmem, size = 0x9000, scoped, tag = 'input window, operand 12, single buffered']
    #allocation6 [shape = 's32[1]{0}', space=sflag, size = 0x4, scoped, tag = 'scoped memory for painn_forward.1']
    #allocation7 [shape = 'u8[49152]{0}', space=vmem, size = 0xc000, scoped, tag = 'input window, operand 19, single buffered']
    #allocation8 [shape = 'u8[4096]{0}', space=vmem, size = 0x1000, scoped, tag = 'output window, operand 0, single buffered']
    %28 = vsyncpa [#allocation3], 0
    %29 = vsyncpa [#allocation6], 0
    %30 = vsyncpa [#allocation4], 0
    // Predicated region
    $region2: #{painn_forward.1} parent=1 // pred_check
      _
    $region3: #{painn_forward.1} parent=1 // pred_check_branch
      %32 = sbr.rel (0) target = $region5
    $region4: #{painn_forward.1} parent=1 // pred_region
      _
    $region5: #{painn_forward.1} parent=1 // pred_fallthru
      _
    // Predicated region
    $region6: #{painn_forward.1} parent=1 // pred_check
      _
    $region7: #{painn_forward.1} parent=1 // pred_check_branch
      %34 = sbr.rel (0) target = $region9
    $region8: #{painn_forward.1} parent=1 // pred_region
      _
    $region9: #{painn_forward.1} parent=1 // pred_fallthru
      _
    // Predicated region
    $region10: #{painn_forward.1} parent=1 // pred_check
      _
    $region11: #{painn_forward.1} parent=1 // pred_check_branch
      %36 = sbr.rel (0) target = $region13
    $region12: #{painn_forward.1} parent=1 // pred_region
      _
    $region13: #{painn_forward.1} parent=1 // pred_fallthru
      _
    // Predicated region
    $region14: #{painn_forward.1} parent=1 // pred_check
      _
    $region15: #{painn_forward.1} parent=1 // pred_check_branch
      %38 = sbr.rel (0) target = $region17
    $region16: #{painn_forward.1} parent=1 // pred_region
      _
    $region17: #{painn_forward.1} parent=1 // pred_fallthru
      _
    // Predicated region
    $region18: #{painn_forward.1} parent=1 // pred_check
      _
    $region19: #{painn_forward.1} parent=1 // pred_check_branch
      %40 = sbr.rel (0) target = $region21
    $region20: #{painn_forward.1} parent=1 // pred_region
      _
    $region21: #{painn_forward.1} parent=1 // pred_fallthru
      _
    // Predicated region
    $region22: #{painn_forward.1} parent=1 // pred_check
      _
    $region23: #{painn_forward.1} parent=1 // pred_check_branch
      %42 = sbr.rel (0) target = $region25
    $region24: #{painn_forward.1} parent=1 // pred_region
      _
    $region25: #{painn_forward.1} parent=1 // pred_fallthru
      _
    // Predicated region
    $region26: #{painn_forward.1} parent=1 // pred_check
      _
    $region27: #{painn_forward.1} parent=1 // pred_check_branch
      %44 = sbr.rel (0) target = $region29
    $region28: #{painn_forward.1} parent=1 // pred_region
      %s46 = ssub.s32 128, 128
      %47 = vsyncadd [#allocation3], %s46
      %s49 = sshll.u32 [#allocation2], 4
      %s50 = int_to_ptr.vmem [resolvable:$true] %s49
      %52 = dma.hbm_to_vmem [thread:$0]  %s6, 128, %s50, [#allocation3]
    $region29: #{painn_forward.1} parent=1 // pred_fallthru
      _
    // Predicated region
    $region30: #{painn_forward.1} parent=1 // pred_check
      _
    $region31: #{painn_forward.1} parent=1 // pred_check_branch
      %54 = sbr.rel (0) target = $region33
    $region32: #{painn_forward.1} parent=1 // pred_region
      _
    $region33: #{painn_forward.1} parent=1 // pred_fallthru
      _
    // Predicated region
    $region34: #{painn_forward.1} parent=1 // pred_check
      _
    $region35: #{painn_forward.1} parent=1 // pred_check_branch
      %56 = sbr.rel (0) target = $region37
    $region36: #{painn_forward.1} parent=1 // pred_region
      _
    $region37: #{painn_forward.1} parent=1 // pred_fallthru
      _
    // Predicated region
    $region38: #{painn_forward.1} parent=1 // pred_check
      _
    $region39: #{painn_forward.1} parent=1 // pred_check_branch
      %58 = sbr.rel (0) target = $region41
    $region40: #{painn_forward.1} parent=1 // pred_region
      _
    $region41: #{painn_forward.1} parent=1 // pred_fallthru
      _
    // Predicated region
    $region42: #{painn_forward.1} parent=1 // pred_check
      _
    $region43: #{painn_forward.1} parent=1 // pred_check_branch
      %60 = sbr.rel (0) target = $region45
    $region44: #{painn_forward.1} parent=1 // pred_region
      _
    $region45: #{painn_forward.1} parent=1 // pred_fallthru
      _
    // Predicated region
    $region46: #{painn_forward.1} parent=1 // pred_check
      _
    $region47: #{painn_forward.1} parent=1 // pred_check_branch
      %62 = sbr.rel (0) target = $region49
    $region48: #{painn_forward.1} parent=1 // pred_region
      _
    $region49: #{painn_forward.1} parent=1 // pred_fallthru
      _
    // Predicated region
    $region50: #{painn_forward.1} parent=1 // pred_check
      _
    $region51: #{painn_forward.1} parent=1 // pred_check_branch
      %64 = sbr.rel (0) target = $region53
    $region52: #{painn_forward.1} parent=1 // pred_region
      %s66 = ssub.s32 1152, 1152
      %67 = vsyncadd [#allocation6], %s66
      %s68 = sshll.u32 [#allocation5], 4
      %s69 = int_to_ptr.vmem [resolvable:$true] %s68
      %74 = dma.hbm_to_vmem [thread:$0]  %s12, 1152, %s69, [#allocation6], 128, 128, 8
    $region53: #{painn_forward.1} parent=1 // pred_fallthru
      _
    // Predicated region
    $region54: #{painn_forward.1} parent=1 // pred_check
      _
    $region55: #{painn_forward.1} parent=1 // pred_check_branch
      %76 = sbr.rel (0) target = $region57
    $region56: #{painn_forward.1} parent=1 // pred_region
      _
    $region57: #{painn_forward.1} parent=1 // pred_fallthru
      _
    // Predicated region
    $region58: #{painn_forward.1} parent=1 // pred_check
      _
    $region59: #{painn_forward.1} parent=1 // pred_check_branch
      %78 = sbr.rel (0) target = $region61
    $region60: #{painn_forward.1} parent=1 // pred_region
      _
    $region61: #{painn_forward.1} parent=1 // pred_fallthru
      _
    // Predicated region
    $region62: #{painn_forward.1} parent=1 // pred_check
      _
    $region63: #{painn_forward.1} parent=1 // pred_check_branch
      %80 = sbr.rel (0) target = $region65
    $region64: #{painn_forward.1} parent=1 // pred_region
      _
    $region65: #{painn_forward.1} parent=1 // pred_fallthru
      _
    // Predicated region
    $region66: #{painn_forward.1} parent=1 // pred_check
      _
    $region67: #{painn_forward.1} parent=1 // pred_check_branch
      %82 = sbr.rel (0) target = $region69
    $region68: #{painn_forward.1} parent=1 // pred_region
      _
    $region69: #{painn_forward.1} parent=1 // pred_fallthru
      _
    // Predicated region
    $region70: #{painn_forward.1} parent=1 // pred_check
      _
    $region71: #{painn_forward.1} parent=1 // pred_check_branch
      %84 = sbr.rel (0) target = $region73
    $region72: #{painn_forward.1} parent=1 // pred_region
      _
    $region73: #{painn_forward.1} parent=1 // pred_fallthru
      _
    // Predicated region
    $region74: #{painn_forward.1} parent=1 // pred_check
      _
    $region75: #{painn_forward.1} parent=1 // pred_check_branch
      %86 = sbr.rel (0) target = $region77
    $region76: #{painn_forward.1} parent=1 // pred_region
      _
    $region77: #{painn_forward.1} parent=1 // pred_fallthru
      _
    // Predicated region
    $region78: #{painn_forward.1} parent=1 // pred_check
      _
    $region79: #{painn_forward.1} parent=1 // pred_check_branch
      %88 = sbr.rel (0) target = $region81
    $region80: #{painn_forward.1} parent=1 // pred_region
      %s90 = ssub.s32 1536, 1536
      %91 = vsyncadd [#allocation6], %s90
      %s92 = sshll.u32 [#allocation7], 4
      %s93 = int_to_ptr.vmem [resolvable:$true] %s92
      %98 = dma.hbm_to_vmem [thread:$0]  %s19, 1536, %s93, [#allocation6], 128, 128, 8
    $region81: #{painn_forward.1} parent=1 // pred_fallthru
      _
    // Predicated region
    $region82: #{painn_forward.1} parent=1 // pred_check
      _
    $region83: #{painn_forward.1} parent=1 // pred_check_branch
      %100 = sbr.rel (0) target = $region85
    $region84: #{painn_forward.1} parent=1 // pred_region
      _
    $region85: #{painn_forward.1} parent=1 // pred_fallthru
      _
    // Predicated region
    $region86: #{painn_forward.1} parent=1 // pred_check
      _
    $region87: #{painn_forward.1} parent=1 // pred_check_branch
      %102 = sbr.rel (0) target = $region89
    $region88: #{painn_forward.1} parent=1 // pred_region
      _
    $region89: #{painn_forward.1} parent=1 // pred_fallthru
      _
    // Predicated region
    $region90: #{painn_forward.1} parent=1 // pred_check
      _
    $region91: #{painn_forward.1} parent=1 // pred_check_branch
      %104 = sbr.rel (0) target = $region93
    $region92: #{painn_forward.1} parent=1 // pred_region
      _
    $region93: #{painn_forward.1} parent=1 // pred_fallthru
      _
    // Predicated region
    $region94: #{painn_forward.1} parent=1 // pred_check
      _
    $region95: #{painn_forward.1} parent=1 // pred_check_branch
      %106 = sbr.rel (0) target = $region97
    $region96: #{painn_forward.1} parent=1 // pred_region
      %107 = dma.done [#allocation3], 128
    $region97: #{painn_forward.1} parent=1 // pred_fallthru
      _
    // Predicated region
    $region98: #{painn_forward.1} parent=1 // pred_check
      _
    $region99: #{painn_forward.1} parent=1 // pred_check_branch
      %109 = sbr.rel (0) target = $region101
    $region100: #{painn_forward.1} parent=1 // pred_region
      %110 = dma.done [#allocation6], 1152
    $region101: #{painn_forward.1} parent=1 // pred_fallthru
      _
    // Predicated region
    $region102: #{painn_forward.1} parent=1 // pred_check
      _
    $region103: #{painn_forward.1} parent=1 // pred_check_branch
      %112 = sbr.rel (0) target = $region105
    $region104: #{painn_forward.1} parent=1 // pred_region
      %113 = dma.done [#allocation6], 1536
    $region105: #{painn_forward.1} parent=1 // pred_fallthru
      _
    %v114 = vld [vmem:[%s0] sm:$0xff]
    %v115 = vld [vmem:[%s0 + $0x8] sm:$0xff]
    %v116 = vld [vmem:[%s1] sm:$0xff]
    %v117 = vld [vmem:[%s2] sm:$0xff]
    %v118 = vld [vmem:[%s2 + $0x8] sm:$0xff]
    %v119 = vld [vmem:[%s2 + $0x10] sm:$0xff]
    %v120 = vld [vmem:[%s2 + $0x18] sm:$0xff]
    %v121 = vld [vmem:[%s2 + $0x20] sm:$0xff]
    %v122 = vld [vmem:[%s2 + $0x28] sm:$0xff]
    %v123 = vld [vmem:[%s3] sm:$0xff]
    %v124 = vld [vmem:[%s3 + $0x8] sm:$0xff]
    %v125 = vld [vmem:[%s3 + $0x10] sm:$0xff]
    %v126 = vld [vmem:[#allocation2] sm:$0xff]
    %v127 = vld [vmem:[%s7] sm:$0xff]
    %v128 = vld [vmem:[%s7 + $0x8] sm:$0xff]
    %v129 = vld [vmem:[%s7 + $0x10] sm:$0xff]
    %v130 = vld [vmem:[%s4] sm:$0xff]
    %v131 = vld [vmem:[%s4 + $0x8] sm:$0xff]
    %v132 = vmul.f32 %v130, %v130
    %v133 = vmul.f32 %v131, %v131
    %vm134 = vcmask 23552
    %v135 = vsel %vm134, %v132, 0.0
    %136 = vadd.xlane.f32.xlu0 %v135
    %v137 = vpop.xlane.xlu0 %136
    %v138 = vsel %vm134, %v133, 0.0
    %139 = vadd.xlane.f32.xlu0 %v138
    %v140 = vpop.xlane.xlu0 %139
    %v141 = vrsqrt.pop %v137
    %v142 = vmul.f32 %v137, %v141
    %vm143 = vcmp.eq.f32.partialorder %v137, inf
    %v144 = vsel %vm143, %v137, %v142
    %vm145 = vcmp.eq.f32.partialorder %v137, 0.0
    %v146 = vand.u32 %v137, 2147483648
    %v147 = vsel %vm145, %v146, %v144
    %v148 = vrsqrt.pop %v140
    %v149 = vmul.f32 %v140, %v148
    %vm150 = vcmp.eq.f32.partialorder %v140, inf
    %v151 = vsel %vm150, %v140, %v149
    %vm152 = vcmp.eq.f32.partialorder %v140, 0.0
    %v153 = vand.u32 %v140, 2147483648
    %v154 = vsel %vm152, %v153, %v151
    %v155 = vmax.f32 %v147, 1e-12
    %v156 = vmax.f32 %v154, 1e-12
    %v157 = vrcp.pop %v155
    %v158 = vrcp.pop %v156
    %v159 = vld [vmem:[%s5] sm:$0x1]
    %v161 = vlaneseq
    %v162 = vshrl.u32 %v161, 7
    %v163 = vsub.s32 0, %v162
    %v164 = vrot.slane %v159, %v163
    %v166 = vmul.f32 %v147, %v164
    %v167 = vmul.f32 %v154, %v164
    %v168 = vand.u32 2147483647, %v166
    %vm169 = vcmp.le.f32.partialorder %v168, 0.7853982
    %vm170 = vcmp.lt.s32.totalorder %v166, 0
    %v171 = vand.u32 %v166, 2139095040
    %v172 = vshrl.u32 %v171, 23
    %v173 = vsub.s32 %v172, 127
    %v174 = vand.u32 2147483647, %v166
    %v175 = vand.u32 %v174, 8388607
    %v176 = vor.u32 %v175, 8388608
    %v177 = vsub.s32 0, %v176
    %v178 = vadd.s32 %v173, 1
    %vm179 = vcmp.gt.s32.totalorder %v178, 0
    %v180 = vsel %vm179, %v178, 0
    %v181 = vshrl.u32 %v180, 5
    %v182 = vand.u32 %v180, 31
    %v183 = vsub.s32 32, %v182
    %v184 = vshrl.u32 683565275, %v183
    %v185 = vshll.u32 683565275, %v182
    %v186 = vshrl.u32 2475754826, %v183
    %v187 = vor.u32 %v185, %v186
    %v188 = vshll.u32 2475754826, %v182
    %v189 = vshrl.u32 2131351028, %v183
    %v190 = vor.u32 %v188, %v189
    %v191 = vshll.u32 2131351028, %v182
    %v192 = vshrl.u32 2102212464, %v183
    %v193 = vor.u32 %v191, %v192
    %v194 = vshll.u32 2102212464, %v182
    %v195 = vshrl.u32 920167782, %v183
    %v196 = vor.u32 %v194, %v195
    %v197 = vshll.u32 920167782, %v182
    %v198 = vshrl.u32 1326507024, %v183
    %v199 = vor.u32 %v197, %v198
    %vm200 = vcmp.lt.s32.totalorder %v181, 1
    %vm201 = vcmp.lt.s32.totalorder %v181, 2
    %vm202 = vcmp.lt.s32.totalorder %v181, 3
    %vm203 = vcmp.lt.s32.totalorder %v181, 4
    %v204 = vsel %vm200, %v184, %v187
    %v205 = vsel %vm203, %v193, 2102212464
    %v206 = vsel %vm202, %v190, %v205
    %v207 = vsel %vm201, %v204, %v206
    %v208 = vsel %vm200, %v187, %v190
    %v209 = vsel %vm203, %v196, 920167782
    %v210 = vsel %vm202, %v193, %v209
    %v211 = vsel %vm201, %v208, %v210
    %v212 = vsel %vm200, %v190, %v193
    %v213 = vsel %vm203, %v199, 1326507024
    %v214 = vsel %vm202, %v196, %v213
    %v215 = vsel %vm201, %v212, %v214
    %v216 = vshll.u32 %v176, 8
    %v217 = vmul.u32.u64.compose %v216, %v215
    %v218 = vextract.low.u32 %v217
    %v219 = vextract.high.u32 %v217
    %v220 = vmul.u32.u64.compose %v216, %v211
    %v221 = vextract.low.u32 %v220
    %v222 = vextract.high.u32 %v220
    %v223 = vmul.u32 %v216, %v207
    %v224 = vadd.s32 %v219, %v221
    %vm225 = vc.u32 %v219, %v221
    %v226 = vadd.s32 %v222, 1
    %v227 = vsel %vm225, %v226, %v222
    %v228 = vadd.s32 %v223, %v227
    %v229 = vadd.s32 %v228, 536870912
    %v230 = vshrl.u32 %v229, 30
    %v231 = vshll.u32 %v230, 30
    %v232 = vsub.s32 %v228, %v231
    %vm233 = vcmp.lt.s32.totalorder %v232, 0
    %v234 = vsub.s32 0, %v232
    %v235 = vsel %vm233, %v234, %v232
    %v236 = vclz %v235
    %v237 = vsub.s32 %v236, 2
    %vm238 = vcmp.gt.s32.totalorder 0, %v237
    %v239 = vsel %vm238, 0, %v237
    %v240 = vsub.s32 32, %v239
    %v241 = vshll.u32 %v232, %v239
    %v242 = vshrl.u32 %v224, %v240
    %v243 = vor.u32 %v241, %v242
    %v244 = vsub.s32 4294967266, %v239
    %v245 = vadd.s32 %v244, 127
    %v246 = vshll.u32 %v245, 23
    %v247 = vor.u32 4788187, %v246
    %v248 = vand.u32 2147483647, %v247
    %v250 = vcvt.s32.f32 %v243
    %v251 = vmul.f32 %v250, %v248
    %v252 = vxor.u32 %v251, 2147483648
    %v253 = vsel %vm170, %v252, %v251
    %v254 = vsub.s32 4, %v230
    %v255 = vsel %vm170, %v254, %v230
    %v256 = vsel %vm169, %v166, %v253
    %v257 = vsel %vm169, 0, %v255
    %v258 = vcosq.f32.pop %v256
    %v259 = vsinq.f32.pop %v256
    %vm260 = vweird.f32 %v166
    %v261 = vadd.s32 %v257, 3
    %v262 = vand.u32 %v261, 3
    %vm263 = vcmp.lt.s32.totalorder %v262, 2
    %vm264 = vcmp.eq.s32.totalorder %v262, 0
    %v265 = vxor.u32 %v259, 2147483648
    %v266 = vsel %vm264, %v258, %v265
    %vm267 = vcmp.eq.s32.totalorder %v262, 2
    %v268 = vxor.u32 %v258, 2147483648
    %v269 = vsel %vm267, %v268, %v259
    %v270 = vsel %vm263, %v266, %v269
    %v271 = vsel %vm260, nan, %v270
    %v272 = vand.u32 2147483647, %v167
    %vm273 = vcmp.le.f32.partialorder %v272, 0.7853982
    %vm274 = vcmp.lt.s32.totalorder %v167, 0
    %v275 = vand.u32 %v167, 2139095040
    %v276 = vshrl.u32 %v275, 23
    %v277 = vsub.s32 %v276, 127
    %v278 = vand.u32 2147483647, %v167
    %v279 = vand.u32 %v278, 8388607
    %v280 = vor.u32 %v279, 8388608
    %v281 = vsub.s32 0, %v280
    %v282 = vadd.s32 %v277, 1
    %vm283 = vcmp.gt.s32.totalorder %v282, 0
    %v284 = vsel %vm283, %v282, 0
    %v285 = vshrl.u32 %v284, 5
    %v286 = vand.u32 %v284, 31
    %v287 = vsub.s32 32, %v286
    %v288 = vshrl.u32 683565275, %v287
    %v289 = vshll.u32 683565275, %v286
    %v290 = vshrl.u32 2475754826, %v287
    %v291 = vor.u32 %v289, %v290
    %v292 = vshll.u32 2475754826, %v286
    %v293 = vshrl.u32 2131351028, %v287
    %v294 = vor.u32 %v292, %v293
    %v295 = vshll.u32 2131351028, %v286
    %v296 = vshrl.u32 2102212464, %v287
    %v297 = vor.u32 %v295, %v296
    %v298 = vshll.u32 2102212464, %v286
    %v299 = vshrl.u32 920167782, %v287
    %v300 = vor.u32 %v298, %v299
    %v301 = vshll.u32 920167782, %v286
    %v302 = vshrl.u32 1326507024, %v287
    %v303 = vor.u32 %v301, %v302
    %vm304 = vcmp.lt.s32.totalorder %v285, 1
    %vm305 = vcmp.lt.s32.totalorder %v285, 2
    %vm306 = vcmp.lt.s32.totalorder %v285, 3
    %vm307 = vcmp.lt.s32.totalorder %v285, 4
    %v308 = vsel %vm304, %v288, %v291
    %v309 = vsel %vm307, %v297, 2102212464
    %v310 = vsel %vm306, %v294, %v309
    %v311 = vsel %vm305, %v308, %v310
    %v312 = vsel %vm304, %v291, %v294
    %v313 = vsel %vm307, %v300, 920167782
    %v314 = vsel %vm306, %v297, %v313
    %v315 = vsel %vm305, %v312, %v314
    %v316 = vsel %vm304, %v294, %v297
    %v317 = vsel %vm307, %v303, 1326507024
    %v318 = vsel %vm306, %v300, %v317
    %v319 = vsel %vm305, %v316, %v318
    %v320 = vshll.u32 %v280, 8
    %v321 = vmul.u32.u64.compose %v320, %v319
    %v322 = vextract.low.u32 %v321
    %v323 = vextract.high.u32 %v321
    %v324 = vmul.u32.u64.compose %v320, %v315
    %v325 = vextract.low.u32 %v324
    %v326 = vextract.high.u32 %v324
    %v327 = vmul.u32 %v320, %v311
    %v328 = vadd.s32 %v323, %v325
    %vm329 = vc.u32 %v323, %v325
    %v330 = vadd.s32 %v326, 1
    %v331 = vsel %vm329, %v330, %v326
    %v332 = vadd.s32 %v327, %v331
    %v333 = vadd.s32 %v332, 536870912
    %v334 = vshrl.u32 %v333, 30
    %v335 = vshll.u32 %v334, 30
    %v336 = vsub.s32 %v332, %v335
    %vm337 = vcmp.lt.s32.totalorder %v336, 0
    %v338 = vsub.s32 0, %v336
    %v339 = vsel %vm337, %v338, %v336
    %v340 = vclz %v339
    %v341 = vsub.s32 %v340, 2
    %vm342 = vcmp.gt.s32.totalorder 0, %v341
    %v343 = vsel %vm342, 0, %v341
    %v344 = vsub.s32 32, %v343
    %v345 = vshll.u32 %v336, %v343
    %v346 = vshrl.u32 %v328, %v344
    %v347 = vor.u32 %v345, %v346
    %v348 = vsub.s32 4294967266, %v343
    %v349 = vadd.s32 %v348, 127
    %v350 = vshll.u32 %v349, 23
    %v351 = vor.u32 4788187, %v350
    %v352 = vand.u32 2147483647, %v351
    %v354 = vcvt.s32.f32 %v347
    %v355 = vmul.f32 %v354, %v352
    %v356 = vxor.u32 %v355, 2147483648
    %v357 = vsel %vm274, %v356, %v355
    %v358 = vsub.s32 4, %v334
    %v359 = vsel %vm274, %v358, %v334
    %v360 = vsel %vm273, %v167, %v357
    %v361 = vsel %vm273, 0, %v359
    %v362 = vcosq.f32.pop %v360
    %v363 = vsinq.f32.pop %v360
    %vm364 = vweird.f32 %v167
    %v365 = vadd.s32 %v361, 3
    %v366 = vand.u32 %v365, 3
    %vm367 = vcmp.lt.s32.totalorder %v366, 2
    %vm368 = vcmp.eq.s32.totalorder %v366, 0
    %v369 = vxor.u32 %v363, 2147483648
    %v370 = vsel %vm368, %v362, %v369
    %vm371 = vcmp.eq.s32.totalorder %v366, 2
    %v372 = vxor.u32 %v362, 2147483648
    %v373 = vsel %vm371, %v372, %v363
    %v374 = vsel %vm367, %v370, %v373
    %v375 = vsel %vm364, nan, %v374
    %v376 = vmul.f32 %v271, %v157
    %v377 = vmul.f32 %v375, %v158
    %v378 = vmul.f32 %v147, 3.1415927
    %v379 = vmul.f32 %v154, 3.1415927
    %v380 = vmul.f32 %v378, 0.2
    %v381 = vmul.f32 %v379, 0.2
    %v382 = vand.u32 2147483647, %v380
    %vm383 = vcmp.le.f32.partialorder %v382, 0.7853982
    %vm384 = vcmp.lt.s32.totalorder %v380, 0
    %v385 = vand.u32 %v380, 2139095040
    %v386 = vshrl.u32 %v385, 23
    %v387 = vsub.s32 %v386, 127
    %v388 = vand.u32 2147483647, %v380
    %v389 = vand.u32 %v388, 8388607
    %v390 = vor.u32 %v389, 8388608
    %v391 = vsub.s32 0, %v390
    %v392 = vadd.s32 %v387, 1
    %vm393 = vcmp.gt.s32.totalorder %v392, 0
    %v394 = vsel %vm393, %v392, 0
    %v395 = vshrl.u32 %v394, 5
    %v396 = vand.u32 %v394, 31
    %v397 = vsub.s32 32, %v396
    %v398 = vshrl.u32 683565275, %v397
    %v399 = vshll.u32 683565275, %v396
    %v400 = vshrl.u32 2475754826, %v397
    %v401 = vor.u32 %v399, %v400
    %v402 = vshll.u32 2475754826, %v396
    %v403 = vshrl.u32 2131351028, %v397
    %v404 = vor.u32 %v402, %v403
    %v405 = vshll.u32 2131351028, %v396
    %v406 = vshrl.u32 2102212464, %v397
    %v407 = vor.u32 %v405, %v406
    %v408 = vshll.u32 2102212464, %v396
    %v409 = vshrl.u32 920167782, %v397
    %v410 = vor.u32 %v408, %v409
    %v411 = vshll.u32 920167782, %v396
    %v412 = vshrl.u32 1326507024, %v397
    %v413 = vor.u32 %v411, %v412
    %vm414 = vcmp.lt.s32.totalorder %v395, 1
    %vm415 = vcmp.lt.s32.totalorder %v395, 2
    %vm416 = vcmp.lt.s32.totalorder %v395, 3
    %vm417 = vcmp.lt.s32.totalorder %v395, 4
    %v418 = vsel %vm414, %v398, %v401
    %v419 = vsel %vm417, %v407, 2102212464
    %v420 = vsel %vm416, %v404, %v419
    %v421 = vsel %vm415, %v418, %v420
    %v422 = vsel %vm414, %v401, %v404
    %v423 = vsel %vm417, %v410, 920167782
    %v424 = vsel %vm416, %v407, %v423
    %v425 = vsel %vm415, %v422, %v424
    %v426 = vsel %vm414, %v404, %v407
    %v427 = vsel %vm417, %v413, 1326507024
    %v428 = vsel %vm416, %v410, %v427
    %v429 = vsel %vm415, %v426, %v428
    %v430 = vshll.u32 %v390, 8
    %v431 = vmul.u32.u64.compose %v430, %v429
    %v432 = vextract.low.u32 %v431
    %v433 = vextract.high.u32 %v431
    %v434 = vmul.u32.u64.compose %v430, %v425
    %v435 = vextract.low.u32 %v434
    %v436 = vextract.high.u32 %v434
    %v437 = vmul.u32 %v430, %v421
    %v438 = vadd.s32 %v433, %v435
    %vm439 = vc.u32 %v433, %v435
    %v440 = vadd.s32 %v436, 1
    %v441 = vsel %vm439, %v440, %v436
    %v442 = vadd.s32 %v437, %v441
    %v443 = vadd.s32 %v442, 536870912
    %v444 = vshrl.u32 %v443, 30
    %v445 = vshll.u32 %v444, 30
    %v446 = vsub.s32 %v442, %v445
    %vm447 = vcmp.lt.s32.totalorder %v446, 0
    %v448 = vsub.s32 0, %v446
    %v449 = vsel %vm447, %v448, %v446
    %v450 = vclz %v449
    %v451 = vsub.s32 %v450, 2
    %vm452 = vcmp.gt.s32.totalorder 0, %v451
    %v453 = vsel %vm452, 0, %v451
    %v454 = vsub.s32 32, %v453
    %v455 = vshll.u32 %v446, %v453
    %v456 = vshrl.u32 %v438, %v454
    %v457 = vor.u32 %v455, %v456
    %v458 = vsub.s32 4294967266, %v453
    %v459 = vadd.s32 %v458, 127
    %v460 = vshll.u32 %v459, 23
    %v461 = vor.u32 4788187, %v460
    %v462 = vand.u32 2147483647, %v461
    %v464 = vcvt.s32.f32 %v457
    %v465 = vmul.f32 %v464, %v462
    %v466 = vxor.u32 %v465, 2147483648
    %v467 = vsel %vm384, %v466, %v465
    %v468 = vsub.s32 4, %v444
    %v469 = vsel %vm384, %v468, %v444
    %v470 = vsel %vm383, %v380, %v467
    %v471 = vsel %vm383, 0, %v469
    %v472 = vcosq.f32.pop %v470
    %v473 = vsinq.f32.pop %v470
    %vm474 = vweird.f32 %v380
    %v475 = vand.u32 %v471, 3
    %vm476 = vcmp.lt.s32.totalorder %v475, 2
    %vm477 = vcmp.eq.s32.totalorder %v475, 0
    %v478 = vxor.u32 %v473, 2147483648
    %v479 = vsel %vm477, %v472, %v478
    %vm480 = vcmp.eq.s32.totalorder %v475, 2
    %v481 = vxor.u32 %v472, 2147483648
    %v482 = vsel %vm480, %v481, %v473
    %v483 = vsel %vm476, %v479, %v482
    %v484 = vsel %vm474, nan, %v483
    %v485 = vand.u32 2147483647, %v381
    %vm486 = vcmp.le.f32.partialorder %v485, 0.7853982
    %vm487 = vcmp.lt.s32.totalorder %v381, 0
    %v488 = vand.u32 %v381, 2139095040
    %v489 = vshrl.u32 %v488, 23
    %v490 = vsub.s32 %v489, 127
    %v491 = vand.u32 2147483647, %v381
    %v492 = vand.u32 %v491, 8388607
    %v493 = vor.u32 %v492, 8388608
    %v494 = vsub.s32 0, %v493
    %v495 = vadd.s32 %v490, 1
    %vm496 = vcmp.gt.s32.totalorder %v495, 0
    %v497 = vsel %vm496, %v495, 0
    %v498 = vshrl.u32 %v497, 5
    %v499 = vand.u32 %v497, 31
    %v500 = vsub.s32 32, %v499
    %v501 = vshrl.u32 683565275, %v500
    %v502 = vshll.u32 683565275, %v499
    %v503 = vshrl.u32 2475754826, %v500
    %v504 = vor.u32 %v502, %v503
    %v505 = vshll.u32 2475754826, %v499
    %v506 = vshrl.u32 2131351028, %v500
    %v507 = vor.u32 %v505, %v506
    %v508 = vshll.u32 2131351028, %v499
    %v509 = vshrl.u32 2102212464, %v500
    %v510 = vor.u32 %v508, %v509
    %v511 = vshll.u32 2102212464, %v499
    %v512 = vshrl.u32 920167782, %v500
    %v513 = vor.u32 %v511, %v512
    %v514 = vshll.u32 920167782, %v499
    %v515 = vshrl.u32 1326507024, %v500
    %v516 = vor.u32 %v514, %v515
    %vm517 = vcmp.lt.s32.totalorder %v498, 1
    %vm518 = vcmp.lt.s32.totalorder %v498, 2
    %vm519 = vcmp.lt.s32.totalorder %v498, 3
    %vm520 = vcmp.lt.s32.totalorder %v498, 4
    %v521 = vsel %vm517, %v501, %v504
    %v522 = vsel %vm520, %v510, 2102212464
    %v523 = vsel %vm519, %v507, %v522
    %v524 = vsel %vm518, %v521, %v523
    %v525 = vsel %vm517, %v504, %v507
    %v526 = vsel %vm520, %v513, 920167782
    %v527 = vsel %vm519, %v510, %v526
    %v528 = vsel %vm518, %v525, %v527
    %v529 = vsel %vm517, %v507, %v510
    %v530 = vsel %vm520, %v516, 1326507024
    %v531 = vsel %vm519, %v513, %v530
    %v532 = vsel %vm518, %v529, %v531
    %v533 = vshll.u32 %v493, 8
    %v534 = vmul.u32.u64.compose %v533, %v532
    %v535 = vextract.low.u32 %v534
    %v536 = vextract.high.u32 %v534
    %v537 = vmul.u32.u64.compose %v533, %v528
    %v538 = vextract.low.u32 %v537
    %v539 = vextract.high.u32 %v537
    %v540 = vmul.u32 %v533, %v524
    %v541 = vadd.s32 %v536, %v538
    %vm542 = vc.u32 %v536, %v538
    %v543 = vadd.s32 %v539, 1
    %v544 = vsel %vm542, %v543, %v539
    %v545 = vadd.s32 %v540, %v544
    %v546 = vadd.s32 %v545, 536870912
    %v547 = vshrl.u32 %v546, 30
    %v548 = vshll.u32 %v547, 30
    %v549 = vsub.s32 %v545, %v548
    %vm550 = vcmp.lt.s32.totalorder %v549, 0
    %v551 = vsub.s32 0, %v549
    %v552 = vsel %vm550, %v551, %v549
    %v553 = vclz %v552
    %v554 = vsub.s32 %v553, 2
    %vm555 = vcmp.gt.s32.totalorder 0, %v554
    %v556 = vsel %vm555, 0, %v554
    %v557 = vsub.s32 32, %v556
    %v558 = vshll.u32 %v549, %v556
    %v559 = vshrl.u32 %v541, %v557
    %v560 = vor.u32 %v558, %v559
    %v561 = vsub.s32 4294967266, %v556
    %v562 = vadd.s32 %v561, 127
    %v563 = vshll.u32 %v562, 23
    %v564 = vor.u32 4788187, %v563
    %v565 = vand.u32 2147483647, %v564
    %v567 = vcvt.s32.f32 %v560
    %v568 = vmul.f32 %v567, %v565
    %v569 = vxor.u32 %v568, 2147483648
    %v570 = vsel %vm487, %v569, %v568
    %v571 = vsub.s32 4, %v547
    %v572 = vsel %vm487, %v571, %v547
    %v573 = vsel %vm486, %v381, %v570
    %v574 = vsel %vm486, 0, %v572
    %v575 = vcosq.f32.pop %v573
    %v576 = vsinq.f32.pop %v573
    %vm577 = vweird.f32 %v381
    %v578 = vand.u32 %v574, 3
    %vm579 = vcmp.lt.s32.totalorder %v578, 2
    %vm580 = vcmp.eq.s32.totalorder %v578, 0
    %v581 = vxor.u32 %v576, 2147483648
    %v582 = vsel %vm580, %v575, %v581
    %vm583 = vcmp.eq.s32.totalorder %v578, 2
    %v584 = vxor.u32 %v575, 2147483648
    %v585 = vsel %vm583, %v584, %v576
    %v586 = vsel %vm579, %v582, %v585
    %v587 = vsel %vm577, nan, %v586
    %v588 = vadd.f32 %v484, 1.0
    %v589 = vadd.f32 %v587, 1.0
    %v590 = vmul.f32 %v588, 0.5
    %v591 = vmul.f32 %v589, 0.5
    %vm592 = vcmp.lt.f32.partialorder %v147, 5.0
    %vm593 = vcmp.lt.f32.partialorder %v154, 5.0
    %v594 = vsel %vm592, 1, 0
    %v595 = vsel %vm593, 1, 0
    %v596 = vcvt.s32.f32 %v594
    %v597 = vcvt.s32.f32 %v595
    %v598 = vmul.f32 %v590, %v596
    %v599 = vmul.f32 %v591, %v597
    %v600 = vmul.f32 %v130, %v157
    %v601 = vmul.f32 %v131, %v158
    %604 = vrot.lane.b32.xlu0 %v600, 127
    %v605 = vpop.permute.xlu0 %604
    %606 = vrot.lane.b32.xlu0 %v601, 127
    %v607 = vpop.permute.xlu0 %606
    %608 = vrot.lane.b32.xlu0 %v600, 126
    %v609 = vpop.permute.xlu0 %608
    %610 = vrot.lane.b32.xlu0 %v601, 126
    %v611 = vpop.permute.xlu0 %610
    %v612 = vld [vmem:[#allocation5] sm:$0xff]
    %v613 = vld [vmem:[#allocation5 + $0x8] sm:$0xff]
    %v614 = vld [vmem:[#allocation5 + $0x10] sm:$0xf]
    %v615 = vld [vmem:[%s13] sm:$0x1]
    %v617 = vlaneseq
    %v618 = vshrl.u32 %v617, 7
    %v619 = vsub.s32 0, %v618
    %v620 = vrot.slane %v615, %v619
    %vm622 = vcmask 162816
    %v624 = vsel %vm622, %v376, 0
    %v627 = vsel %vm622, %v377, 0
    %vm629 = vcmask 1043456
    %v631 = vsel %vm629, %v614, 0
    %633 = vmatprep.subr.mxu0 0.0
    %634 = vmatpush1.msra.mxu0 %v612
    %635 = vmatprep.subr.mxu0 0.0
    %636 = vmatpush1.msra.mxu0 %v613
    %637 = vmatprep.subr.mxu0 0.0
    %638 = vmatpush1.msra.mxu0 %v631
    %639 = vmatprep.subr.mxu0 0.0
    %640 = vmatpush1.msra.mxu0 0.0
    %641 = vmatprep.subr.mxu0 0.0
    %642 = vmatpush1.msra.mxu0 0.0
    %643 = vmatprep.subr.mxu0 0.0
    %644 = vmatpush1.msra.mxu0 0.0
    %645 = vmatprep.subr.mxu0 0.0
    %646 = vmatpush1.msra.mxu0 0.0
    %647 = vmatprep.subr.mxu0 0.0
    %648 = vmatpush1.msra.mxu0 0.0
    %649 = vmatprep.subr.mxu0 0.0
    %650 = vmatpush1.msra.mxu0 0.0
    %651 = vmatprep.subr.mxu0 0.0
    %652 = vmatpush1.msra.mxu0 0.0
    %653 = vmatprep.subr.mxu0 0.0
    %654 = vmatpush1.msra.mxu0 0.0
    %655 = vmatprep.subr.mxu0 0.0
    %656 = vmatpush1.msra.mxu0 0.0
    %657 = vmatprep.subr.mxu0 0.0
    %658 = vmatpush1.msra.mxu0 0.0
    %659 = vmatprep.subr.mxu0 0.0
    %660 = vmatpush1.msra.mxu0 0.0
    %661 = vmatprep.subr.mxu0 0.0
    %662 = vmatpush1.msra.mxu0 0.0
    %663 = vmatprep.subr.mxu0 0.0
    %664 = vmatpush1.msra.mxu0 0.0
    %665 = vmatprep.subr.mxu0 0.0
    %666 = vmatpush1.msra.mxu0 0.0
    %667 = vmatprep.subr.mxu0 0.0
    %668 = vmatpush1.msra.mxu0 0.0
    %669 = vmatprep.subr.mxu0 0.0
    %670 = vmatpush1.msra.mxu0 0.0
    %671 = vmatprep.subr.mxu0 0.0
    %672 = vmatpush1.msra.mxu0 0.0
    %673 = vmatprep.subr.mxu0 0.0
    %674 = vmatpush1.msra.mxu0 0.0
    %675 = vmatprep.subr.mxu0 0.0
    %676 = vmatpush1.msra.mxu0 0.0
    %677 = vmatprep.subr.mxu0 0.0
    %678 = vmatpush1.msra.mxu0 0.0
    %679 = vmatprep.subr.mxu0 0.0
    %680 = vmatpush1.msra.mxu0 0.0
    %681 = vmatprep.subr.mxu0 0.0
    %682 = vmatpush1.msra.mxu0 0.0
    %683 = vmatprep.subr.mxu0 0.0
    %684 = vmatpush1.msra.mxu0 0.0
    %685 = vmatprep.subr.mxu0 0.0
    %686 = vmatpush1.msra.mxu0 0.0
    %687 = vmatprep.subr.mxu0 0.0
    %688 = vmatpush1.msra.mxu0 0.0
    %689 = vmatprep.subr.mxu0 0.0
    %690 = vmatpush1.msra.mxu0 0.0
    %691 = vmatprep.subr.mxu0 0.0
    %692 = vmatpush1.msra.mxu0 0.0
    %693 = vmatprep.subr.mxu0 0.0
    %694 = vmatpush1.msra.mxu0 0.0
    %695 = vmatprep.subr.mxu0 0.0
    %696 = vmatpush1.msra.mxu0 0.0
    %697 = vmatprep.mubr.f32.mxu0 0.0
    %698 = vmatmul.mubr.f32.gmra.mrb[0].mxu0 %v624
    %v699 = vpop.f32.mrb[0].mxu0
    %v700 = vadd.f32 %v620, %v699
    %v701 = vpop.f32.mrb[0].mxu0
    %702 = vmatprep.mubr.f32.mxu0 0.0
    %703 = vmatmul.mubr.f32.gmra.mrb[0].mxu0 %v627
    %v704 = vpop.f32.mrb[0].mxu0
    %v705 = vadd.f32 %v620, %v704
    %v706 = vpop.f32.mrb[0].mxu0
    %707 = vdwg.mxu0
    %v708 = vmul.f32 %v700, %v598
    %v709 = vmul.f32 %v705, %v599
    %v710 = vld [vmem:[%s8] sm:$0xff]
    %v711 = vld [vmem:[%s8 + $0x8] sm:$0xff]
    %v712 = vld [vmem:[%s8 + $0x10] sm:$0xff]
    %v713 = vld [vmem:[%s8 + $0x18] sm:$0xff]
    %v714 = vld [vmem:[%s9] sm:$0x1]
    %v716 = vlaneseq
    %v717 = vshrl.u32 %v716, 7
    %v718 = vsub.s32 0, %v717
    %v719 = vrot.slane %v714, %v718
    %vm721 = vcmask 261120
    %v723 = vsel %vm721, %v126, 0
    %725 = vmatprep.subr.mxu0 0.0
    %726 = vmatpush1.msra.mxu0 %v710
    %727 = vmatprep.subr.mxu0 0.0
    %728 = vmatpush1.msra.mxu0 %v711
    %729 = vmatprep.subr.mxu0 0.0
    %730 = vmatpush1.msra.mxu0 %v712
    %731 = vmatprep.subr.mxu0 0.0
    %732 = vmatpush1.msra.mxu0 %v713
    %733 = vmatprep.subr.mxu0 0.0
    %734 = vmatpush1.msra.mxu0 0.0
    %735 = vmatprep.subr.mxu0 0.0
    %736 = vmatpush1.msra.mxu0 0.0
    %737 = vmatprep.subr.mxu0 0.0
    %738 = vmatpush1.msra.mxu0 0.0
    %739 = vmatprep.subr.mxu0 0.0
    %740 = vmatpush1.msra.mxu0 0.0
    %741 = vmatprep.subr.mxu0 0.0
    %742 = vmatpush1.msra.mxu0 0.0
    %743 = vmatprep.subr.mxu0 0.0
    %744 = vmatpush1.msra.mxu0 0.0
    %745 = vmatprep.subr.mxu0 0.0
    %746 = vmatpush1.msra.mxu0 0.0
    %747 = vmatprep.subr.mxu0 0.0
    %748 = vmatpush1.msra.mxu0 0.0
    %749 = vmatprep.subr.mxu0 0.0
    %750 = vmatpush1.msra.mxu0 0.0
    %751 = vmatprep.subr.mxu0 0.0
    %752 = vmatpush1.msra.mxu0 0.0
    %753 = vmatprep.subr.mxu0 0.0
    %754 = vmatpush1.msra.mxu0 0.0
    %755 = vmatprep.subr.mxu0 0.0
    %756 = vmatpush1.msra.mxu0 0.0
    %757 = vmatprep.subr.mxu0 0.0
    %758 = vmatpush1.msra.mxu0 0.0
    %759 = vmatprep.subr.mxu0 0.0
    %760 = vmatpush1.msra.mxu0 0.0
    %761 = vmatprep.subr.mxu0 0.0
    %762 = vmatpush1.msra.mxu0 0.0
    %763 = vmatprep.subr.mxu0 0.0
    %764 = vmatpush1.msra.mxu0 0.0
    %765 = vmatprep.subr.mxu0 0.0
    %766 = vmatpush1.msra.mxu0 0.0
    %767 = vmatprep.subr.mxu0 0.0
    %768 = vmatpush1.msra.mxu0 0.0
    %769 = vmatprep.subr.mxu0 0.0
    %770 = vmatpush1.msra.mxu0 0.0
    %771 = vmatprep.subr.mxu0 0.0
    %772 = vmatpush1.msra.mxu0 0.0
    %773 = vmatprep.subr.mxu0 0.0
    %774 = vmatpush1.msra.mxu0 0.0
    %775 = vmatprep.subr.mxu0 0.0
    %776 = vmatpush1.msra.mxu0 0.0
    %777 = vmatprep.subr.mxu0 0.0
    %778 = vmatpush1.msra.mxu0 0.0
    %779 = vmatprep.subr.mxu0 0.0
    %780 = vmatpush1.msra.mxu0 0.0
    %781 = vmatprep.subr.mxu0 0.0
    %782 = vmatpush1.msra.mxu0 0.0
    %783 = vmatprep.subr.mxu0 0.0
    %784 = vmatpush1.msra.mxu0 0.0
    %785 = vmatprep.subr.mxu0 0.0
    %786 = vmatpush1.msra.mxu0 0.0
    %787 = vmatprep.subr.mxu0 0.0
    %788 = vmatpush1.msra.mxu0 0.0
    %789 = vmatprep.mubr.f32.mxu0 0.0
    %790 = vmatmul.mubr.f32.gmra.mrb[0].mxu0 %v723
    %v791 = vpop.f32.mrb[0].mxu0
    %v792 = vadd.f32 %v719, %v791
    %v793 = vpop.f32.mrb[0].mxu0
    %794 = vdwg.mxu0
    %v795 = vxor.u32 %v792, 2147483648
    %v796 = vmul.f32 %v795, 1.442695
    %v797 = vpow.pop %v796
    %v798 = vadd.f32 %v797, 1.0
    %v799 = vrcp.pop %v798
    %v800 = vmul.f32 1.0, %v799
    %v801 = vmul.f32 %v792, %v800
    %v802 = vld [vmem:[%s10] sm:$0xff]
    %v803 = vld [vmem:[%s10 + $0x8] sm:$0xff]
    %v804 = vld [vmem:[%s10 + $0x10] sm:$0xff]
    %v805 = vld [vmem:[%s10 + $0x18] sm:$0xff]
    %v806 = vld [vmem:[%s11] sm:$0x1]
    %v808 = vlaneseq
    %v809 = vshrl.u32 %v808, 7
    %v810 = vsub.s32 0, %v809
    %v811 = vrot.slane %v806, %v810
    %v814 = vsel %vm721, %v801, 0
    %816 = vmatprep.subr.mxu0 0.0
    %817 = vmatpush1.msra.mxu0 %v802
    %818 = vmatprep.subr.mxu0 0.0
    %819 = vmatpush1.msra.mxu0 %v803
    %820 = vmatprep.subr.mxu0 0.0
    %821 = vmatpush1.msra.mxu0 %v804
    %822 = vmatprep.subr.mxu0 0.0
    %823 = vmatpush1.msra.mxu0 %v805
    %824 = vmatprep.subr.mxu0 0.0
    %825 = vmatpush1.msra.mxu0 0.0
    %826 = vmatprep.subr.mxu0 0.0
    %827 = vmatpush1.msra.mxu0 0.0
    %828 = vmatprep.subr.mxu0 0.0
    %829 = vmatpush1.msra.mxu0 0.0
    %830 = vmatprep.subr.mxu0 0.0
    %831 = vmatpush1.msra.mxu0 0.0
    %832 = vmatprep.subr.mxu0 0.0
    %833 = vmatpush1.msra.mxu0 0.0
    %834 = vmatprep.subr.mxu0 0.0
    %835 = vmatpush1.msra.mxu0 0.0
    %836 = vmatprep.subr.mxu0 0.0
    %837 = vmatpush1.msra.mxu0 0.0
    %838 = vmatprep.subr.mxu0 0.0
    %839 = vmatpush1.msra.mxu0 0.0
    %840 = vmatprep.subr.mxu0 0.0
    %841 = vmatpush1.msra.mxu0 0.0
    %842 = vmatprep.subr.mxu0 0.0
    %843 = vmatpush1.msra.mxu0 0.0
    %844 = vmatprep.subr.mxu0 0.0
    %845 = vmatpush1.msra.mxu0 0.0
    %846 = vmatprep.subr.mxu0 0.0
    %847 = vmatpush1.msra.mxu0 0.0
    %848 = vmatprep.subr.mxu0 0.0
    %849 = vmatpush1.msra.mxu0 0.0
    %850 = vmatprep.subr.mxu0 0.0
    %851 = vmatpush1.msra.mxu0 0.0
    %852 = vmatprep.subr.mxu0 0.0
    %853 = vmatpush1.msra.mxu0 0.0
    %854 = vmatprep.subr.mxu0 0.0
    %855 = vmatpush1.msra.mxu0 0.0
    %856 = vmatprep.subr.mxu0 0.0
    %857 = vmatpush1.msra.mxu0 0.0
    %858 = vmatprep.subr.mxu0 0.0
    %859 = vmatpush1.msra.mxu0 0.0
    %860 = vmatprep.subr.mxu0 0.0
    %861 = vmatpush1.msra.mxu0 0.0
    %862 = vmatprep.subr.mxu0 0.0
    %863 = vmatpush1.msra.mxu0 0.0
    %864 = vmatprep.subr.mxu0 0.0
    %865 = vmatpush1.msra.mxu0 0.0
    %866 = vmatprep.subr.mxu0 0.0
    %867 = vmatpush1.msra.mxu0 0.0
    %868 = vmatprep.subr.mxu0 0.0
    %869 = vmatpush1.msra.mxu0 0.0
    %870 = vmatprep.subr.mxu0 0.0
    %871 = vmatpush1.msra.mxu0 0.0
    %872 = vmatprep.subr.mxu0 0.0
    %873 = vmatpush1.msra.mxu0 0.0
    %874 = vmatprep.subr.mxu0 0.0
    %875 = vmatpush1.msra.mxu0 0.0
    %876 = vmatprep.subr.mxu0 0.0
    %877 = vmatpush1.msra.mxu0 0.0
    %878 = vmatprep.subr.mxu0 0.0
    %879 = vmatpush1.msra.mxu0 0.0
    %880 = vmatprep.mubr.f32.mxu0 0.0
    %881 = vmatmul.mubr.f32.gmra.mrb[0].mxu0 %v814
    %v882 = vpop.f32.mrb[0].mxu0
    %v883 = vadd.f32 %v811, %v882
    %v884 = vpop.f32.mrb[0].mxu0
    %885 = vdwg.mxu0
    %vm886 = vcmask 64512
    %v888 = vsel %vm886, %v114, 0
    %v891 = vsel %vm886, %v115, 0
    %893 = vmatprep.subr.mxu0 0.0
    %894 = vmatpush1.msra.mxu0 %v883
    %895 = vmatprep.subr.mxu0 0.0
    %896 = vmatpush1.msra.mxu0 0.0
    %897 = vmatprep.subr.mxu0 0.0
    %898 = vmatpush1.msra.mxu0 0.0
    %899 = vmatprep.subr.mxu0 0.0
    %900 = vmatpush1.msra.mxu0 0.0
    %901 = vmatprep.subr.mxu0 0.0
    %902 = vmatpush1.msra.mxu0 0.0
    %903 = vmatprep.subr.mxu0 0.0
    %904 = vmatpush1.msra.mxu0 0.0
    %905 = vmatprep.subr.mxu0 0.0
    %906 = vmatpush1.msra.mxu0 0.0
    %907 = vmatprep.subr.mxu0 0.0
    %908 = vmatpush1.msra.mxu0 0.0
    %909 = vmatprep.subr.mxu0 0.0
    %910 = vmatpush1.msra.mxu0 0.0
    %911 = vmatprep.subr.mxu0 0.0
    %912 = vmatpush1.msra.mxu0 0.0
    %913 = vmatprep.subr.mxu0 0.0
    %914 = vmatpush1.msra.mxu0 0.0
    %915 = vmatprep.subr.mxu0 0.0
    %916 = vmatpush1.msra.mxu0 0.0
    %917 = vmatprep.subr.mxu0 0.0
    %918 = vmatpush1.msra.mxu0 0.0
    %919 = vmatprep.subr.mxu0 0.0
    %920 = vmatpush1.msra.mxu0 0.0
    %921 = vmatprep.subr.mxu0 0.0
    %922 = vmatpush1.msra.mxu0 0.0
    %923 = vmatprep.subr.mxu0 0.0
    %924 = vmatpush1.msra.mxu0 0.0
    %925 = vmatprep.subr.mxu0 0.0
    %926 = vmatpush1.msra.mxu0 0.0
    %927 = vmatprep.subr.mxu0 0.0
    %928 = vmatpush1.msra.mxu0 0.0
    %929 = vmatprep.subr.mxu0 0.0
    %930 = vmatpush1.msra.mxu0 0.0
    %931 = vmatprep.subr.mxu0 0.0
    %932 = vmatpush1.msra.mxu0 0.0
    %933 = vmatprep.subr.mxu0 0.0
    %934 = vmatpush1.msra.mxu0 0.0
    %935 = vmatprep.subr.mxu0 0.0
    %936 = vmatpush1.msra.mxu0 0.0
    %937 = vmatprep.subr.mxu0 0.0
    %938 = vmatpush1.msra.mxu0 0.0
    %939 = vmatprep.subr.mxu0 0.0
    %940 = vmatpush1.msra.mxu0 0.0
    %941 = vmatprep.subr.mxu0 0.0
    %942 = vmatpush1.msra.mxu0 0.0
    %943 = vmatprep.subr.mxu0 0.0
    %944 = vmatpush1.msra.mxu0 0.0
    %945 = vmatprep.subr.mxu0 0.0
    %946 = vmatpush1.msra.mxu0 0.0
    %947 = vmatprep.subr.mxu0 0.0
    %948 = vmatpush1.msra.mxu0 0.0
    %949 = vmatprep.subr.mxu0 0.0
    %950 = vmatpush1.msra.mxu0 0.0
    %951 = vmatprep.subr.mxu0 0.0
    %952 = vmatpush1.msra.mxu0 0.0
    %953 = vmatprep.subr.mxu0 0.0
    %954 = vmatpush1.msra.mxu0 0.0
    %955 = vmatprep.subr.mxu0 0.0
    %956 = vmatpush1.msra.mxu0 0.0
    %957 = vmatprep.mubr.f32.mxu0 0.0
    %958 = vmatmul.mubr.f32.gmra.mrb[0].mxu0 %v888
    %v959 = vpop.f32.mrb[0].mxu0
    %v960 = vadd.f32 0.0, %v959
    %v961 = vpop.f32.mrb[0].mxu0
    %962 = vmatprep.mubr.f32.mxu0 0.0
    %963 = vmatmul.mubr.f32.gmra.mrb[0].mxu0 %v891
    %v964 = vpop.f32.mrb[0].mxu0
    %v965 = vadd.f32 0.0, %v964
    %v966 = vpop.f32.mrb[0].mxu0
    %967 = vdwg.mxu0
    %v968 = vmul.f32 %v960, %v708
    %v969 = vmul.f32 %v965, %v709
    %972 = vrot.lane.b32.xlu0 %v968, 96
    %v973 = vpop.permute.xlu0 %972
    %974 = vrot.lane.b32.xlu0 %v969, 96
    %v975 = vpop.permute.xlu0 %974
    %vm978 = vcmask 130048
    %v980 = vsel %vm978, %v116, 0
    %982 = vmatprep.subr.mxu0 0.0
    %983 = vmatpush1.msra.mxu0 %v973
    %984 = vmatprep.subr.mxu0 0.0
    %985 = vmatpush1.msra.mxu0 %v975
    %986 = vmatprep.subr.mxu0 0.0
    %987 = vmatpush1.msra.mxu0 0.0
    %988 = vmatprep.subr.mxu0 0.0
    %989 = vmatpush1.msra.mxu0 0.0
    %990 = vmatprep.subr.mxu0 0.0
    %991 = vmatpush1.msra.mxu0 0.0
    %992 = vmatprep.subr.mxu0 0.0
    %993 = vmatpush1.msra.mxu0 0.0
    %994 = vmatprep.subr.mxu0 0.0
    %995 = vmatpush1.msra.mxu0 0.0
    %996 = vmatprep.subr.mxu0 0.0
    %997 = vmatpush1.msra.mxu0 0.0
    %998 = vmatprep.subr.mxu0 0.0
    %999 = vmatpush1.msra.mxu0 0.0
    %1000 = vmatprep.subr.mxu0 0.0
    %1001 = vmatpush1.msra.mxu0 0.0
    %1002 = vmatprep.subr.mxu0 0.0
    %1003 = vmatpush1.msra.mxu0 0.0
    %1004 = vmatprep.subr.mxu0 0.0
    %1005 = vmatpush1.msra.mxu0 0.0
    %1006 = vmatprep.subr.mxu0 0.0
    %1007 = vmatpush1.msra.mxu0 0.0
    %1008 = vmatprep.subr.mxu0 0.0
    %1009 = vmatpush1.msra.mxu0 0.0
    %1010 = vmatprep.subr.mxu0 0.0
    %1011 = vmatpush1.msra.mxu0 0.0
    %1012 = vmatprep.subr.mxu0 0.0
    %1013 = vmatpush1.msra.mxu0 0.0
    %1014 = vmatprep.subr.mxu0 0.0
    %1015 = vmatpush1.msra.mxu0 0.0
    %1016 = vmatprep.subr.mxu0 0.0
    %1017 = vmatpush1.msra.mxu0 0.0
    %1018 = vmatprep.subr.mxu0 0.0
    %1019 = vmatpush1.msra.mxu0 0.0
    %1020 = vmatprep.subr.mxu0 0.0
    %1021 = vmatpush1.msra.mxu0 0.0
    %1022 = vmatprep.subr.mxu0 0.0
    %1023 = vmatpush1.msra.mxu0 0.0
    %1024 = vmatprep.subr.mxu0 0.0
    %1025 = vmatpush1.msra.mxu0 0.0
    %1026 = vmatprep.subr.mxu0 0.0
    %1027 = vmatpush1.msra.mxu0 0.0
    %1028 = vmatprep.subr.mxu0 0.0
    %1029 = vmatpush1.msra.mxu0 0.0
    %1030 = vmatprep.subr.mxu0 0.0
    %1031 = vmatpush1.msra.mxu0 0.0
    %1032 = vmatprep.subr.mxu0 0.0
    %1033 = vmatpush1.msra.mxu0 0.0
    %1034 = vmatprep.subr.mxu0 0.0
    %1035 = vmatpush1.msra.mxu0 0.0
    %1036 = vmatprep.subr.mxu0 0.0
    %1037 = vmatpush1.msra.mxu0 0.0
    %1038 = vmatprep.subr.mxu0 0.0
    %1039 = vmatpush1.msra.mxu0 0.0
    %1040 = vmatprep.subr.mxu0 0.0
    %1041 = vmatpush1.msra.mxu0 0.0
    %1042 = vmatprep.subr.mxu0 0.0
    %1043 = vmatpush1.msra.mxu0 0.0
    %1044 = vmatprep.subr.mxu0 0.0
    %1045 = vmatpush1.msra.mxu0 0.0
    %1046 = vmatprep.mubr.f32.mxu0 0.0
    %1047 = vmatmul.mubr.f32.gmra.mrb[0].mxu0 %v980
    %v1048 = vpop.f32.mrb[0].mxu0
    %v1049 = vadd.f32 0.0, %v1048
    %v1050 = vpop.f32.mrb[0].mxu0
    %1051 = vdwg.mxu0
    %v1052 = vadd.f32 %v126, %v1049
    %vm1053 = vcmask 195584
    %v1055 = vsel %vm1053, %v117, 0
    %v1058 = vsel %vm1053, %v118, 0
    %v1061 = vsel %vm1053, %v119, 0
    %v1064 = vsel %vm1053, %v120, 0
    %v1067 = vsel %vm1053, %v121, 0
    %v1070 = vsel %vm1053, %v122, 0
    %1072 = vmatprep.subr.mxu0 0.0
    %1073 = vmatpush1.msra.mxu0 %v127
    %1074 = vmatprep.subr.mxu0 0.0
    %1075 = vmatpush1.msra.mxu0 %v128
    %1076 = vmatprep.subr.mxu0 0.0
    %1077 = vmatpush1.msra.mxu0 %v129
    %1078 = vmatprep.subr.mxu0 0.0
    %1079 = vmatpush1.msra.mxu0 0.0
    %1080 = vmatprep.subr.mxu0 0.0
    %1081 = vmatpush1.msra.mxu0 0.0
    %1082 = vmatprep.subr.mxu0 0.0
    %1083 = vmatpush1.msra.mxu0 0.0
    %1084 = vmatprep.subr.mxu0 0.0
    %1085 = vmatpush1.msra.mxu0 0.0
    %1086 = vmatprep.subr.mxu0 0.0
    %1087 = vmatpush1.msra.mxu0 0.0
    %1088 = vmatprep.subr.mxu0 0.0
    %1089 = vmatpush1.msra.mxu0 0.0
    %1090 = vmatprep.subr.mxu0 0.0
    %1091 = vmatpush1.msra.mxu0 0.0
    %1092 = vmatprep.subr.mxu0 0.0
    %1093 = vmatpush1.msra.mxu0 0.0
    %1094 = vmatprep.subr.mxu0 0.0
    %1095 = vmatpush1.msra.mxu0 0.0
    %1096 = vmatprep.subr.mxu0 0.0
    %1097 = vmatpush1.msra.mxu0 0.0
    %1098 = vmatprep.subr.mxu0 0.0
    %1099 = vmatpush1.msra.mxu0 0.0
    %1100 = vmatprep.subr.mxu0 0.0
    %1101 = vmatpush1.msra.mxu0 0.0
    %1102 = vmatprep.subr.mxu0 0.0
    %1103 = vmatpush1.msra.mxu0 0.0
    %1104 = vmatprep.subr.mxu0 0.0
    %1105 = vmatpush1.msra.mxu0 0.0
    %1106 = vmatprep.subr.mxu0 0.0
    %1107 = vmatpush1.msra.mxu0 0.0
    %1108 = vmatprep.subr.mxu0 0.0
    %1109 = vmatpush1.msra.mxu0 0.0
    %1110 = vmatprep.subr.mxu0 0.0
    %1111 = vmatpush1.msra.mxu0 0.0
    %1112 = vmatprep.subr.mxu0 0.0
    %1113 = vmatpush1.msra.mxu0 0.0
    %1114 = vmatprep.subr.mxu0 0.0
    %1115 = vmatpush1.msra.mxu0 0.0
    %1116 = vmatprep.subr.mxu0 0.0
    %1117 = vmatpush1.msra.mxu0 0.0
    %1118 = vmatprep.subr.mxu0 0.0
    %1119 = vmatpush1.msra.mxu0 0.0
    %1120 = vmatprep.subr.mxu0 0.0
    %1121 = vmatpush1.msra.mxu0 0.0
    %1122 = vmatprep.subr.mxu0 0.0
    %1123 = vmatpush1.msra.mxu0 0.0
    %1124 = vmatprep.subr.mxu0 0.0
    %1125 = vmatpush1.msra.mxu0 0.0
    %1126 = vmatprep.subr.mxu0 0.0
    %1127 = vmatpush1.msra.mxu0 0.0
    %1128 = vmatprep.subr.mxu0 0.0
    %1129 = vmatpush1.msra.mxu0 0.0
    %1130 = vmatprep.subr.mxu0 0.0
    %1131 = vmatpush1.msra.mxu0 0.0
    %1132 = vmatprep.subr.mxu0 0.0
    %1133 = vmatpush1.msra.mxu0 0.0
    %1134 = vmatprep.subr.mxu0 0.0
    %1135 = vmatpush1.msra.mxu0 0.0
    %1136 = vmatprep.mubr.f32.mxu0 0.0
    %1137 = vmatmul.mubr.f32.gmra.mrb[0].mxu0 %v1055
    %v1138 = vpop.f32.mrb[0].mxu0
    %v1139 = vadd.f32 0.0, %v1138
    %v1140 = vpop.f32.mrb[0].mxu0
    %1141 = vmatprep.mubr.f32.mxu0 0.0
    %1142 = vmatmul.mubr.f32.gmra.mrb[0].mxu0 %v1058
    %v1143 = vpop.f32.mrb[0].mxu0
    %v1144 = vadd.f32 0.0, %v1143
    %v1145 = vpop.f32.mrb[0].mxu0
    %1146 = vmatprep.mubr.f32.mxu0 0.0
    %1147 = vmatmul.mubr.f32.gmra.mrb[0].mxu0 %v1061
    %v1148 = vpop.f32.mrb[0].mxu0
    %v1149 = vadd.f32 0.0, %v1148
    %v1150 = vpop.f32.mrb[0].mxu0
    %1151 = vmatprep.mubr.f32.mxu0 0.0
    %1152 = vmatmul.mubr.f32.gmra.mrb[0].mxu0 %v1064
    %v1153 = vpop.f32.mrb[0].mxu0
    %v1154 = vadd.f32 0.0, %v1153
    %v1155 = vpop.f32.mrb[0].mxu0
    %1156 = vmatprep.mubr.f32.mxu0 0.0
    %1157 = vmatmul.mubr.f32.gmra.mrb[0].mxu0 %v1067
    %v1158 = vpop.f32.mrb[0].mxu0
    %v1159 = vadd.f32 0.0, %v1158
    %v1160 = vpop.f32.mrb[0].mxu0
    %1161 = vmatprep.mubr.f32.mxu0 0.0
    %1162 = vmatmul.mubr.f32.gmra.mrb[0].mxu0 %v1070
    %v1163 = vpop.f32.mrb[0].mxu0
    %v1164 = vadd.f32 0.0, %v1163
    %v1165 = vpop.f32.mrb[0].mxu0
    %1166 = vdwg.mxu0
    %v1167 = vmul.f32 %v968, %v1139
    %v1168 = vmul.f32 %v969, %v1144
    %v1169 = vmul.f32 %v968, %v1149
    %v1170 = vmul.f32 %v969, %v1154
    %v1171 = vmul.f32 %v968, %v1159
    %v1172 = vmul.f32 %v969, %v1164
    %1173 = vset.pattern.permute.xlu0 0
    %1174 = vperm.xlu0 %1173, %v600
    %v1175 = vpop.permute.xlu0 %1174
    %1177 = vset.pattern.permute.xlu0 0
    %1178 = vperm.xlu0 %1177, %v601
    %v1179 = vpop.permute.xlu0 %1178
    %1181 = vset.pattern.permute.xlu0 0
    %1182 = vperm.xlu0 %1181, %v605
    %v1183 = vpop.permute.xlu0 %1182
    %1185 = vset.pattern.permute.xlu0 0
    %1186 = vperm.xlu0 %1185, %v607
    %v1187 = vpop.permute.xlu0 %1186
    %1189 = vset.pattern.permute.xlu0 0
    %1190 = vperm.xlu0 %1189, %v609
    %v1191 = vpop.permute.xlu0 %1190
    %1193 = vset.pattern.permute.xlu0 0
    %1194 = vperm.xlu0 %1193, %v611
    %v1195 = vpop.permute.xlu0 %1194
    %v1197 = vmul.f32 %v968, %v1175
    %v1198 = vmul.f32 %v969, %v1179
    %v1199 = vmul.f32 %v968, %v1183
    %v1200 = vmul.f32 %v969, %v1187
    %v1201 = vmul.f32 %v968, %v1191
    %v1202 = vmul.f32 %v969, %v1195
    %1209 = vrot.lane.b32.xlu0 %v1197, 64
    %v1210 = vpop.permute.xlu0 %1209
    %1211 = vrot.lane.b32.xlu0 %v1198, 64
    %v1212 = vpop.permute.xlu0 %1211
    %1213 = vrot.lane.b32.xlu0 %v1199, 64
    %v1214 = vpop.permute.xlu0 %1213
    %1215 = vrot.lane.b32.xlu0 %v1200, 64
    %v1216 = vpop.permute.xlu0 %1215
    %1217 = vrot.lane.b32.xlu0 %v1201, 64
    %v1218 = vpop.permute.xlu0 %1217
    %1219 = vrot.lane.b32.xlu0 %v1202, 64
    %v1220 = vpop.permute.xlu0 %1219
    %v1227 = vadd.f32 %v1167, %v1210
    %v1228 = vadd.f32 %v1168, %v1212
    %v1229 = vadd.f32 %v1169, %v1214
    %v1230 = vadd.f32 %v1170, %v1216
    %v1231 = vadd.f32 %v1171, %v1218
    %v1232 = vadd.f32 %v1172, %v1220
    %vm1233 = vcmask 392192
    %v1235 = vsel %vm1233, %v123, 0
    %v1238 = vsel %vm1233, %v124, 0
    %v1241 = vsel %vm1233, %v125, 0
    %1243 = vmatprep.subr.mxu0 0.0
    %1244 = vmatpush1.msra.mxu0 %v1227
    %1245 = vmatprep.subr.mxu0 0.0
    %1246 = vmatpush1.msra.mxu0 %v1228
    %1247 = vmatprep.subr.mxu0 0.0
    %1248 = vmatpush1.msra.mxu0 %v1229
    %1249 = vmatprep.subr.mxu0 0.0
    %1250 = vmatpush1.msra.mxu0 %v1230
    %1251 = vmatprep.subr.mxu0 0.0
    %1252 = vmatpush1.msra.mxu0 %v1231
    %1253 = vmatprep.subr.mxu0 0.0
    %1254 = vmatpush1.msra.mxu0 %v1232
    %1255 = vmatprep.subr.mxu0 0.0
    %1256 = vmatpush1.msra.mxu0 0.0
    %1257 = vmatprep.subr.mxu0 0.0
    %1258 = vmatpush1.msra.mxu0 0.0
    %1259 = vmatprep.subr.mxu0 0.0
    %1260 = vmatpush1.msra.mxu0 0.0
    %1261 = vmatprep.subr.mxu0 0.0
    %1262 = vmatpush1.msra.mxu0 0.0
    %1263 = vmatprep.subr.mxu0 0.0
    %1264 = vmatpush1.msra.mxu0 0.0
    %1265 = vmatprep.subr.mxu0 0.0
    %1266 = vmatpush1.msra.mxu0 0.0
    %1267 = vmatprep.subr.mxu0 0.0
    %1268 = vmatpush1.msra.mxu0 0.0
    %1269 = vmatprep.subr.mxu0 0.0
    %1270 = vmatpush1.msra.mxu0 0.0
    %1271 = vmatprep.subr.mxu0 0.0
    %1272 = vmatpush1.msra.mxu0 0.0
    %1273 = vmatprep.subr.mxu0 0.0
    %1274 = vmatpush1.msra.mxu0 0.0
    %1275 = vmatprep.subr.mxu0 0.0
    %1276 = vmatpush1.msra.mxu0 0.0
    %1277 = vmatprep.subr.mxu0 0.0
    %1278 = vmatpush1.msra.mxu0 0.0
    %1279 = vmatprep.subr.mxu0 0.0
    %1280 = vmatpush1.msra.mxu0 0.0
    %1281 = vmatprep.subr.mxu0 0.0
    %1282 = vmatpush1.msra.mxu0 0.0
    %1283 = vmatprep.subr.mxu0 0.0
    %1284 = vmatpush1.msra.mxu0 0.0
    %1285 = vmatprep.subr.mxu0 0.0
    %1286 = vmatpush1.msra.mxu0 0.0
    %1287 = vmatprep.subr.mxu0 0.0
    %1288 = vmatpush1.msra.mxu0 0.0
    %1289 = vmatprep.subr.mxu0 0.0
    %1290 = vmatpush1.msra.mxu0 0.0
    %1291 = vmatprep.subr.mxu0 0.0
    %1292 = vmatpush1.msra.mxu0 0.0
    %1293 = vmatprep.subr.mxu0 0.0
    %1294 = vmatpush1.msra.mxu0 0.0
    %1295 = vmatprep.subr.mxu0 0.0
    %1296 = vmatpush1.msra.mxu0 0.0
    %1297 = vmatprep.subr.mxu0 0.0
    %1298 = vmatpush1.msra.mxu0 0.0
    %1299 = vmatprep.subr.mxu0 0.0
    %1300 = vmatpush1.msra.mxu0 0.0
    %1301 = vmatprep.subr.mxu0 0.0
    %1302 = vmatpush1.msra.mxu0 0.0
    %1303 = vmatprep.subr.mxu0 0.0
    %1304 = vmatpush1.msra.mxu0 0.0
    %1305 = vmatprep.subr.mxu0 0.0
    %1306 = vmatpush1.msra.mxu0 0.0
    %1307 = vmatprep.mubr.f32.mxu0 0.0
    %1308 = vmatmul.mubr.f32.gmra.mrb[0].mxu0 %v1235
    %v1309 = vpop.f32.mrb[0].mxu0
    %v1310 = vadd.f32 0.0, %v1309
    %v1311 = vpop.f32.mrb[0].mxu0
    %1312 = vmatprep.mubr.f32.mxu0 0.0
    %1313 = vmatmul.mubr.f32.gmra.mrb[0].mxu0 %v1238
    %v1314 = vpop.f32.mrb[0].mxu0
    %v1315 = vadd.f32 0.0, %v1314
    %v1316 = vpop.f32.mrb[0].mxu0
    %1317 = vmatprep.mubr.f32.mxu0 0.0
    %1318 = vmatmul.mubr.f32.gmra.mrb[0].mxu0 %v1241
    %v1319 = vpop.f32.mrb[0].mxu0
    %v1320 = vadd.f32 0.0, %v1319
    %v1321 = vpop.f32.mrb[0].mxu0
    %1322 = vdwg.mxu0
    %v1323 = vadd.f32 %v127, %v1310
    %v1324 = vadd.f32 %v128, %v1315
    %v1325 = vadd.f32 %v129, %v1320
    %v1326 = vld [vmem:[%s14] sm:$0xff]
    %v1327 = vld [vmem:[%s14 + $0x8] sm:$0xff]
    %v1328 = vld [vmem:[%s14 + $0x10] sm:$0xff]
    %v1329 = vld [vmem:[%s14 + $0x18] sm:$0xff]
    %v1331 = vsel %vm721, %v1323, 0
    %v1334 = vsel %vm721, %v1324, 0
    %v1337 = vsel %vm721, %v1325, 0
    %1339 = vmatprep.subr.mxu0 0.0
    %1340 = vmatpush1.msra.mxu0 %v1326
    %1341 = vmatprep.subr.mxu0 0.0
    %1342 = vmatpush1.msra.mxu0 %v1327
    %1343 = vmatprep.subr.mxu0 0.0
    %1344 = vmatpush1.msra.mxu0 %v1328
    %1345 = vmatprep.subr.mxu0 0.0
    %1346 = vmatpush1.msra.mxu0 %v1329
    %1347 = vmatprep.subr.mxu0 0.0
    %1348 = vmatpush1.msra.mxu0 0.0
    %1349 = vmatprep.subr.mxu0 0.0
    %1350 = vmatpush1.msra.mxu0 0.0
    %1351 = vmatprep.subr.mxu0 0.0
    %1352 = vmatpush1.msra.mxu0 0.0
    %1353 = vmatprep.subr.mxu0 0.0
    %1354 = vmatpush1.msra.mxu0 0.0
    %1355 = vmatprep.subr.mxu0 0.0
    %1356 = vmatpush1.msra.mxu0 0.0
    %1357 = vmatprep.subr.mxu0 0.0
    %1358 = vmatpush1.msra.mxu0 0.0
    %1359 = vmatprep.subr.mxu0 0.0
    %1360 = vmatpush1.msra.mxu0 0.0
    %1361 = vmatprep.subr.mxu0 0.0
    %1362 = vmatpush1.msra.mxu0 0.0
    %1363 = vmatprep.subr.mxu0 0.0
    %1364 = vmatpush1.msra.mxu0 0.0
    %1365 = vmatprep.subr.mxu0 0.0
    %1366 = vmatpush1.msra.mxu0 0.0
    %1367 = vmatprep.subr.mxu0 0.0
    %1368 = vmatpush1.msra.mxu0 0.0
    %1369 = vmatprep.subr.mxu0 0.0
    %1370 = vmatpush1.msra.mxu0 0.0
    %1371 = vmatprep.subr.mxu0 0.0
    %1372 = vmatpush1.msra.mxu0 0.0
    %1373 = vmatprep.subr.mxu0 0.0
    %1374 = vmatpush1.msra.mxu0 0.0
    %1375 = vmatprep.subr.mxu0 0.0
    %1376 = vmatpush1.msra.mxu0 0.0
    %1377 = vmatprep.subr.mxu0 0.0
    %1378 = vmatpush1.msra.mxu0 0.0
    %1379 = vmatprep.subr.mxu0 0.0
    %1380 = vmatpush1.msra.mxu0 0.0
    %1381 = vmatprep.subr.mxu0 0.0
    %1382 = vmatpush1.msra.mxu0 0.0
    %1383 = vmatprep.subr.mxu0 0.0
    %1384 = vmatpush1.msra.mxu0 0.0
    %1385 = vmatprep.subr.mxu0 0.0
    %1386 = vmatpush1.msra.mxu0 0.0
    %1387 = vmatprep.subr.mxu0 0.0
    %1388 = vmatpush1.msra.mxu0 0.0
    %1389 = vmatprep.subr.mxu0 0.0
    %1390 = vmatpush1.msra.mxu0 0.0
    %1391 = vmatprep.subr.mxu0 0.0
    %1392 = vmatpush1.msra.mxu0 0.0
    %1393 = vmatprep.subr.mxu0 0.0
    %1394 = vmatpush1.msra.mxu0 0.0
    %1395 = vmatprep.subr.mxu0 0.0
    %1396 = vmatpush1.msra.mxu0 0.0
    %1397 = vmatprep.subr.mxu0 0.0
    %1398 = vmatpush1.msra.mxu0 0.0
    %1399 = vmatprep.subr.mxu0 0.0
    %1400 = vmatpush1.msra.mxu0 0.0
    %1401 = vmatprep.subr.mxu0 0.0
    %1402 = vmatpush1.msra.mxu0 0.0
    %1403 = vmatprep.mubr.f32.mxu0 0.0
    %1404 = vmatmul.mubr.f32.gmra.mrb[0].mxu0 %v1331
    %v1405 = vpop.f32.mrb[0].mxu0
    %v1406 = vadd.f32 0.0, %v1405
    %v1407 = vpop.f32.mrb[0].mxu0
    %1408 = vmatprep.mubr.f32.mxu0 0.0
    %1409 = vmatmul.mubr.f32.gmra.mrb[0].mxu0 %v1334
    %v1410 = vpop.f32.mrb[0].mxu0
    %v1411 = vadd.f32 0.0, %v1410
    %v1412 = vpop.f32.mrb[0].mxu0
    %1413 = vmatprep.mubr.f32.mxu0 0.0
    %1414 = vmatmul.mubr.f32.gmra.mrb[0].mxu0 %v1337
    %v1415 = vpop.f32.mrb[0].mxu0
    %v1416 = vadd.f32 0.0, %v1415
    %v1417 = vpop.f32.mrb[0].mxu0
    %1418 = vdwg.mxu0
    %v1419 = vld [vmem:[%s15] sm:$0xff]
    %v1420 = vld [vmem:[%s15 + $0x8] sm:$0xff]
    %v1421 = vld [vmem:[%s15 + $0x10] sm:$0xff]
    %v1422 = vld [vmem:[%s15 + $0x18] sm:$0xff]
    %1423 = vmatprep.subr.mxu0 0.0
    %1424 = vmatpush1.msra.mxu0 %v1419
    %1425 = vmatprep.subr.mxu0 0.0
    %1426 = vmatpush1.msra.mxu0 %v1420
    %1427 = vmatprep.subr.mxu0 0.0
    %1428 = vmatpush1.msra.mxu0 %v1421
    %1429 = vmatprep.subr.mxu0 0.0
    %1430 = vmatpush1.msra.mxu0 %v1422
    %1431 = vmatprep.subr.mxu0 0.0
    %1432 = vmatpush1.msra.mxu0 0.0
    %1433 = vmatprep.subr.mxu0 0.0
    %1434 = vmatpush1.msra.mxu0 0.0
    %1435 = vmatprep.subr.mxu0 0.0
    %1436 = vmatpush1.msra.mxu0 0.0
    %1437 = vmatprep.subr.mxu0 0.0
    %1438 = vmatpush1.msra.mxu0 0.0
    %1439 = vmatprep.subr.mxu0 0.0
    %1440 = vmatpush1.msra.mxu0 0.0
    %1441 = vmatprep.subr.mxu0 0.0
    %1442 = vmatpush1.msra.mxu0 0.0
    %1443 = vmatprep.subr.mxu0 0.0
    %1444 = vmatpush1.msra.mxu0 0.0
    %1445 = vmatprep.subr.mxu0 0.0
    %1446 = vmatpush1.msra.mxu0 0.0
    %1447 = vmatprep.subr.mxu0 0.0
    %1448 = vmatpush1.msra.mxu0 0.0
    %1449 = vmatprep.subr.mxu0 0.0
    %1450 = vmatpush1.msra.mxu0 0.0
    %1451 = vmatprep.subr.mxu0 0.0
    %1452 = vmatpush1.msra.mxu0 0.0
    %1453 = vmatprep.subr.mxu0 0.0
    %1454 = vmatpush1.msra.mxu0 0.0
    %1455 = vmatprep.subr.mxu0 0.0
    %1456 = vmatpush1.msra.mxu0 0.0
    %1457 = vmatprep.subr.mxu0 0.0
    %1458 = vmatpush1.msra.mxu0 0.0
    %1459 = vmatprep.subr.mxu0 0.0
    %1460 = vmatpush1.msra.mxu0 0.0
    %1461 = vmatprep.subr.mxu0 0.0
    %1462 = vmatpush1.msra.mxu0 0.0
    %1463 = vmatprep.subr.mxu0 0.0
    %1464 = vmatpush1.msra.mxu0 0.0
    %1465 = vmatprep.subr.mxu0 0.0
    %1466 = vmatpush1.msra.mxu0 0.0
    %1467 = vmatprep.subr.mxu0 0.0
    %1468 = vmatpush1.msra.mxu0 0.0
    %1469 = vmatprep.subr.mxu0 0.0
    %1470 = vmatpush1.msra.mxu0 0.0
    %1471 = vmatprep.subr.mxu0 0.0
    %1472 = vmatpush1.msra.mxu0 0.0
    %1473 = vmatprep.subr.mxu0 0.0
    %1474 = vmatpush1.msra.mxu0 0.0
    %1475 = vmatprep.subr.mxu0 0.0
    %1476 = vmatpush1.msra.mxu0 0.0
    %1477 = vmatprep.subr.mxu0 0.0
    %1478 = vmatpush1.msra.mxu0 0.0
    %1479 = vmatprep.subr.mxu0 0.0
    %1480 = vmatpush1.msra.mxu0 0.0
    %1481 = vmatprep.subr.mxu0 0.0
    %1482 = vmatpush1.msra.mxu0 0.0
    %1483 = vmatprep.subr.mxu0 0.0
    %1484 = vmatpush1.msra.mxu0 0.0
    %1485 = vmatprep.subr.mxu0 0.0
    %1486 = vmatpush1.msra.mxu0 0.0
    %1487 = vmatprep.mubr.f32.mxu0 0.0
    %1488 = vmatmul.mubr.f32.gmra.mrb[0].mxu0 %v1331
    %v1489 = vpop.f32.mrb[0].mxu0
    %v1490 = vadd.f32 0.0, %v1489
    %v1491 = vpop.f32.mrb[0].mxu0
    %1492 = vmatprep.mubr.f32.mxu0 0.0
    %1493 = vmatmul.mubr.f32.gmra.mrb[0].mxu0 %v1334
    %v1494 = vpop.f32.mrb[0].mxu0
    %v1495 = vadd.f32 0.0, %v1494
    %v1496 = vpop.f32.mrb[0].mxu0
    %1497 = vmatprep.mubr.f32.mxu0 0.0
    %1498 = vmatmul.mubr.f32.gmra.mrb[0].mxu0 %v1337
    %v1499 = vpop.f32.mrb[0].mxu0
    %v1500 = vadd.f32 0.0, %v1499
    %v1501 = vpop.f32.mrb[0].mxu0
    %1502 = vdwg.mxu0
    %v1503 = vmul.f32 %v1406, %v1490
    %v1504 = vmul.f32 %v1411, %v1495
    %v1505 = vadd.f32 %v1503, %v1504
    %v1506 = vmul.f32 %v1416, %v1500
    %v1507 = vadd.f32 %v1505, %v1506
    %v1508 = vmul.f32 %v1490, %v1490
    %v1509 = vmul.f32 %v1495, %v1495
    %v1510 = vadd.f32 %v1508, %v1509
    %v1511 = vmul.f32 %v1500, %v1500
    %v1512 = vadd.f32 %v1510, %v1511
    %v1513 = vrsqrt.pop %v1512
    %v1514 = vmul.f32 %v1512, %v1513
    %vm1515 = vcmp.eq.f32.partialorder %v1512, inf
    %v1516 = vsel %vm1515, %v1512, %v1514
    %vm1517 = vcmp.eq.f32.partialorder %v1512, 0.0
    %v1518 = vand.u32 %v1512, 2147483648
    %v1519 = vsel %vm1517, %v1518, %v1516
    %v1520 = vld [vmem:[%s16] sm:$0xff]
    %v1521 = vld [vmem:[%s16 + $0x8] sm:$0xff]
    %v1522 = vld [vmem:[%s16 + $0x10] sm:$0xff]
    %v1523 = vld [vmem:[%s16 + $0x18] sm:$0xff]
    %v1524 = vld [vmem:[%s17] sm:$0xff]
    %v1525 = vld [vmem:[%s17 + $0x8] sm:$0xff]
    %v1526 = vld [vmem:[%s17 + $0x10] sm:$0xff]
    %v1527 = vld [vmem:[%s17 + $0x18] sm:$0xff]
    %v1529 = vsel %vm721, %v1519, 0
    %1531 = vmatprep.subr.mxu0 0.0
    %1532 = vmatpush1.msra.mxu0 %v1524
    %1533 = vmatprep.subr.mxu0 0.0
    %1534 = vmatpush1.msra.mxu0 %v1525
    %1535 = vmatprep.subr.mxu0 0.0
    %1536 = vmatpush1.msra.mxu0 %v1526
    %1537 = vmatprep.subr.mxu0 0.0
    %1538 = vmatpush1.msra.mxu0 %v1527
    %1539 = vmatprep.subr.mxu0 0.0
    %1540 = vmatpush1.msra.mxu0 0.0
    %1541 = vmatprep.subr.mxu0 0.0
    %1542 = vmatpush1.msra.mxu0 0.0
    %1543 = vmatprep.subr.mxu0 0.0
    %1544 = vmatpush1.msra.mxu0 0.0
    %1545 = vmatprep.subr.mxu0 0.0
    %1546 = vmatpush1.msra.mxu0 0.0
    %1547 = vmatprep.subr.mxu0 0.0
    %1548 = vmatpush1.msra.mxu0 0.0
    %1549 = vmatprep.subr.mxu0 0.0
    %1550 = vmatpush1.msra.mxu0 0.0
    %1551 = vmatprep.subr.mxu0 0.0
    %1552 = vmatpush1.msra.mxu0 0.0
    %1553 = vmatprep.subr.mxu0 0.0
    %1554 = vmatpush1.msra.mxu0 0.0
    %1555 = vmatprep.subr.mxu0 0.0
    %1556 = vmatpush1.msra.mxu0 0.0
    %1557 = vmatprep.subr.mxu0 0.0
    %1558 = vmatpush1.msra.mxu0 0.0
    %1559 = vmatprep.subr.mxu0 0.0
    %1560 = vmatpush1.msra.mxu0 0.0
    %1561 = vmatprep.subr.mxu0 0.0
    %1562 = vmatpush1.msra.mxu0 0.0
    %1563 = vmatprep.subr.mxu0 0.0
    %1564 = vmatpush1.msra.mxu0 0.0
    %1565 = vmatprep.subr.mxu0 0.0
    %1566 = vmatpush1.msra.mxu0 0.0
    %1567 = vmatprep.subr.mxu0 0.0
    %1568 = vmatpush1.msra.mxu0 0.0
    %1569 = vmatprep.subr.mxu0 0.0
    %1570 = vmatpush1.msra.mxu0 0.0
    %1571 = vmatprep.subr.mxu0 0.0
    %1572 = vmatpush1.msra.mxu0 0.0
    %1573 = vmatprep.subr.mxu0 0.0
    %1574 = vmatpush1.msra.mxu0 0.0
    %1575 = vmatprep.subr.mxu0 0.0
    %1576 = vmatpush1.msra.mxu0 0.0
    %1577 = vmatprep.subr.mxu0 0.0
    %1578 = vmatpush1.msra.mxu0 0.0
    %1579 = vmatprep.subr.mxu0 0.0
    %1580 = vmatpush1.msra.mxu0 0.0
    %1581 = vmatprep.subr.mxu0 0.0
    %1582 = vmatpush1.msra.mxu0 0.0
    %1583 = vmatprep.subr.mxu0 0.0
    %1584 = vmatpush1.msra.mxu0 0.0
    %1585 = vmatprep.subr.mxu0 0.0
    %1586 = vmatpush1.msra.mxu0 0.0
    %1587 = vmatprep.subr.mxu0 0.0
    %1588 = vmatpush1.msra.mxu0 0.0
    %1589 = vmatprep.subr.mxu0 0.0
    %1590 = vmatpush1.msra.mxu0 0.0
    %1591 = vmatprep.subr.mxu0 0.0
    %1592 = vmatpush1.msra.mxu0 0.0
    %1593 = vmatprep.subr.mxu0 0.0
    %1594 = vmatpush1.msra.mxu0 0.0
    %1595 = vmatprep.mubr.f32.mxu0 0.0
    %1596 = vmatmul.mubr.f32.gmra.mrb[0].mxu0 %v1529
    %v1597 = vpop.f32.mrb[0].mxu0
    %v1598 = vadd.f32 0.0, %v1597
    %v1599 = vpop.f32.mrb[0].mxu0
    %1600 = vdwg.mxu0
    %v1602 = vsel %vm721, %v1052, 0
    %1604 = vmatprep.subr.mxu0 0.0
    %1605 = vmatpush1.msra.mxu0 %v1520
    %1606 = vmatprep.subr.mxu0 0.0
    %1607 = vmatpush1.msra.mxu0 %v1521
    %1608 = vmatprep.subr.mxu0 0.0
    %1609 = vmatpush1.msra.mxu0 %v1522
    %1610 = vmatprep.subr.mxu0 0.0
    %1611 = vmatpush1.msra.mxu0 %v1523
    %1612 = vmatprep.subr.mxu0 0.0
    %1613 = vmatpush1.msra.mxu0 0.0
    %1614 = vmatprep.subr.mxu0 0.0
    %1615 = vmatpush1.msra.mxu0 0.0
    %1616 = vmatprep.subr.mxu0 0.0
    %1617 = vmatpush1.msra.mxu0 0.0
    %1618 = vmatprep.subr.mxu0 0.0
    %1619 = vmatpush1.msra.mxu0 0.0
    %1620 = vmatprep.subr.mxu0 0.0
    %1621 = vmatpush1.msra.mxu0 0.0
    %1622 = vmatprep.subr.mxu0 0.0
    %1623 = vmatpush1.msra.mxu0 0.0
    %1624 = vmatprep.subr.mxu0 0.0
    %1625 = vmatpush1.msra.mxu0 0.0
    %1626 = vmatprep.subr.mxu0 0.0
    %1627 = vmatpush1.msra.mxu0 0.0
    %1628 = vmatprep.subr.mxu0 0.0
    %1629 = vmatpush1.msra.mxu0 0.0
    %1630 = vmatprep.subr.mxu0 0.0
    %1631 = vmatpush1.msra.mxu0 0.0
    %1632 = vmatprep.subr.mxu0 0.0
    %1633 = vmatpush1.msra.mxu0 0.0
    %1634 = vmatprep.subr.mxu0 0.0
    %1635 = vmatpush1.msra.mxu0 0.0
    %1636 = vmatprep.subr.mxu0 0.0
    %1637 = vmatpush1.msra.mxu0 0.0
    %1638 = vmatprep.subr.mxu0 0.0
    %1639 = vmatpush1.msra.mxu0 0.0
    %1640 = vmatprep.subr.mxu0 0.0
    %1641 = vmatpush1.msra.mxu0 0.0
    %1642 = vmatprep.subr.mxu0 0.0
    %1643 = vmatpush1.msra.mxu0 0.0
    %1644 = vmatprep.subr.mxu0 0.0
    %1645 = vmatpush1.msra.mxu0 0.0
    %1646 = vmatprep.subr.mxu0 0.0
    %1647 = vmatpush1.msra.mxu0 0.0
    %1648 = vmatprep.subr.mxu0 0.0
    %1649 = vmatpush1.msra.mxu0 0.0
    %1650 = vmatprep.subr.mxu0 0.0
    %1651 = vmatpush1.msra.mxu0 0.0
    %1652 = vmatprep.subr.mxu0 0.0
    %1653 = vmatpush1.msra.mxu0 0.0
    %1654 = vmatprep.subr.mxu0 0.0
    %1655 = vmatpush1.msra.mxu0 0.0
    %1656 = vmatprep.subr.mxu0 0.0
    %1657 = vmatpush1.msra.mxu0 0.0
    %1658 = vmatprep.subr.mxu0 0.0
    %1659 = vmatpush1.msra.mxu0 0.0
    %1660 = vmatprep.subr.mxu0 0.0
    %1661 = vmatpush1.msra.mxu0 0.0
    %1662 = vmatprep.subr.mxu0 0.0
    %1663 = vmatpush1.msra.mxu0 0.0
    %1664 = vmatprep.subr.mxu0 0.0
    %1665 = vmatpush1.msra.mxu0 0.0
    %1666 = vmatprep.subr.mxu0 0.0
    %1667 = vmatpush1.msra.mxu0 0.0
    %1668 = vmatprep.mubr.f32.mxu0 0.0
    %1669 = vmatmul.mubr.f32.gmra.mrb[0].mxu0 %v1602
    %v1670 = vpop.f32.mrb[0].mxu0
    %v1671 = vadd.f32 %v1598, %v1670
    %v1672 = vpop.f32.mrb[0].mxu0
    %1673 = vdwg.mxu0
    %v1674 = vld [vmem:[%s18] sm:$0x1]
    %v1676 = vlaneseq
    %v1677 = vshrl.u32 %v1676, 7
    %v1678 = vsub.s32 0, %v1677
    %v1679 = vrot.slane %v1674, %v1678
    %v1681 = vadd.f32 %v1671, %v1679
    %v1682 = vxor.u32 %v1681, 2147483648
    %v1683 = vmul.f32 %v1682, 1.442695
    %v1684 = vpow.pop %v1683
    %v1685 = vadd.f32 %v1684, 1.0
    %v1686 = vrcp.pop %v1685
    %v1687 = vmul.f32 1.0, %v1686
    %v1688 = vmul.f32 %v1681, %v1687
    %v1689 = vld [vmem:[#allocation7] sm:$0xff]
    %v1690 = vld [vmem:[#allocation7 + $0x8] sm:$0xff]
    %v1691 = vld [vmem:[#allocation7 + $0x10] sm:$0xff]
    %v1692 = vld [vmem:[#allocation7 + $0x18] sm:$0xff]
    %v1693 = vld [vmem:[%s20] sm:$0x1]
    %v1695 = vlaneseq
    %v1696 = vshrl.u32 %v1695, 7
    %v1697 = vsub.s32 0, %v1696
    %v1698 = vrot.slane %v1693, %v1697
    %v1701 = vsel %vm721, %v1688, 0
    %1703 = vmatprep.subr.mxu0 0.0
    %1704 = vmatpush1.msra.mxu0 %v1689
    %1705 = vmatprep.subr.mxu0 0.0
    %1706 = vmatpush1.msra.mxu0 %v1690
    %1707 = vmatprep.subr.mxu0 0.0
    %1708 = vmatpush1.msra.mxu0 %v1691
    %1709 = vmatprep.subr.mxu0 0.0
    %1710 = vmatpush1.msra.mxu0 %v1692
    %1711 = vmatprep.subr.mxu0 0.0
    %1712 = vmatpush1.msra.mxu0 0.0
    %1713 = vmatprep.subr.mxu0 0.0
    %1714 = vmatpush1.msra.mxu0 0.0
    %1715 = vmatprep.subr.mxu0 0.0
    %1716 = vmatpush1.msra.mxu0 0.0
    %1717 = vmatprep.subr.mxu0 0.0
    %1718 = vmatpush1.msra.mxu0 0.0
    %1719 = vmatprep.subr.mxu0 0.0
    %1720 = vmatpush1.msra.mxu0 0.0
    %1721 = vmatprep.subr.mxu0 0.0
    %1722 = vmatpush1.msra.mxu0 0.0
    %1723 = vmatprep.subr.mxu0 0.0
    %1724 = vmatpush1.msra.mxu0 0.0
    %1725 = vmatprep.subr.mxu0 0.0
    %1726 = vmatpush1.msra.mxu0 0.0
    %1727 = vmatprep.subr.mxu0 0.0
    %1728 = vmatpush1.msra.mxu0 0.0
    %1729 = vmatprep.subr.mxu0 0.0
    %1730 = vmatpush1.msra.mxu0 0.0
    %1731 = vmatprep.subr.mxu0 0.0
    %1732 = vmatpush1.msra.mxu0 0.0
    %1733 = vmatprep.subr.mxu0 0.0
    %1734 = vmatpush1.msra.mxu0 0.0
    %1735 = vmatprep.subr.mxu0 0.0
    %1736 = vmatpush1.msra.mxu0 0.0
    %1737 = vmatprep.subr.mxu0 0.0
    %1738 = vmatpush1.msra.mxu0 0.0
    %1739 = vmatprep.subr.mxu0 0.0
    %1740 = vmatpush1.msra.mxu0 0.0
    %1741 = vmatprep.subr.mxu0 0.0
    %1742 = vmatpush1.msra.mxu0 0.0
    %1743 = vmatprep.subr.mxu0 0.0
    %1744 = vmatpush1.msra.mxu0 0.0
    %1745 = vmatprep.subr.mxu0 0.0
    %1746 = vmatpush1.msra.mxu0 0.0
    %1747 = vmatprep.subr.mxu0 0.0
    %1748 = vmatpush1.msra.mxu0 0.0
    %1749 = vmatprep.subr.mxu0 0.0
    %1750 = vmatpush1.msra.mxu0 0.0
    %1751 = vmatprep.subr.mxu0 0.0
    %1752 = vmatpush1.msra.mxu0 0.0
    %1753 = vmatprep.subr.mxu0 0.0
    %1754 = vmatpush1.msra.mxu0 0.0
    %1755 = vmatprep.subr.mxu0 0.0
    %1756 = vmatpush1.msra.mxu0 0.0
    %1757 = vmatprep.subr.mxu0 0.0
    %1758 = vmatpush1.msra.mxu0 0.0
    %1759 = vmatprep.subr.mxu0 0.0
    %1760 = vmatpush1.msra.mxu0 0.0
    %1761 = vmatprep.subr.mxu0 0.0
    %1762 = vmatpush1.msra.mxu0 0.0
    %1763 = vmatprep.subr.mxu0 0.0
    %1764 = vmatpush1.msra.mxu0 0.0
    %1765 = vmatprep.subr.mxu0 0.0
    %1766 = vmatpush1.msra.mxu0 0.0
    %1767 = vmatprep.mubr.f32.mxu0 0.0
    %1768 = vmatmul.mubr.f32.gmra.mrb[0].mxu0 %v1701
    %v1769 = vpop.f32.mrb[0].mxu0
    %v1770 = vadd.f32 %v1698, %v1769
    %v1771 = vpop.f32.mrb[0].mxu0
    %1772 = vdwg.mxu0
    %1774 = vrot.lane.b32.xlu0 %v1507, 32
    %v1775 = vpop.permute.xlu0 %1774
    %v1777 = vmul.f32 %v1770, %v1775
    %1779 = vrot.lane.b32.xlu0 %v1777, 96
    %v1780 = vpop.permute.xlu0 %1779
    %v1782 = vadd.f32 %v1052, %v1780
    %1784 = vrot.lane.b32.xlu0 %v1770, 64
    %v1785 = vpop.permute.xlu0 %1784
    %v1787 = vadd.f32 %v1782, %v1785
    %v1788 = vmul.f32 %v1406, %v1770
    %v1789 = vmul.f32 %v1411, %v1770
    %v1790 = vmul.f32 %v1416, %v1770
    %v1791 = vadd.f32 %v1323, %v1788
    %v1792 = vadd.f32 %v1324, %v1789
    %v1793 = vadd.f32 %v1325, %v1790
    %s1794 = scalar_lea.vmem [#allocation5], 24
    %v1795 = vld [vmem:[%s1794] sm:$0xff]
    %v1796 = vld [vmem:[%s1794 + $0x8] sm:$0xff]
    %v1797 = vld [vmem:[%s1794 + $0x10] sm:$0xf]
    %s1798 = scalar_lea.vmem %s13, 1
    %v1799 = vld [vmem:[%s1798] sm:$0x1]
    %v1801 = vlaneseq
    %v1802 = vshrl.u32 %v1801, 7
    %v1803 = vsub.s32 0, %v1802
    %v1804 = vrot.slane %v1799, %v1803
    %v1807 = vsel %vm629, %v1797, 0
    %1809 = vmatprep.subr.mxu0 0.0
    %1810 = vmatpush1.msra.mxu0 %v1795
    %1811 = vmatprep.subr.mxu0 0.0
    %1812 = vmatpush1.msra.mxu0 %v1796
    %1813 = vmatprep.subr.mxu0 0.0
    %1814 = vmatpush1.msra.mxu0 %v1807
    %1815 = vmatprep.subr.mxu0 0.0
    %1816 = vmatpush1.msra.mxu0 0.0
    %1817 = vmatprep.subr.mxu0 0.0
    %1818 = vmatpush1.msra.mxu0 0.0
    %1819 = vmatprep.subr.mxu0 0.0
    %1820 = vmatpush1.msra.mxu0 0.0
    %1821 = vmatprep.subr.mxu0 0.0
    %1822 = vmatpush1.msra.mxu0 0.0
    %1823 = vmatprep.subr.mxu0 0.0
    %1824 = vmatpush1.msra.mxu0 0.0
    %1825 = vmatprep.subr.mxu0 0.0
    %1826 = vmatpush1.msra.mxu0 0.0
    %1827 = vmatprep.subr.mxu0 0.0
    %1828 = vmatpush1.msra.mxu0 0.0
    %1829 = vmatprep.subr.mxu0 0.0
    %1830 = vmatpush1.msra.mxu0 0.0
    %1831 = vmatprep.subr.mxu0 0.0
    %1832 = vmatpush1.msra.mxu0 0.0
    %1833 = vmatprep.subr.mxu0 0.0
    %1834 = vmatpush1.msra.mxu0 0.0
    %1835 = vmatprep.subr.mxu0 0.0
    %1836 = vmatpush1.msra.mxu0 0.0
    %1837 = vmatprep.subr.mxu0 0.0
    %1838 = vmatpush1.msra.mxu0 0.0
    %1839 = vmatprep.subr.mxu0 0.0
    %1840 = vmatpush1.msra.mxu0 0.0
    %1841 = vmatprep.subr.mxu0 0.0
    %1842 = vmatpush1.msra.mxu0 0.0
    %1843 = vmatprep.subr.mxu0 0.0
    %1844 = vmatpush1.msra.mxu0 0.0
    %1845 = vmatprep.subr.mxu0 0.0
    %1846 = vmatpush1.msra.mxu0 0.0
    %1847 = vmatprep.subr.mxu0 0.0
    %1848 = vmatpush1.msra.mxu0 0.0
    %1849 = vmatprep.subr.mxu0 0.0
    %1850 = vmatpush1.msra.mxu0 0.0
    %1851 = vmatprep.subr.mxu0 0.0
    %1852 = vmatpush1.msra.mxu0 0.0
    %1853 = vmatprep.subr.mxu0 0.0
    %1854 = vmatpush1.msra.mxu0 0.0
    %1855 = vmatprep.subr.mxu0 0.0
    %1856 = vmatpush1.msra.mxu0 0.0
    %1857 = vmatprep.subr.mxu0 0.0
    %1858 = vmatpush1.msra.mxu0 0.0
    %1859 = vmatprep.subr.mxu0 0.0
    %1860 = vmatpush1.msra.mxu0 0.0
    %1861 = vmatprep.subr.mxu0 0.0
    %1862 = vmatpush1.msra.mxu0 0.0
    %1863 = vmatprep.subr.mxu0 0.0
    %1864 = vmatpush1.msra.mxu0 0.0
    %1865 = vmatprep.subr.mxu0 0.0
    %1866 = vmatpush1.msra.mxu0 0.0
    %1867 = vmatprep.subr.mxu0 0.0
    %1868 = vmatpush1.msra.mxu0 0.0
    %1869 = vmatprep.subr.mxu0 0.0
    %1870 = vmatpush1.msra.mxu0 0.0
    %1871 = vmatprep.subr.mxu0 0.0
    %1872 = vmatpush1.msra.mxu0 0.0
    %1873 = vmatprep.mubr.f32.mxu0 0.0
    %1874 = vmatmul.mubr.f32.gmra.mrb[0].mxu0 %v624
    %v1875 = vpop.f32.mrb[0].mxu0
    %v1876 = vadd.f32 %v1804, %v1875
    %v1877 = vpop.f32.mrb[0].mxu0
    %1878 = vmatprep.mubr.f32.mxu0 0.0
    %1879 = vmatmul.mubr.f32.gmra.mrb[0].mxu0 %v627
    %v1880 = vpop.f32.mrb[0].mxu0
    %v1881 = vadd.f32 %v1804, %v1880
    %v1882 = vpop.f32.mrb[0].mxu0
    %1883 = vdwg.mxu0
    %v1884 = vmul.f32 %v1876, %v598
    %v1885 = vmul.f32 %v1881, %v599
    %s1886 = scalar_lea.vmem %s8, 32
    %v1887 = vld [vmem:[%s1886] sm:$0xff]
    %v1888 = vld [vmem:[%s1886 + $0x8] sm:$0xff]
    %v1889 = vld [vmem:[%s1886 + $0x10] sm:$0xff]
    %v1890 = vld [vmem:[%s1886 + $0x18] sm:$0xff]
    %s1891 = scalar_lea.vmem %s9, 1
    %v1892 = vld [vmem:[%s1891] sm:$0x1]
    %v1894 = vlaneseq
    %v1895 = vshrl.u32 %v1894, 7
    %v1896 = vsub.s32 0, %v1895
    %v1897 = vrot.slane %v1892, %v1896
    %v1900 = vsel %vm721, %v1787, 0
    %1902 = vmatprep.subr.mxu0 0.0
    %1903 = vmatpush1.msra.mxu0 %v1887
    %1904 = vmatprep.subr.mxu0 0.0
    %1905 = vmatpush1.msra.mxu0 %v1888
    %1906 = vmatprep.subr.mxu0 0.0
    %1907 = vmatpush1.msra.mxu0 %v1889
    %1908 = vmatprep.subr.mxu0 0.0
    %1909 = vmatpush1.msra.mxu0 %v1890
    %1910 = vmatprep.subr.mxu0 0.0
    %1911 = vmatpush1.msra.mxu0 0.0
    %1912 = vmatprep.subr.mxu0 0.0
    %1913 = vmatpush1.msra.mxu0 0.0
    %1914 = vmatprep.subr.mxu0 0.0
    %1915 = vmatpush1.msra.mxu0 0.0
    %1916 = vmatprep.subr.mxu0 0.0
    %1917 = vmatpush1.msra.mxu0 0.0
    %1918 = vmatprep.subr.mxu0 0.0
    %1919 = vmatpush1.msra.mxu0 0.0
    %1920 = vmatprep.subr.mxu0 0.0
    %1921 = vmatpush1.msra.mxu0 0.0
    %1922 = vmatprep.subr.mxu0 0.0
    %1923 = vmatpush1.msra.mxu0 0.0
    %1924 = vmatprep.subr.mxu0 0.0
    %1925 = vmatpush1.msra.mxu0 0.0
    %1926 = vmatprep.subr.mxu0 0.0
    %1927 = vmatpush1.msra.mxu0 0.0
    %1928 = vmatprep.subr.mxu0 0.0
    %1929 = vmatpush1.msra.mxu0 0.0
    %1930 = vmatprep.subr.mxu0 0.0
    %1931 = vmatpush1.msra.mxu0 0.0
    %1932 = vmatprep.subr.mxu0 0.0
    %1933 = vmatpush1.msra.mxu0 0.0
    %1934 = vmatprep.subr.mxu0 0.0
    %1935 = vmatpush1.msra.mxu0 0.0
    %1936 = vmatprep.subr.mxu0 0.0
    %1937 = vmatpush1.msra.mxu0 0.0
    %1938 = vmatprep.subr.mxu0 0.0
    %1939 = vmatpush1.msra.mxu0 0.0
    %1940 = vmatprep.subr.mxu0 0.0
    %1941 = vmatpush1.msra.mxu0 0.0
    %1942 = vmatprep.subr.mxu0 0.0
    %1943 = vmatpush1.msra.mxu0 0.0
    %1944 = vmatprep.subr.mxu0 0.0
    %1945 = vmatpush1.msra.mxu0 0.0
    %1946 = vmatprep.subr.mxu0 0.0
    %1947 = vmatpush1.msra.mxu0 0.0
    %1948 = vmatprep.subr.mxu0 0.0
    %1949 = vmatpush1.msra.mxu0 0.0
    %1950 = vmatprep.subr.mxu0 0.0
    %1951 = vmatpush1.msra.mxu0 0.0
    %1952 = vmatprep.subr.mxu0 0.0
    %1953 = vmatpush1.msra.mxu0 0.0
    %1954 = vmatprep.subr.mxu0 0.0
    %1955 = vmatpush1.msra.mxu0 0.0
    %1956 = vmatprep.subr.mxu0 0.0
    %1957 = vmatpush1.msra.mxu0 0.0
    %1958 = vmatprep.subr.mxu0 0.0
    %1959 = vmatpush1.msra.mxu0 0.0
    %1960 = vmatprep.subr.mxu0 0.0
    %1961 = vmatpush1.msra.mxu0 0.0
    %1962 = vmatprep.subr.mxu0 0.0
    %1963 = vmatpush1.msra.mxu0 0.0
    %1964 = vmatprep.subr.mxu0 0.0
    %1965 = vmatpush1.msra.mxu0 0.0
    %1966 = vmatprep.mubr.f32.mxu0 0.0
    %1967 = vmatmul.mubr.f32.gmra.mrb[0].mxu0 %v1900
    %v1968 = vpop.f32.mrb[0].mxu0
    %v1969 = vadd.f32 %v1897, %v1968
    %v1970 = vpop.f32.mrb[0].mxu0
    %1971 = vdwg.mxu0
    %v1972 = vxor.u32 %v1969, 2147483648
    %v1973 = vmul.f32 %v1972, 1.442695
    %v1974 = vpow.pop %v1973
    %v1975 = vadd.f32 %v1974, 1.0
    %v1976 = vrcp.pop %v1975
    %v1977 = vmul.f32 1.0, %v1976
    %v1978 = vmul.f32 %v1969, %v1977
    %s1979 = scalar_lea.vmem %s10, 32
    %v1980 = vld [vmem:[%s1979] sm:$0xff]
    %v1981 = vld [vmem:[%s1979 + $0x8] sm:$0xff]
    %v1982 = vld [vmem:[%s1979 + $0x10] sm:$0xff]
    %v1983 = vld [vmem:[%s1979 + $0x18] sm:$0xff]
    %s1984 = scalar_lea.vmem %s11, 1
    %v1985 = vld [vmem:[%s1984] sm:$0x1]
    %v1987 = vlaneseq
    %v1988 = vshrl.u32 %v1987, 7
    %v1989 = vsub.s32 0, %v1988
    %v1990 = vrot.slane %v1985, %v1989
    %v1993 = vsel %vm721, %v1978, 0
    %1995 = vmatprep.subr.mxu0 0.0
    %1996 = vmatpush1.msra.mxu0 %v1980
    %1997 = vmatprep.subr.mxu0 0.0
    %1998 = vmatpush1.msra.mxu0 %v1981
    %1999 = vmatprep.subr.mxu0 0.0
    %2000 = vmatpush1.msra.mxu0 %v1982
    %2001 = vmatprep.subr.mxu0 0.0
    %2002 = vmatpush1.msra.mxu0 %v1983
    %2003 = vmatprep.subr.mxu0 0.0
    %2004 = vmatpush1.msra.mxu0 0.0
    %2005 = vmatprep.subr.mxu0 0.0
    %2006 = vmatpush1.msra.mxu0 0.0
    %2007 = vmatprep.subr.mxu0 0.0
    %2008 = vmatpush1.msra.mxu0 0.0
    %2009 = vmatprep.subr.mxu0 0.0
    %2010 = vmatpush1.msra.mxu0 0.0
    %2011 = vmatprep.subr.mxu0 0.0
    %2012 = vmatpush1.msra.mxu0 0.0
    %2013 = vmatprep.subr.mxu0 0.0
    %2014 = vmatpush1.msra.mxu0 0.0
    %2015 = vmatprep.subr.mxu0 0.0
    %2016 = vmatpush1.msra.mxu0 0.0
    %2017 = vmatprep.subr.mxu0 0.0
    %2018 = vmatpush1.msra.mxu0 0.0
    %2019 = vmatprep.subr.mxu0 0.0
    %2020 = vmatpush1.msra.mxu0 0.0
    %2021 = vmatprep.subr.mxu0 0.0
    %2022 = vmatpush1.msra.mxu0 0.0
    %2023 = vmatprep.subr.mxu0 0.0
    %2024 = vmatpush1.msra.mxu0 0.0
    %2025 = vmatprep.subr.mxu0 0.0
    %2026 = vmatpush1.msra.mxu0 0.0
    %2027 = vmatprep.subr.mxu0 0.0
    %2028 = vmatpush1.msra.mxu0 0.0
    %2029 = vmatprep.subr.mxu0 0.0
    %2030 = vmatpush1.msra.mxu0 0.0
    %2031 = vmatprep.subr.mxu0 0.0
    %2032 = vmatpush1.msra.mxu0 0.0
    %2033 = vmatprep.subr.mxu0 0.0
    %2034 = vmatpush1.msra.mxu0 0.0
    %2035 = vmatprep.subr.mxu0 0.0
    %2036 = vmatpush1.msra.mxu0 0.0
    %2037 = vmatprep.subr.mxu0 0.0
    %2038 = vmatpush1.msra.mxu0 0.0
    %2039 = vmatprep.subr.mxu0 0.0
    %2040 = vmatpush1.msra.mxu0 0.0
    %2041 = vmatprep.subr.mxu0 0.0
    %2042 = vmatpush1.msra.mxu0 0.0
    %2043 = vmatprep.subr.mxu0 0.0
    %2044 = vmatpush1.msra.mxu0 0.0
    %2045 = vmatprep.subr.mxu0 0.0
    %2046 = vmatpush1.msra.mxu0 0.0
    %2047 = vmatprep.subr.mxu0 0.0
    %2048 = vmatpush1.msra.mxu0 0.0
    %2049 = vmatprep.subr.mxu0 0.0
    %2050 = vmatpush1.msra.mxu0 0.0
    %2051 = vmatprep.subr.mxu0 0.0
    %2052 = vmatpush1.msra.mxu0 0.0
    %2053 = vmatprep.subr.mxu0 0.0
    %2054 = vmatpush1.msra.mxu0 0.0
    %2055 = vmatprep.subr.mxu0 0.0
    %2056 = vmatpush1.msra.mxu0 0.0
    %2057 = vmatprep.subr.mxu0 0.0
    %2058 = vmatpush1.msra.mxu0 0.0
    %2059 = vmatprep.mubr.f32.mxu0 0.0
    %2060 = vmatmul.mubr.f32.gmra.mrb[0].mxu0 %v1993
    %v2061 = vpop.f32.mrb[0].mxu0
    %v2062 = vadd.f32 %v1990, %v2061
    %v2063 = vpop.f32.mrb[0].mxu0
    %2064 = vdwg.mxu0
    %2065 = vmatprep.subr.mxu0 0.0
    %2066 = vmatpush1.msra.mxu0 %v2062
    %2067 = vmatprep.subr.mxu0 0.0
    %2068 = vmatpush1.msra.mxu0 0.0
    %2069 = vmatprep.subr.mxu0 0.0
    %2070 = vmatpush1.msra.mxu0 0.0
    %2071 = vmatprep.subr.mxu0 0.0
    %2072 = vmatpush1.msra.mxu0 0.0
    %2073 = vmatprep.subr.mxu0 0.0
    %2074 = vmatpush1.msra.mxu0 0.0
    %2075 = vmatprep.subr.mxu0 0.0
    %2076 = vmatpush1.msra.mxu0 0.0
    %2077 = vmatprep.subr.mxu0 0.0
    %2078 = vmatpush1.msra.mxu0 0.0
    %2079 = vmatprep.subr.mxu0 0.0
    %2080 = vmatpush1.msra.mxu0 0.0
    %2081 = vmatprep.subr.mxu0 0.0
    %2082 = vmatpush1.msra.mxu0 0.0
    %2083 = vmatprep.subr.mxu0 0.0
    %2084 = vmatpush1.msra.mxu0 0.0
    %2085 = vmatprep.subr.mxu0 0.0
    %2086 = vmatpush1.msra.mxu0 0.0
    %2087 = vmatprep.subr.mxu0 0.0
    %2088 = vmatpush1.msra.mxu0 0.0
    %2089 = vmatprep.subr.mxu0 0.0
    %2090 = vmatpush1.msra.mxu0 0.0
    %2091 = vmatprep.subr.mxu0 0.0
    %2092 = vmatpush1.msra.mxu0 0.0
    %2093 = vmatprep.subr.mxu0 0.0
    %2094 = vmatpush1.msra.mxu0 0.0
    %2095 = vmatprep.subr.mxu0 0.0
    %2096 = vmatpush1.msra.mxu0 0.0
    %2097 = vmatprep.subr.mxu0 0.0
    %2098 = vmatpush1.msra.mxu0 0.0
    %2099 = vmatprep.subr.mxu0 0.0
    %2100 = vmatpush1.msra.mxu0 0.0
    %2101 = vmatprep.subr.mxu0 0.0
    %2102 = vmatpush1.msra.mxu0 0.0
    %2103 = vmatprep.subr.mxu0 0.0
    %2104 = vmatpush1.msra.mxu0 0.0
    %2105 = vmatprep.subr.mxu0 0.0
    %2106 = vmatpush1.msra.mxu0 0.0
    %2107 = vmatprep.subr.mxu0 0.0
    %2108 = vmatpush1.msra.mxu0 0.0
    %2109 = vmatprep.subr.mxu0 0.0
    %2110 = vmatpush1.msra.mxu0 0.0
    %2111 = vmatprep.subr.mxu0 0.0
    %2112 = vmatpush1.msra.mxu0 0.0
    %2113 = vmatprep.subr.mxu0 0.0
    %2114 = vmatpush1.msra.mxu0 0.0
    %2115 = vmatprep.subr.mxu0 0.0
    %2116 = vmatpush1.msra.mxu0 0.0
    %2117 = vmatprep.subr.mxu0 0.0
    %2118 = vmatpush1.msra.mxu0 0.0
    %2119 = vmatprep.subr.mxu0 0.0
    %2120 = vmatpush1.msra.mxu0 0.0
    %2121 = vmatprep.subr.mxu0 0.0
    %2122 = vmatpush1.msra.mxu0 0.0
    %2123 = vmatprep.subr.mxu0 0.0
    %2124 = vmatpush1.msra.mxu0 0.0
    %2125 = vmatprep.subr.mxu0 0.0
    %2126 = vmatpush1.msra.mxu0 0.0
    %2127 = vmatprep.subr.mxu0 0.0
    %2128 = vmatpush1.msra.mxu0 0.0
    %2129 = vmatprep.mubr.f32.mxu0 0.0
    %2130 = vmatmul.mubr.f32.gmra.mrb[0].mxu0 %v888
    %v2131 = vpop.f32.mrb[0].mxu0
    %v2132 = vadd.f32 0.0, %v2131
    %v2133 = vpop.f32.mrb[0].mxu0
    %2134 = vmatprep.mubr.f32.mxu0 0.0
    %2135 = vmatmul.mubr.f32.gmra.mrb[0].mxu0 %v891
    %v2136 = vpop.f32.mrb[0].mxu0
    %v2137 = vadd.f32 0.0, %v2136
    %v2138 = vpop.f32.mrb[0].mxu0
    %2139 = vdwg.mxu0
    %v2140 = vmul.f32 %v2132, %v1884
    %v2141 = vmul.f32 %v2137, %v1885
    %2144 = vrot.lane.b32.xlu0 %v2140, 96
    %v2145 = vpop.permute.xlu0 %2144
    %2146 = vrot.lane.b32.xlu0 %v2141, 96
    %v2147 = vpop.permute.xlu0 %2146
    %2150 = vmatprep.subr.mxu0 0.0
    %2151 = vmatpush1.msra.mxu0 %v2145
    %2152 = vmatprep.subr.mxu0 0.0
    %2153 = vmatpush1.msra.mxu0 %v2147
    %2154 = vmatprep.subr.mxu0 0.0
    %2155 = vmatpush1.msra.mxu0 0.0
    %2156 = vmatprep.subr.mxu0 0.0
    %2157 = vmatpush1.msra.mxu0 0.0
    %2158 = vmatprep.subr.mxu0 0.0
    %2159 = vmatpush1.msra.mxu0 0.0
    %2160 = vmatprep.subr.mxu0 0.0
    %2161 = vmatpush1.msra.mxu0 0.0
    %2162 = vmatprep.subr.mxu0 0.0
    %2163 = vmatpush1.msra.mxu0 0.0
    %2164 = vmatprep.subr.mxu0 0.0
    %2165 = vmatpush1.msra.mxu0 0.0
    %2166 = vmatprep.subr.mxu0 0.0
    %2167 = vmatpush1.msra.mxu0 0.0
    %2168 = vmatprep.subr.mxu0 0.0
    %2169 = vmatpush1.msra.mxu0 0.0
    %2170 = vmatprep.subr.mxu0 0.0
    %2171 = vmatpush1.msra.mxu0 0.0
    %2172 = vmatprep.subr.mxu0 0.0
    %2173 = vmatpush1.msra.mxu0 0.0
    %2174 = vmatprep.subr.mxu0 0.0
    %2175 = vmatpush1.msra.mxu0 0.0
    %2176 = vmatprep.subr.mxu0 0.0
    %2177 = vmatpush1.msra.mxu0 0.0
    %2178 = vmatprep.subr.mxu0 0.0
    %2179 = vmatpush1.msra.mxu0 0.0
    %2180 = vmatprep.subr.mxu0 0.0
    %2181 = vmatpush1.msra.mxu0 0.0
    %2182 = vmatprep.subr.mxu0 0.0
    %2183 = vmatpush1.msra.mxu0 0.0
    %2184 = vmatprep.subr.mxu0 0.0
    %2185 = vmatpush1.msra.mxu0 0.0
    %2186 = vmatprep.subr.mxu0 0.0
    %2187 = vmatpush1.msra.mxu0 0.0
    %2188 = vmatprep.subr.mxu0 0.0
    %2189 = vmatpush1.msra.mxu0 0.0
    %2190 = vmatprep.subr.mxu0 0.0
    %2191 = vmatpush1.msra.mxu0 0.0
    %2192 = vmatprep.subr.mxu0 0.0
    %2193 = vmatpush1.msra.mxu0 0.0
    %2194 = vmatprep.subr.mxu0 0.0
    %2195 = vmatpush1.msra.mxu0 0.0
    %2196 = vmatprep.subr.mxu0 0.0
    %2197 = vmatpush1.msra.mxu0 0.0
    %2198 = vmatprep.subr.mxu0 0.0
    %2199 = vmatpush1.msra.mxu0 0.0
    %2200 = vmatprep.subr.mxu0 0.0
    %2201 = vmatpush1.msra.mxu0 0.0
    %2202 = vmatprep.subr.mxu0 0.0
    %2203 = vmatpush1.msra.mxu0 0.0
    %2204 = vmatprep.subr.mxu0 0.0
    %2205 = vmatpush1.msra.mxu0 0.0
    %2206 = vmatprep.subr.mxu0 0.0
    %2207 = vmatpush1.msra.mxu0 0.0
    %2208 = vmatprep.subr.mxu0 0.0
    %2209 = vmatpush1.msra.mxu0 0.0
    %2210 = vmatprep.subr.mxu0 0.0
    %2211 = vmatpush1.msra.mxu0 0.0
    %2212 = vmatprep.subr.mxu0 0.0
    %2213 = vmatpush1.msra.mxu0 0.0
    %2214 = vmatprep.mubr.f32.mxu0 0.0
    %2215 = vmatmul.mubr.f32.gmra.mrb[0].mxu0 %v980
    %v2216 = vpop.f32.mrb[0].mxu0
    %v2217 = vadd.f32 0.0, %v2216
    %v2218 = vpop.f32.mrb[0].mxu0
    %2219 = vdwg.mxu0
    %v2220 = vadd.f32 %v1787, %v2217
    %2221 = vmatprep.subr.mxu0 0.0
    %2222 = vmatpush1.msra.mxu0 %v1791
    %2223 = vmatprep.subr.mxu0 0.0
    %2224 = vmatpush1.msra.mxu0 %v1792
    %2225 = vmatprep.subr.mxu0 0.0
    %2226 = vmatpush1.msra.mxu0 %v1793
    %2227 = vmatprep.subr.mxu0 0.0
    %2228 = vmatpush1.msra.mxu0 0.0
    %2229 = vmatprep.subr.mxu0 0.0
    %2230 = vmatpush1.msra.mxu0 0.0
    %2231 = vmatprep.subr.mxu0 0.0
    %2232 = vmatpush1.msra.mxu0 0.0
    %2233 = vmatprep.subr.mxu0 0.0
    %2234 = vmatpush1.msra.mxu0 0.0
    %2235 = vmatprep.subr.mxu0 0.0
    %2236 = vmatpush1.msra.mxu0 0.0
    %2237 = vmatprep.subr.mxu0 0.0
    %2238 = vmatpush1.msra.mxu0 0.0
    %2239 = vmatprep.subr.mxu0 0.0
    %2240 = vmatpush1.msra.mxu0 0.0
    %2241 = vmatprep.subr.mxu0 0.0
    %2242 = vmatpush1.msra.mxu0 0.0
    %2243 = vmatprep.subr.mxu0 0.0
    %2244 = vmatpush1.msra.mxu0 0.0
    %2245 = vmatprep.subr.mxu0 0.0
    %2246 = vmatpush1.msra.mxu0 0.0
    %2247 = vmatprep.subr.mxu0 0.0
    %2248 = vmatpush1.msra.mxu0 0.0
    %2249 = vmatprep.subr.mxu0 0.0
    %2250 = vmatpush1.msra.mxu0 0.0
    %2251 = vmatprep.subr.mxu0 0.0
    %2252 = vmatpush1.msra.mxu0 0.0
    %2253 = vmatprep.subr.mxu0 0.0
    %2254 = vmatpush1.msra.mxu0 0.0
    %2255 = vmatprep.subr.mxu0 0.0
    %2256 = vmatpush1.msra.mxu0 0.0
    %2257 = vmatprep.subr.mxu0 0.0
    %2258 = vmatpush1.msra.mxu0 0.0
    %2259 = vmatprep.subr.mxu0 0.0
    %2260 = vmatpush1.msra.mxu0 0.0
    %2261 = vmatprep.subr.mxu0 0.0
    %2262 = vmatpush1.msra.mxu0 0.0
    %2263 = vmatprep.subr.mxu0 0.0
    %2264 = vmatpush1.msra.mxu0 0.0
    %2265 = vmatprep.subr.mxu0 0.0
    %2266 = vmatpush1.msra.mxu0 0.0
    %2267 = vmatprep.subr.mxu0 0.0
    %2268 = vmatpush1.msra.mxu0 0.0
    %2269 = vmatprep.subr.mxu0 0.0
    %2270 = vmatpush1.msra.mxu0 0.0
    %2271 = vmatprep.subr.mxu0 0.0
    %2272 = vmatpush1.msra.mxu0 0.0
    %2273 = vmatprep.subr.mxu0 0.0
    %2274 = vmatpush1.msra.mxu0 0.0
    %2275 = vmatprep.subr.mxu0 0.0
    %2276 = vmatpush1.msra.mxu0 0.0
    %2277 = vmatprep.subr.mxu0 0.0
    %2278 = vmatpush1.msra.mxu0 0.0
    %2279 = vmatprep.subr.mxu0 0.0
    %2280 = vmatpush1.msra.mxu0 0.0
    %2281 = vmatprep.subr.mxu0 0.0
    %2282 = vmatpush1.msra.mxu0 0.0
    %2283 = vmatprep.subr.mxu0 0.0
    %2284 = vmatpush1.msra.mxu0 0.0
    %2285 = vmatprep.mubr.f32.mxu0 0.0
    %2286 = vmatmul.mubr.f32.gmra.mrb[0].mxu0 %v1055
    %v2287 = vpop.f32.mrb[0].mxu0
    %v2288 = vadd.f32 0.0, %v2287
    %v2289 = vpop.f32.mrb[0].mxu0
    %2290 = vmatprep.mubr.f32.mxu0 0.0
    %2291 = vmatmul.mubr.f32.gmra.mrb[0].mxu0 %v1058
    %v2292 = vpop.f32.mrb[0].mxu0
    %v2293 = vadd.f32 0.0, %v2292
    %v2294 = vpop.f32.mrb[0].mxu0
    %2295 = vmatprep.mubr.f32.mxu0 0.0
    %2296 = vmatmul.mubr.f32.gmra.mrb[0].mxu0 %v1061
    %v2297 = vpop.f32.mrb[0].mxu0
    %v2298 = vadd.f32 0.0, %v2297
    %v2299 = vpop.f32.mrb[0].mxu0
    %2300 = vmatprep.mubr.f32.mxu0 0.0
    %2301 = vmatmul.mubr.f32.gmra.mrb[0].mxu0 %v1064
    %v2302 = vpop.f32.mrb[0].mxu0
    %v2303 = vadd.f32 0.0, %v2302
    %v2304 = vpop.f32.mrb[0].mxu0
    %2305 = vmatprep.mubr.f32.mxu0 0.0
    %2306 = vmatmul.mubr.f32.gmra.mrb[0].mxu0 %v1067
    %v2307 = vpop.f32.mrb[0].mxu0
    %v2308 = vadd.f32 0.0, %v2307
    %v2309 = vpop.f32.mrb[0].mxu0
    %2310 = vmatprep.mubr.f32.mxu0 0.0
    %2311 = vmatmul.mubr.f32.gmra.mrb[0].mxu0 %v1070
    %v2312 = vpop.f32.mrb[0].mxu0
    %v2313 = vadd.f32 0.0, %v2312
    %v2314 = vpop.f32.mrb[0].mxu0
    %2315 = vdwg.mxu0
    %v2316 = vmul.f32 %v2140, %v2288
    %v2317 = vmul.f32 %v2141, %v2293
    %v2318 = vmul.f32 %v2140, %v2298
    %v2319 = vmul.f32 %v2141, %v2303
    %v2320 = vmul.f32 %v2140, %v2308
    %v2321 = vmul.f32 %v2141, %v2313
    %v2322 = vmul.f32 %v2140, %v1175
    %v2323 = vmul.f32 %v2141, %v1179
    %v2324 = vmul.f32 %v2140, %v1183
    %v2325 = vmul.f32 %v2141, %v1187
    %v2326 = vmul.f32 %v2140, %v1191
    %v2327 = vmul.f32 %v2141, %v1195
    %2334 = vrot.lane.b32.xlu0 %v2322, 64
    %v2335 = vpop.permute.xlu0 %2334
    %2336 = vrot.lane.b32.xlu0 %v2323, 64
    %v2337 = vpop.permute.xlu0 %2336
    %2338 = vrot.lane.b32.xlu0 %v2324, 64
    %v2339 = vpop.permute.xlu0 %2338
    %2340 = vrot.lane.b32.xlu0 %v2325, 64
    %v2341 = vpop.permute.xlu0 %2340
    %2342 = vrot.lane.b32.xlu0 %v2326, 64
    %v2343 = vpop.permute.xlu0 %2342
    %2344 = vrot.lane.b32.xlu0 %v2327, 64
    %v2345 = vpop.permute.xlu0 %2344
    %v2352 = vadd.f32 %v2316, %v2335
    %v2353 = vadd.f32 %v2317, %v2337
    %v2354 = vadd.f32 %v2318, %v2339
    %v2355 = vadd.f32 %v2319, %v2341
    %v2356 = vadd.f32 %v2320, %v2343
    %v2357 = vadd.f32 %v2321, %v2345
    %2358 = vmatprep.subr.mxu0 0.0
    %2359 = vmatpush1.msra.mxu0 %v2352
    %2360 = vmatprep.subr.mxu0 0.0
    %2361 = vmatpush1.msra.mxu0 %v2353
    %2362 = vmatprep.subr.mxu0 0.0
    %2363 = vmatpush1.msra.mxu0 %v2354
    %2364 = vmatprep.subr.mxu0 0.0
    %2365 = vmatpush1.msra.mxu0 %v2355
    %2366 = vmatprep.subr.mxu0 0.0
    %2367 = vmatpush1.msra.mxu0 %v2356
    %2368 = vmatprep.subr.mxu0 0.0
    %2369 = vmatpush1.msra.mxu0 %v2357
    %2370 = vmatprep.subr.mxu0 0.0
    %2371 = vmatpush1.msra.mxu0 0.0
    %2372 = vmatprep.subr.mxu0 0.0
    %2373 = vmatpush1.msra.mxu0 0.0
    %2374 = vmatprep.subr.mxu0 0.0
    %2375 = vmatpush1.msra.mxu0 0.0
    %2376 = vmatprep.subr.mxu0 0.0
    %2377 = vmatpush1.msra.mxu0 0.0
    %2378 = vmatprep.subr.mxu0 0.0
    %2379 = vmatpush1.msra.mxu0 0.0
    %2380 = vmatprep.subr.mxu0 0.0
    %2381 = vmatpush1.msra.mxu0 0.0
    %2382 = vmatprep.subr.mxu0 0.0
    %2383 = vmatpush1.msra.mxu0 0.0
    %2384 = vmatprep.subr.mxu0 0.0
    %2385 = vmatpush1.msra.mxu0 0.0
    %2386 = vmatprep.subr.mxu0 0.0
    %2387 = vmatpush1.msra.mxu0 0.0
    %2388 = vmatprep.subr.mxu0 0.0
    %2389 = vmatpush1.msra.mxu0 0.0
    %2390 = vmatprep.subr.mxu0 0.0
    %2391 = vmatpush1.msra.mxu0 0.0
    %2392 = vmatprep.subr.mxu0 0.0
    %2393 = vmatpush1.msra.mxu0 0.0
    %2394 = vmatprep.subr.mxu0 0.0
    %2395 = vmatpush1.msra.mxu0 0.0
    %2396 = vmatprep.subr.mxu0 0.0
    %2397 = vmatpush1.msra.mxu0 0.0
    %2398 = vmatprep.subr.mxu0 0.0
    %2399 = vmatpush1.msra.mxu0 0.0
    %2400 = vmatprep.subr.mxu0 0.0
    %2401 = vmatpush1.msra.mxu0 0.0
    %2402 = vmatprep.subr.mxu0 0.0
    %2403 = vmatpush1.msra.mxu0 0.0
    %2404 = vmatprep.subr.mxu0 0.0
    %2405 = vmatpush1.msra.mxu0 0.0
    %2406 = vmatprep.subr.mxu0 0.0
    %2407 = vmatpush1.msra.mxu0 0.0
    %2408 = vmatprep.subr.mxu0 0.0
    %2409 = vmatpush1.msra.mxu0 0.0
    %2410 = vmatprep.subr.mxu0 0.0
    %2411 = vmatpush1.msra.mxu0 0.0
    %2412 = vmatprep.subr.mxu0 0.0
    %2413 = vmatpush1.msra.mxu0 0.0
    %2414 = vmatprep.subr.mxu0 0.0
    %2415 = vmatpush1.msra.mxu0 0.0
    %2416 = vmatprep.subr.mxu0 0.0
    %2417 = vmatpush1.msra.mxu0 0.0
    %2418 = vmatprep.subr.mxu0 0.0
    %2419 = vmatpush1.msra.mxu0 0.0
    %2420 = vmatprep.subr.mxu0 0.0
    %2421 = vmatpush1.msra.mxu0 0.0
    %2422 = vmatprep.mubr.f32.mxu0 0.0
    %2423 = vmatmul.mubr.f32.gmra.mrb[0].mxu0 %v1235
    %v2424 = vpop.f32.mrb[0].mxu0
    %v2425 = vadd.f32 0.0, %v2424
    %v2426 = vpop.f32.mrb[0].mxu0
    %2427 = vmatprep.mubr.f32.mxu0 0.0
    %2428 = vmatmul.mubr.f32.gmra.mrb[0].mxu0 %v1238
    %v2429 = vpop.f32.mrb[0].mxu0
    %v2430 = vadd.f32 0.0, %v2429
    %v2431 = vpop.f32.mrb[0].mxu0
    %2432 = vmatprep.mubr.f32.mxu0 0.0
    %2433 = vmatmul.mubr.f32.gmra.mrb[0].mxu0 %v1241
    %v2434 = vpop.f32.mrb[0].mxu0
    %v2435 = vadd.f32 0.0, %v2434
    %v2436 = vpop.f32.mrb[0].mxu0
    %2437 = vdwg.mxu0
    %v2438 = vadd.f32 %v1791, %v2425
    %v2439 = vadd.f32 %v1792, %v2430
    %v2440 = vadd.f32 %v1793, %v2435
    %s2441 = scalar_lea.vmem %s14, 32
    %v2442 = vld [vmem:[%s2441] sm:$0xff]
    %v2443 = vld [vmem:[%s2441 + $0x8] sm:$0xff]
    %v2444 = vld [vmem:[%s2441 + $0x10] sm:$0xff]
    %v2445 = vld [vmem:[%s2441 + $0x18] sm:$0xff]
    %v2447 = vsel %vm721, %v2438, 0
    %v2450 = vsel %vm721, %v2439, 0
    %v2453 = vsel %vm721, %v2440, 0
    %2455 = vmatprep.subr.mxu0 0.0
    %2456 = vmatpush1.msra.mxu0 %v2442
    %2457 = vmatprep.subr.mxu0 0.0
    %2458 = vmatpush1.msra.mxu0 %v2443
    %2459 = vmatprep.subr.mxu0 0.0
    %2460 = vmatpush1.msra.mxu0 %v2444
    %2461 = vmatprep.subr.mxu0 0.0
    %2462 = vmatpush1.msra.mxu0 %v2445
    %2463 = vmatprep.subr.mxu0 0.0
    %2464 = vmatpush1.msra.mxu0 0.0
    %2465 = vmatprep.subr.mxu0 0.0
    %2466 = vmatpush1.msra.mxu0 0.0
    %2467 = vmatprep.subr.mxu0 0.0
    %2468 = vmatpush1.msra.mxu0 0.0
    %2469 = vmatprep.subr.mxu0 0.0
    %2470 = vmatpush1.msra.mxu0 0.0
    %2471 = vmatprep.subr.mxu0 0.0
    %2472 = vmatpush1.msra.mxu0 0.0
    %2473 = vmatprep.subr.mxu0 0.0
    %2474 = vmatpush1.msra.mxu0 0.0
    %2475 = vmatprep.subr.mxu0 0.0
    %2476 = vmatpush1.msra.mxu0 0.0
    %2477 = vmatprep.subr.mxu0 0.0
    %2478 = vmatpush1.msra.mxu0 0.0
    %2479 = vmatprep.subr.mxu0 0.0
    %2480 = vmatpush1.msra.mxu0 0.0
    %2481 = vmatprep.subr.mxu0 0.0
    %2482 = vmatpush1.msra.mxu0 0.0
    %2483 = vmatprep.subr.mxu0 0.0
    %2484 = vmatpush1.msra.mxu0 0.0
    %2485 = vmatprep.subr.mxu0 0.0
    %2486 = vmatpush1.msra.mxu0 0.0
    %2487 = vmatprep.subr.mxu0 0.0
    %2488 = vmatpush1.msra.mxu0 0.0
    %2489 = vmatprep.subr.mxu0 0.0
    %2490 = vmatpush1.msra.mxu0 0.0
    %2491 = vmatprep.subr.mxu0 0.0
    %2492 = vmatpush1.msra.mxu0 0.0
    %2493 = vmatprep.subr.mxu0 0.0
    %2494 = vmatpush1.msra.mxu0 0.0
    %2495 = vmatprep.subr.mxu0 0.0
    %2496 = vmatpush1.msra.mxu0 0.0
    %2497 = vmatprep.subr.mxu0 0.0
    %2498 = vmatpush1.msra.mxu0 0.0
    %2499 = vmatprep.subr.mxu0 0.0
    %2500 = vmatpush1.msra.mxu0 0.0
    %2501 = vmatprep.subr.mxu0 0.0
    %2502 = vmatpush1.msra.mxu0 0.0
    %2503 = vmatprep.subr.mxu0 0.0
    %2504 = vmatpush1.msra.mxu0 0.0
    %2505 = vmatprep.subr.mxu0 0.0
    %2506 = vmatpush1.msra.mxu0 0.0
    %2507 = vmatprep.subr.mxu0 0.0
    %2508 = vmatpush1.msra.mxu0 0.0
    %2509 = vmatprep.subr.mxu0 0.0
    %2510 = vmatpush1.msra.mxu0 0.0
    %2511 = vmatprep.subr.mxu0 0.0
    %2512 = vmatpush1.msra.mxu0 0.0
    %2513 = vmatprep.subr.mxu0 0.0
    %2514 = vmatpush1.msra.mxu0 0.0
    %2515 = vmatprep.subr.mxu0 0.0
    %2516 = vmatpush1.msra.mxu0 0.0
    %2517 = vmatprep.subr.mxu0 0.0
    %2518 = vmatpush1.msra.mxu0 0.0
    %2519 = vmatprep.mubr.f32.mxu0 0.0
    %2520 = vmatmul.mubr.f32.gmra.mrb[0].mxu0 %v2447
    %v2521 = vpop.f32.mrb[0].mxu0
    %v2522 = vadd.f32 0.0, %v2521
    %v2523 = vpop.f32.mrb[0].mxu0
    %2524 = vmatprep.mubr.f32.mxu0 0.0
    %2525 = vmatmul.mubr.f32.gmra.mrb[0].mxu0 %v2450
    %v2526 = vpop.f32.mrb[0].mxu0
    %v2527 = vadd.f32 0.0, %v2526
    %v2528 = vpop.f32.mrb[0].mxu0
    %2529 = vmatprep.mubr.f32.mxu0 0.0
    %2530 = vmatmul.mubr.f32.gmra.mrb[0].mxu0 %v2453
    %v2531 = vpop.f32.mrb[0].mxu0
    %v2532 = vadd.f32 0.0, %v2531
    %v2533 = vpop.f32.mrb[0].mxu0
    %2534 = vdwg.mxu0
    %s2535 = scalar_lea.vmem %s15, 32
    %v2536 = vld [vmem:[%s2535] sm:$0xff]
    %v2537 = vld [vmem:[%s2535 + $0x8] sm:$0xff]
    %v2538 = vld [vmem:[%s2535 + $0x10] sm:$0xff]
    %v2539 = vld [vmem:[%s2535 + $0x18] sm:$0xff]
    %2540 = vmatprep.subr.mxu0 0.0
    %2541 = vmatpush1.msra.mxu0 %v2536
    %2542 = vmatprep.subr.mxu0 0.0
    %2543 = vmatpush1.msra.mxu0 %v2537
    %2544 = vmatprep.subr.mxu0 0.0
    %2545 = vmatpush1.msra.mxu0 %v2538
    %2546 = vmatprep.subr.mxu0 0.0
    %2547 = vmatpush1.msra.mxu0 %v2539
    %2548 = vmatprep.subr.mxu0 0.0
    %2549 = vmatpush1.msra.mxu0 0.0
    %2550 = vmatprep.subr.mxu0 0.0
    %2551 = vmatpush1.msra.mxu0 0.0
    %2552 = vmatprep.subr.mxu0 0.0
    %2553 = vmatpush1.msra.mxu0 0.0
    %2554 = vmatprep.subr.mxu0 0.0
    %2555 = vmatpush1.msra.mxu0 0.0
    %2556 = vmatprep.subr.mxu0 0.0
    %2557 = vmatpush1.msra.mxu0 0.0
    %2558 = vmatprep.subr.mxu0 0.0
    %2559 = vmatpush1.msra.mxu0 0.0
    %2560 = vmatprep.subr.mxu0 0.0
    %2561 = vmatpush1.msra.mxu0 0.0
    %2562 = vmatprep.subr.mxu0 0.0
    %2563 = vmatpush1.msra.mxu0 0.0
    %2564 = vmatprep.subr.mxu0 0.0
    %2565 = vmatpush1.msra.mxu0 0.0
    %2566 = vmatprep.subr.mxu0 0.0
    %2567 = vmatpush1.msra.mxu0 0.0
    %2568 = vmatprep.subr.mxu0 0.0
    %2569 = vmatpush1.msra.mxu0 0.0
    %2570 = vmatprep.subr.mxu0 0.0
    %2571 = vmatpush1.msra.mxu0 0.0
    %2572 = vmatprep.subr.mxu0 0.0
    %2573 = vmatpush1.msra.mxu0 0.0
    %2574 = vmatprep.subr.mxu0 0.0
    %2575 = vmatpush1.msra.mxu0 0.0
    %2576 = vmatprep.subr.mxu0 0.0
    %2577 = vmatpush1.msra.mxu0 0.0
    %2578 = vmatprep.subr.mxu0 0.0
    %2579 = vmatpush1.msra.mxu0 0.0
    %2580 = vmatprep.subr.mxu0 0.0
    %2581 = vmatpush1.msra.mxu0 0.0
    %2582 = vmatprep.subr.mxu0 0.0
    %2583 = vmatpush1.msra.mxu0 0.0
    %2584 = vmatprep.subr.mxu0 0.0
    %2585 = vmatpush1.msra.mxu0 0.0
    %2586 = vmatprep.subr.mxu0 0.0
    %2587 = vmatpush1.msra.mxu0 0.0
    %2588 = vmatprep.subr.mxu0 0.0
    %2589 = vmatpush1.msra.mxu0 0.0
    %2590 = vmatprep.subr.mxu0 0.0
    %2591 = vmatpush1.msra.mxu0 0.0
    %2592 = vmatprep.subr.mxu0 0.0
    %2593 = vmatpush1.msra.mxu0 0.0
    %2594 = vmatprep.subr.mxu0 0.0
    %2595 = vmatpush1.msra.mxu0 0.0
    %2596 = vmatprep.subr.mxu0 0.0
    %2597 = vmatpush1.msra.mxu0 0.0
    %2598 = vmatprep.subr.mxu0 0.0
    %2599 = vmatpush1.msra.mxu0 0.0
    %2600 = vmatprep.subr.mxu0 0.0
    %2601 = vmatpush1.msra.mxu0 0.0
    %2602 = vmatprep.subr.mxu0 0.0
    %2603 = vmatpush1.msra.mxu0 0.0
    %2604 = vmatprep.mubr.f32.mxu0 0.0
    %2605 = vmatmul.mubr.f32.gmra.mrb[0].mxu0 %v2447
    %v2606 = vpop.f32.mrb[0].mxu0
    %v2607 = vadd.f32 0.0, %v2606
    %v2608 = vpop.f32.mrb[0].mxu0
    %2609 = vmatprep.mubr.f32.mxu0 0.0
    %2610 = vmatmul.mubr.f32.gmra.mrb[0].mxu0 %v2450
    %v2611 = vpop.f32.mrb[0].mxu0
    %v2612 = vadd.f32 0.0, %v2611
    %v2613 = vpop.f32.mrb[0].mxu0
    %2614 = vmatprep.mubr.f32.mxu0 0.0
    %2615 = vmatmul.mubr.f32.gmra.mrb[0].mxu0 %v2453
    %v2616 = vpop.f32.mrb[0].mxu0
    %v2617 = vadd.f32 0.0, %v2616
    %v2618 = vpop.f32.mrb[0].mxu0
    %2619 = vdwg.mxu0
    %v2620 = vmul.f32 %v2522, %v2607
    %v2621 = vmul.f32 %v2527, %v2612
    %v2622 = vadd.f32 %v2620, %v2621
    %v2623 = vmul.f32 %v2532, %v2617
    %v2624 = vadd.f32 %v2622, %v2623
    %v2625 = vmul.f32 %v2607, %v2607
    %v2626 = vmul.f32 %v2612, %v2612
    %v2627 = vadd.f32 %v2625, %v2626
    %v2628 = vmul.f32 %v2617, %v2617
    %v2629 = vadd.f32 %v2627, %v2628
    %v2630 = vrsqrt.pop %v2629
    %v2631 = vmul.f32 %v2629, %v2630
    %vm2632 = vcmp.eq.f32.partialorder %v2629, inf
    %v2633 = vsel %vm2632, %v2629, %v2631
    %vm2634 = vcmp.eq.f32.partialorder %v2629, 0.0
    %v2635 = vand.u32 %v2629, 2147483648
    %v2636 = vsel %vm2634, %v2635, %v2633
    %s2637 = scalar_lea.vmem %s16, 32
    %v2638 = vld [vmem:[%s2637] sm:$0xff]
    %v2639 = vld [vmem:[%s2637 + $0x8] sm:$0xff]
    %v2640 = vld [vmem:[%s2637 + $0x10] sm:$0xff]
    %v2641 = vld [vmem:[%s2637 + $0x18] sm:$0xff]
    %s2642 = scalar_lea.vmem %s17, 32
    %v2643 = vld [vmem:[%s2642] sm:$0xff]
    %v2644 = vld [vmem:[%s2642 + $0x8] sm:$0xff]
    %v2645 = vld [vmem:[%s2642 + $0x10] sm:$0xff]
    %v2646 = vld [vmem:[%s2642 + $0x18] sm:$0xff]
    %v2648 = vsel %vm721, %v2636, 0
    %2650 = vmatprep.subr.mxu0 0.0
    %2651 = vmatpush1.msra.mxu0 %v2643
    %2652 = vmatprep.subr.mxu0 0.0
    %2653 = vmatpush1.msra.mxu0 %v2644
    %2654 = vmatprep.subr.mxu0 0.0
    %2655 = vmatpush1.msra.mxu0 %v2645
    %2656 = vmatprep.subr.mxu0 0.0
    %2657 = vmatpush1.msra.mxu0 %v2646
    %2658 = vmatprep.subr.mxu0 0.0
    %2659 = vmatpush1.msra.mxu0 0.0
    %2660 = vmatprep.subr.mxu0 0.0
    %2661 = vmatpush1.msra.mxu0 0.0
    %2662 = vmatprep.subr.mxu0 0.0
    %2663 = vmatpush1.msra.mxu0 0.0
    %2664 = vmatprep.subr.mxu0 0.0
    %2665 = vmatpush1.msra.mxu0 0.0
    %2666 = vmatprep.subr.mxu0 0.0
    %2667 = vmatpush1.msra.mxu0 0.0
    %2668 = vmatprep.subr.mxu0 0.0
    %2669 = vmatpush1.msra.mxu0 0.0
    %2670 = vmatprep.subr.mxu0 0.0
    %2671 = vmatpush1.msra.mxu0 0.0
    %2672 = vmatprep.subr.mxu0 0.0
    %2673 = vmatpush1.msra.mxu0 0.0
    %2674 = vmatprep.subr.mxu0 0.0
    %2675 = vmatpush1.msra.mxu0 0.0
    %2676 = vmatprep.subr.mxu0 0.0
    %2677 = vmatpush1.msra.mxu0 0.0
    %2678 = vmatprep.subr.mxu0 0.0
    %2679 = vmatpush1.msra.mxu0 0.0
    %2680 = vmatprep.subr.mxu0 0.0
    %2681 = vmatpush1.msra.mxu0 0.0
    %2682 = vmatprep.subr.mxu0 0.0
    %2683 = vmatpush1.msra.mxu0 0.0
    %2684 = vmatprep.subr.mxu0 0.0
    %2685 = vmatpush1.msra.mxu0 0.0
    %2686 = vmatprep.subr.mxu0 0.0
    %2687 = vmatpush1.msra.mxu0 0.0
    %2688 = vmatprep.subr.mxu0 0.0
    %2689 = vmatpush1.msra.mxu0 0.0
    %2690 = vmatprep.subr.mxu0 0.0
    %2691 = vmatpush1.msra.mxu0 0.0
    %2692 = vmatprep.subr.mxu0 0.0
    %2693 = vmatpush1.msra.mxu0 0.0
    %2694 = vmatprep.subr.mxu0 0.0
    %2695 = vmatpush1.msra.mxu0 0.0
    %2696 = vmatprep.subr.mxu0 0.0
    %2697 = vmatpush1.msra.mxu0 0.0
    %2698 = vmatprep.subr.mxu0 0.0
    %2699 = vmatpush1.msra.mxu0 0.0
    %2700 = vmatprep.subr.mxu0 0.0
    %2701 = vmatpush1.msra.mxu0 0.0
    %2702 = vmatprep.subr.mxu0 0.0
    %2703 = vmatpush1.msra.mxu0 0.0
    %2704 = vmatprep.subr.mxu0 0.0
    %2705 = vmatpush1.msra.mxu0 0.0
    %2706 = vmatprep.subr.mxu0 0.0
    %2707 = vmatpush1.msra.mxu0 0.0
    %2708 = vmatprep.subr.mxu0 0.0
    %2709 = vmatpush1.msra.mxu0 0.0
    %2710 = vmatprep.subr.mxu0 0.0
    %2711 = vmatpush1.msra.mxu0 0.0
    %2712 = vmatprep.subr.mxu0 0.0
    %2713 = vmatpush1.msra.mxu0 0.0
    %2714 = vmatprep.mubr.f32.mxu0 0.0
    %2715 = vmatmul.mubr.f32.gmra.mrb[0].mxu0 %v2648
    %v2716 = vpop.f32.mrb[0].mxu0
    %v2717 = vadd.f32 0.0, %v2716
    %v2718 = vpop.f32.mrb[0].mxu0
    %2719 = vdwg.mxu0
    %v2721 = vsel %vm721, %v2220, 0
    %2723 = vmatprep.subr.mxu0 0.0
    %2724 = vmatpush1.msra.mxu0 %v2638
    %2725 = vmatprep.subr.mxu0 0.0
    %2726 = vmatpush1.msra.mxu0 %v2639
    %2727 = vmatprep.subr.mxu0 0.0
    %2728 = vmatpush1.msra.mxu0 %v2640
    %2729 = vmatprep.subr.mxu0 0.0
    %2730 = vmatpush1.msra.mxu0 %v2641
    %2731 = vmatprep.subr.mxu0 0.0
    %2732 = vmatpush1.msra.mxu0 0.0
    %2733 = vmatprep.subr.mxu0 0.0
    %2734 = vmatpush1.msra.mxu0 0.0
    %2735 = vmatprep.subr.mxu0 0.0
    %2736 = vmatpush1.msra.mxu0 0.0
    %2737 = vmatprep.subr.mxu0 0.0
    %2738 = vmatpush1.msra.mxu0 0.0
    %2739 = vmatprep.subr.mxu0 0.0
    %2740 = vmatpush1.msra.mxu0 0.0
    %2741 = vmatprep.subr.mxu0 0.0
    %2742 = vmatpush1.msra.mxu0 0.0
    %2743 = vmatprep.subr.mxu0 0.0
    %2744 = vmatpush1.msra.mxu0 0.0
    %2745 = vmatprep.subr.mxu0 0.0
    %2746 = vmatpush1.msra.mxu0 0.0
    %2747 = vmatprep.subr.mxu0 0.0
    %2748 = vmatpush1.msra.mxu0 0.0
    %2749 = vmatprep.subr.mxu0 0.0
    %2750 = vmatpush1.msra.mxu0 0.0
    %2751 = vmatprep.subr.mxu0 0.0
    %2752 = vmatpush1.msra.mxu0 0.0
    %2753 = vmatprep.subr.mxu0 0.0
    %2754 = vmatpush1.msra.mxu0 0.0
    %2755 = vmatprep.subr.mxu0 0.0
    %2756 = vmatpush1.msra.mxu0 0.0
    %2757 = vmatprep.subr.mxu0 0.0
    %2758 = vmatpush1.msra.mxu0 0.0
    %2759 = vmatprep.subr.mxu0 0.0
    %2760 = vmatpush1.msra.mxu0 0.0
    %2761 = vmatprep.subr.mxu0 0.0
    %2762 = vmatpush1.msra.mxu0 0.0
    %2763 = vmatprep.subr.mxu0 0.0
    %2764 = vmatpush1.msra.mxu0 0.0
    %2765 = vmatprep.subr.mxu0 0.0
    %2766 = vmatpush1.msra.mxu0 0.0
    %2767 = vmatprep.subr.mxu0 0.0
    %2768 = vmatpush1.msra.mxu0 0.0
    %2769 = vmatprep.subr.mxu0 0.0
    %2770 = vmatpush1.msra.mxu0 0.0
    %2771 = vmatprep.subr.mxu0 0.0
    %2772 = vmatpush1.msra.mxu0 0.0
    %2773 = vmatprep.subr.mxu0 0.0
    %2774 = vmatpush1.msra.mxu0 0.0
    %2775 = vmatprep.subr.mxu0 0.0
    %2776 = vmatpush1.msra.mxu0 0.0
    %2777 = vmatprep.subr.mxu0 0.0
    %2778 = vmatpush1.msra.mxu0 0.0
    %2779 = vmatprep.subr.mxu0 0.0
    %2780 = vmatpush1.msra.mxu0 0.0
    %2781 = vmatprep.subr.mxu0 0.0
    %2782 = vmatpush1.msra.mxu0 0.0
    %2783 = vmatprep.subr.mxu0 0.0
    %2784 = vmatpush1.msra.mxu0 0.0
    %2785 = vmatprep.subr.mxu0 0.0
    %2786 = vmatpush1.msra.mxu0 0.0
    %2787 = vmatprep.mubr.f32.mxu0 0.0
    %2788 = vmatmul.mubr.f32.gmra.mrb[0].mxu0 %v2721
    %v2789 = vpop.f32.mrb[0].mxu0
    %v2790 = vadd.f32 %v2717, %v2789
    %v2791 = vpop.f32.mrb[0].mxu0
    %2792 = vdwg.mxu0
    %s2793 = scalar_lea.vmem %s18, 1
    %v2794 = vld [vmem:[%s2793] sm:$0x1]
    %v2796 = vlaneseq
    %v2797 = vshrl.u32 %v2796, 7
    %v2798 = vsub.s32 0, %v2797
    %v2799 = vrot.slane %v2794, %v2798
    %v2801 = vadd.f32 %v2790, %v2799
    %v2802 = vxor.u32 %v2801, 2147483648
    %v2803 = vmul.f32 %v2802, 1.442695
    %v2804 = vpow.pop %v2803
    %v2805 = vadd.f32 %v2804, 1.0
    %v2806 = vrcp.pop %v2805
    %v2807 = vmul.f32 1.0, %v2806
    %v2808 = vmul.f32 %v2801, %v2807
    %s2809 = scalar_lea.vmem [#allocation7], 32
    %v2810 = vld [vmem:[%s2809] sm:$0xff]
    %v2811 = vld [vmem:[%s2809 + $0x8] sm:$0xff]
    %v2812 = vld [vmem:[%s2809 + $0x10] sm:$0xff]
    %v2813 = vld [vmem:[%s2809 + $0x18] sm:$0xff]
    %s2814 = scalar_lea.vmem %s20, 1
    %v2815 = vld [vmem:[%s2814] sm:$0x1]
    %v2817 = vlaneseq
    %v2818 = vshrl.u32 %v2817, 7
    %v2819 = vsub.s32 0, %v2818
    %v2820 = vrot.slane %v2815, %v2819
    %v2823 = vsel %vm721, %v2808, 0
    %2825 = vmatprep.subr.mxu0 0.0
    %2826 = vmatpush1.msra.mxu0 %v2810
    %2827 = vmatprep.subr.mxu0 0.0
    %2828 = vmatpush1.msra.mxu0 %v2811
    %2829 = vmatprep.subr.mxu0 0.0
    %2830 = vmatpush1.msra.mxu0 %v2812
    %2831 = vmatprep.subr.mxu0 0.0
    %2832 = vmatpush1.msra.mxu0 %v2813
    %2833 = vmatprep.subr.mxu0 0.0
    %2834 = vmatpush1.msra.mxu0 0.0
    %2835 = vmatprep.subr.mxu0 0.0
    %2836 = vmatpush1.msra.mxu0 0.0
    %2837 = vmatprep.subr.mxu0 0.0
    %2838 = vmatpush1.msra.mxu0 0.0
    %2839 = vmatprep.subr.mxu0 0.0
    %2840 = vmatpush1.msra.mxu0 0.0
    %2841 = vmatprep.subr.mxu0 0.0
    %2842 = vmatpush1.msra.mxu0 0.0
    %2843 = vmatprep.subr.mxu0 0.0
    %2844 = vmatpush1.msra.mxu0 0.0
    %2845 = vmatprep.subr.mxu0 0.0
    %2846 = vmatpush1.msra.mxu0 0.0
    %2847 = vmatprep.subr.mxu0 0.0
    %2848 = vmatpush1.msra.mxu0 0.0
    %2849 = vmatprep.subr.mxu0 0.0
    %2850 = vmatpush1.msra.mxu0 0.0
    %2851 = vmatprep.subr.mxu0 0.0
    %2852 = vmatpush1.msra.mxu0 0.0
    %2853 = vmatprep.subr.mxu0 0.0
    %2854 = vmatpush1.msra.mxu0 0.0
    %2855 = vmatprep.subr.mxu0 0.0
    %2856 = vmatpush1.msra.mxu0 0.0
    %2857 = vmatprep.subr.mxu0 0.0
    %2858 = vmatpush1.msra.mxu0 0.0
    %2859 = vmatprep.subr.mxu0 0.0
    %2860 = vmatpush1.msra.mxu0 0.0
    %2861 = vmatprep.subr.mxu0 0.0
    %2862 = vmatpush1.msra.mxu0 0.0
    %2863 = vmatprep.subr.mxu0 0.0
    %2864 = vmatpush1.msra.mxu0 0.0
    %2865 = vmatprep.subr.mxu0 0.0
    %2866 = vmatpush1.msra.mxu0 0.0
    %2867 = vmatprep.subr.mxu0 0.0
    %2868 = vmatpush1.msra.mxu0 0.0
    %2869 = vmatprep.subr.mxu0 0.0
    %2870 = vmatpush1.msra.mxu0 0.0
    %2871 = vmatprep.subr.mxu0 0.0
    %2872 = vmatpush1.msra.mxu0 0.0
    %2873 = vmatprep.subr.mxu0 0.0
    %2874 = vmatpush1.msra.mxu0 0.0
    %2875 = vmatprep.subr.mxu0 0.0
    %2876 = vmatpush1.msra.mxu0 0.0
    %2877 = vmatprep.subr.mxu0 0.0
    %2878 = vmatpush1.msra.mxu0 0.0
    %2879 = vmatprep.subr.mxu0 0.0
    %2880 = vmatpush1.msra.mxu0 0.0
    %2881 = vmatprep.subr.mxu0 0.0
    %2882 = vmatpush1.msra.mxu0 0.0
    %2883 = vmatprep.subr.mxu0 0.0
    %2884 = vmatpush1.msra.mxu0 0.0
    %2885 = vmatprep.subr.mxu0 0.0
    %2886 = vmatpush1.msra.mxu0 0.0
    %2887 = vmatprep.subr.mxu0 0.0
    %2888 = vmatpush1.msra.mxu0 0.0
    %2889 = vmatprep.mubr.f32.mxu0 0.0
    %2890 = vmatmul.mubr.f32.gmra.mrb[0].mxu0 %v2823
    %v2891 = vpop.f32.mrb[0].mxu0
    %v2892 = vadd.f32 %v2820, %v2891
    %v2893 = vpop.f32.mrb[0].mxu0
    %2894 = vdwg.mxu0
    %2896 = vrot.lane.b32.xlu0 %v2624, 32
    %v2897 = vpop.permute.xlu0 %2896
    %v2899 = vmul.f32 %v2892, %v2897
    %2901 = vrot.lane.b32.xlu0 %v2899, 96
    %v2902 = vpop.permute.xlu0 %2901
    %v2904 = vadd.f32 %v2220, %v2902
    %2906 = vrot.lane.b32.xlu0 %v2892, 64
    %v2907 = vpop.permute.xlu0 %2906
    %v2909 = vadd.f32 %v2904, %v2907
    %v2910 = vmul.f32 %v2522, %v2892
    %v2911 = vmul.f32 %v2527, %v2892
    %v2912 = vmul.f32 %v2532, %v2892
    %v2913 = vadd.f32 %v2438, %v2910
    %v2914 = vadd.f32 %v2439, %v2911
    %v2915 = vadd.f32 %v2440, %v2912
    %s2916 = scalar_lea.vmem [#allocation5], 48
    %v2917 = vld [vmem:[%s2916] sm:$0xff]
    %v2918 = vld [vmem:[%s2916 + $0x8] sm:$0xff]
    %v2919 = vld [vmem:[%s2916 + $0x10] sm:$0xf]
    %s2920 = scalar_lea.vmem %s13, 2
    %v2921 = vld [vmem:[%s2920] sm:$0x1]
    %v2923 = vlaneseq
    %v2924 = vshrl.u32 %v2923, 7
    %v2925 = vsub.s32 0, %v2924
    %v2926 = vrot.slane %v2921, %v2925
    %v2929 = vsel %vm629, %v2919, 0
    %2931 = vmatprep.subr.mxu0 0.0
    %2932 = vmatpush1.msra.mxu0 %v2917
    %2933 = vmatprep.subr.mxu0 0.0
    %2934 = vmatpush1.msra.mxu0 %v2918
    %2935 = vmatprep.subr.mxu0 0.0
    %2936 = vmatpush1.msra.mxu0 %v2929
    %2937 = vmatprep.subr.mxu0 0.0
    %2938 = vmatpush1.msra.mxu0 0.0
    %2939 = vmatprep.subr.mxu0 0.0
    %2940 = vmatpush1.msra.mxu0 0.0
    %2941 = vmatprep.subr.mxu0 0.0
    %2942 = vmatpush1.msra.mxu0 0.0
    %2943 = vmatprep.subr.mxu0 0.0
    %2944 = vmatpush1.msra.mxu0 0.0
    %2945 = vmatprep.subr.mxu0 0.0
    %2946 = vmatpush1.msra.mxu0 0.0
    %2947 = vmatprep.subr.mxu0 0.0
    %2948 = vmatpush1.msra.mxu0 0.0
    %2949 = vmatprep.subr.mxu0 0.0
    %2950 = vmatpush1.msra.mxu0 0.0
    %2951 = vmatprep.subr.mxu0 0.0
    %2952 = vmatpush1.msra.mxu0 0.0
    %2953 = vmatprep.subr.mxu0 0.0
    %2954 = vmatpush1.msra.mxu0 0.0
    %2955 = vmatprep.subr.mxu0 0.0
    %2956 = vmatpush1.msra.mxu0 0.0
    %2957 = vmatprep.subr.mxu0 0.0
    %2958 = vmatpush1.msra.mxu0 0.0
    %2959 = vmatprep.subr.mxu0 0.0
    %2960 = vmatpush1.msra.mxu0 0.0
    %2961 = vmatprep.subr.mxu0 0.0
    %2962 = vmatpush1.msra.mxu0 0.0
    %2963 = vmatprep.subr.mxu0 0.0
    %2964 = vmatpush1.msra.mxu0 0.0
    %2965 = vmatprep.subr.mxu0 0.0
    %2966 = vmatpush1.msra.mxu0 0.0
    %2967 = vmatprep.subr.mxu0 0.0
    %2968 = vmatpush1.msra.mxu0 0.0
    %2969 = vmatprep.subr.mxu0 0.0
    %2970 = vmatpush1.msra.mxu0 0.0
    %2971 = vmatprep.subr.mxu0 0.0
    %2972 = vmatpush1.msra.mxu0 0.0
    %2973 = vmatprep.subr.mxu0 0.0
    %2974 = vmatpush1.msra.mxu0 0.0
    %2975 = vmatprep.subr.mxu0 0.0
    %2976 = vmatpush1.msra.mxu0 0.0
    %2977 = vmatprep.subr.mxu0 0.0
    %2978 = vmatpush1.msra.mxu0 0.0
    %2979 = vmatprep.subr.mxu0 0.0
    %2980 = vmatpush1.msra.mxu0 0.0
    %2981 = vmatprep.subr.mxu0 0.0
    %2982 = vmatpush1.msra.mxu0 0.0
    %2983 = vmatprep.subr.mxu0 0.0
    %2984 = vmatpush1.msra.mxu0 0.0
    %2985 = vmatprep.subr.mxu0 0.0
    %2986 = vmatpush1.msra.mxu0 0.0
    %2987 = vmatprep.subr.mxu0 0.0
    %2988 = vmatpush1.msra.mxu0 0.0
    %2989 = vmatprep.subr.mxu0 0.0
    %2990 = vmatpush1.msra.mxu0 0.0
    %2991 = vmatprep.subr.mxu0 0.0
    %2992 = vmatpush1.msra.mxu0 0.0
    %2993 = vmatprep.subr.mxu0 0.0
    %2994 = vmatpush1.msra.mxu0 0.0
    %2995 = vmatprep.mubr.f32.mxu0 0.0
    %2996 = vmatmul.mubr.f32.gmra.mrb[0].mxu0 %v624
    %v2997 = vpop.f32.mrb[0].mxu0
    %v2998 = vadd.f32 %v2926, %v2997
    %v2999 = vpop.f32.mrb[0].mxu0
    %3000 = vmatprep.mubr.f32.mxu0 0.0
    %3001 = vmatmul.mubr.f32.gmra.mrb[0].mxu0 %v627
    %v3002 = vpop.f32.mrb[0].mxu0
    %v3003 = vadd.f32 %v2926, %v3002
    %v3004 = vpop.f32.mrb[0].mxu0
    %3005 = vdwg.mxu0
    %v3006 = vmul.f32 %v2998, %v598
    %v3007 = vmul.f32 %v3003, %v599
    %s3008 = scalar_lea.vmem %s8, 64
    %v3009 = vld [vmem:[%s3008] sm:$0xff]
    %v3010 = vld [vmem:[%s3008 + $0x8] sm:$0xff]
    %v3011 = vld [vmem:[%s3008 + $0x10] sm:$0xff]
    %v3012 = vld [vmem:[%s3008 + $0x18] sm:$0xff]
    %s3013 = scalar_lea.vmem %s9, 2
    %v3014 = vld [vmem:[%s3013] sm:$0x1]
    %v3016 = vlaneseq
    %v3017 = vshrl.u32 %v3016, 7
    %v3018 = vsub.s32 0, %v3017
    %v3019 = vrot.slane %v3014, %v3018
    %v3022 = vsel %vm721, %v2909, 0
    %3024 = vmatprep.subr.mxu0 0.0
    %3025 = vmatpush1.msra.mxu0 %v3009
    %3026 = vmatprep.subr.mxu0 0.0
    %3027 = vmatpush1.msra.mxu0 %v3010
    %3028 = vmatprep.subr.mxu0 0.0
    %3029 = vmatpush1.msra.mxu0 %v3011
    %3030 = vmatprep.subr.mxu0 0.0
    %3031 = vmatpush1.msra.mxu0 %v3012
    %3032 = vmatprep.subr.mxu0 0.0
    %3033 = vmatpush1.msra.mxu0 0.0
    %3034 = vmatprep.subr.mxu0 0.0
    %3035 = vmatpush1.msra.mxu0 0.0
    %3036 = vmatprep.subr.mxu0 0.0
    %3037 = vmatpush1.msra.mxu0 0.0
    %3038 = vmatprep.subr.mxu0 0.0
    %3039 = vmatpush1.msra.mxu0 0.0
    %3040 = vmatprep.subr.mxu0 0.0
    %3041 = vmatpush1.msra.mxu0 0.0
    %3042 = vmatprep.subr.mxu0 0.0
    %3043 = vmatpush1.msra.mxu0 0.0
    %3044 = vmatprep.subr.mxu0 0.0
    %3045 = vmatpush1.msra.mxu0 0.0
    %3046 = vmatprep.subr.mxu0 0.0
    %3047 = vmatpush1.msra.mxu0 0.0
    %3048 = vmatprep.subr.mxu0 0.0
    %3049 = vmatpush1.msra.mxu0 0.0
    %3050 = vmatprep.subr.mxu0 0.0
    %3051 = vmatpush1.msra.mxu0 0.0
    %3052 = vmatprep.subr.mxu0 0.0
    %3053 = vmatpush1.msra.mxu0 0.0
    %3054 = vmatprep.subr.mxu0 0.0
    %3055 = vmatpush1.msra.mxu0 0.0
    %3056 = vmatprep.subr.mxu0 0.0
    %3057 = vmatpush1.msra.mxu0 0.0
    %3058 = vmatprep.subr.mxu0 0.0
    %3059 = vmatpush1.msra.mxu0 0.0
    %3060 = vmatprep.subr.mxu0 0.0
    %3061 = vmatpush1.msra.mxu0 0.0
    %3062 = vmatprep.subr.mxu0 0.0
    %3063 = vmatpush1.msra.mxu0 0.0
    %3064 = vmatprep.subr.mxu0 0.0
    %3065 = vmatpush1.msra.mxu0 0.0
    %3066 = vmatprep.subr.mxu0 0.0
    %3067 = vmatpush1.msra.mxu0 0.0
    %3068 = vmatprep.subr.mxu0 0.0
    %3069 = vmatpush1.msra.mxu0 0.0
    %3070 = vmatprep.subr.mxu0 0.0
    %3071 = vmatpush1.msra.mxu0 0.0
    %3072 = vmatprep.subr.mxu0 0.0
    %3073 = vmatpush1.msra.mxu0 0.0
    %3074 = vmatprep.subr.mxu0 0.0
    %3075 = vmatpush1.msra.mxu0 0.0
    %3076 = vmatprep.subr.mxu0 0.0
    %3077 = vmatpush1.msra.mxu0 0.0
    %3078 = vmatprep.subr.mxu0 0.0
    %3079 = vmatpush1.msra.mxu0 0.0
    %3080 = vmatprep.subr.mxu0 0.0
    %3081 = vmatpush1.msra.mxu0 0.0
    %3082 = vmatprep.subr.mxu0 0.0
    %3083 = vmatpush1.msra.mxu0 0.0
    %3084 = vmatprep.subr.mxu0 0.0
    %3085 = vmatpush1.msra.mxu0 0.0
    %3086 = vmatprep.subr.mxu0 0.0
    %3087 = vmatpush1.msra.mxu0 0.0
    %3088 = vmatprep.mubr.f32.mxu0 0.0
    %3089 = vmatmul.mubr.f32.gmra.mrb[0].mxu0 %v3022
    %v3090 = vpop.f32.mrb[0].mxu0
    %v3091 = vadd.f32 %v3019, %v3090
    %v3092 = vpop.f32.mrb[0].mxu0
    %3093 = vdwg.mxu0
    %v3094 = vxor.u32 %v3091, 2147483648
    %v3095 = vmul.f32 %v3094, 1.442695
    %v3096 = vpow.pop %v3095
    %v3097 = vadd.f32 %v3096, 1.0
    %v3098 = vrcp.pop %v3097
    %v3099 = vmul.f32 1.0, %v3098
    %v3100 = vmul.f32 %v3091, %v3099
    %s3101 = scalar_lea.vmem %s10, 64
    %v3102 = vld [vmem:[%s3101] sm:$0xff]
    %v3103 = vld [vmem:[%s3101 + $0x8] sm:$0xff]
    %v3104 = vld [vmem:[%s3101 + $0x10] sm:$0xff]
    %v3105 = vld [vmem:[%s3101 + $0x18] sm:$0xff]
    %s3106 = scalar_lea.vmem %s11, 2
    %v3107 = vld [vmem:[%s3106] sm:$0x1]
    %v3109 = vlaneseq
    %v3110 = vshrl.u32 %v3109, 7
    %v3111 = vsub.s32 0, %v3110
    %v3112 = vrot.slane %v3107, %v3111
    %v3115 = vsel %vm721, %v3100, 0
    %3117 = vmatprep.subr.mxu0 0.0
    %3118 = vmatpush1.msra.mxu0 %v3102
    %3119 = vmatprep.subr.mxu0 0.0
    %3120 = vmatpush1.msra.mxu0 %v3103
    %3121 = vmatprep.subr.mxu0 0.0
    %3122 = vmatpush1.msra.mxu0 %v3104
    %3123 = vmatprep.subr.mxu0 0.0
    %3124 = vmatpush1.msra.mxu0 %v3105
    %3125 = vmatprep.subr.mxu0 0.0
    %3126 = vmatpush1.msra.mxu0 0.0
    %3127 = vmatprep.subr.mxu0 0.0
    %3128 = vmatpush1.msra.mxu0 0.0
    %3129 = vmatprep.subr.mxu0 0.0
    %3130 = vmatpush1.msra.mxu0 0.0
    %3131 = vmatprep.subr.mxu0 0.0
    %3132 = vmatpush1.msra.mxu0 0.0
    %3133 = vmatprep.subr.mxu0 0.0
    %3134 = vmatpush1.msra.mxu0 0.0
    %3135 = vmatprep.subr.mxu0 0.0
    %3136 = vmatpush1.msra.mxu0 0.0
    %3137 = vmatprep.subr.mxu0 0.0
    %3138 = vmatpush1.msra.mxu0 0.0
    %3139 = vmatprep.subr.mxu0 0.0
    %3140 = vmatpush1.msra.mxu0 0.0
    %3141 = vmatprep.subr.mxu0 0.0
    %3142 = vmatpush1.msra.mxu0 0.0
    %3143 = vmatprep.subr.mxu0 0.0
    %3144 = vmatpush1.msra.mxu0 0.0
    %3145 = vmatprep.subr.mxu0 0.0
    %3146 = vmatpush1.msra.mxu0 0.0
    %3147 = vmatprep.subr.mxu0 0.0
    %3148 = vmatpush1.msra.mxu0 0.0
    %3149 = vmatprep.subr.mxu0 0.0
    %3150 = vmatpush1.msra.mxu0 0.0
    %3151 = vmatprep.subr.mxu0 0.0
    %3152 = vmatpush1.msra.mxu0 0.0
    %3153 = vmatprep.subr.mxu0 0.0
    %3154 = vmatpush1.msra.mxu0 0.0
    %3155 = vmatprep.subr.mxu0 0.0
    %3156 = vmatpush1.msra.mxu0 0.0
    %3157 = vmatprep.subr.mxu0 0.0
    %3158 = vmatpush1.msra.mxu0 0.0
    %3159 = vmatprep.subr.mxu0 0.0
    %3160 = vmatpush1.msra.mxu0 0.0
    %3161 = vmatprep.subr.mxu0 0.0
    %3162 = vmatpush1.msra.mxu0 0.0
    %3163 = vmatprep.subr.mxu0 0.0
    %3164 = vmatpush1.msra.mxu0 0.0
    %3165 = vmatprep.subr.mxu0 0.0
    %3166 = vmatpush1.msra.mxu0 0.0
    %3167 = vmatprep.subr.mxu0 0.0
    %3168 = vmatpush1.msra.mxu0 0.0
    %3169 = vmatprep.subr.mxu0 0.0
    %3170 = vmatpush1.msra.mxu0 0.0
    %3171 = vmatprep.subr.mxu0 0.0
    %3172 = vmatpush1.msra.mxu0 0.0
    %3173 = vmatprep.subr.mxu0 0.0
    %3174 = vmatpush1.msra.mxu0 0.0
    %3175 = vmatprep.subr.mxu0 0.0
    %3176 = vmatpush1.msra.mxu0 0.0
    %3177 = vmatprep.subr.mxu0 0.0
    %3178 = vmatpush1.msra.mxu0 0.0
    %3179 = vmatprep.subr.mxu0 0.0
    %3180 = vmatpush1.msra.mxu0 0.0
    %3181 = vmatprep.mubr.f32.mxu0 0.0
    %3182 = vmatmul.mubr.f32.gmra.mrb[0].mxu0 %v3115
    %v3183 = vpop.f32.mrb[0].mxu0
    %v3184 = vadd.f32 %v3112, %v3183
    %v3185 = vpop.f32.mrb[0].mxu0
    %3186 = vdwg.mxu0
    %3187 = vmatprep.subr.mxu0 0.0
    %3188 = vmatpush1.msra.mxu0 %v3184
    %3189 = vmatprep.subr.mxu0 0.0
    %3190 = vmatpush1.msra.mxu0 0.0
    %3191 = vmatprep.subr.mxu0 0.0
    %3192 = vmatpush1.msra.mxu0 0.0
    %3193 = vmatprep.subr.mxu0 0.0
    %3194 = vmatpush1.msra.mxu0 0.0
    %3195 = vmatprep.subr.mxu0 0.0
    %3196 = vmatpush1.msra.mxu0 0.0
    %3197 = vmatprep.subr.mxu0 0.0
    %3198 = vmatpush1.msra.mxu0 0.0
    %3199 = vmatprep.subr.mxu0 0.0
    %3200 = vmatpush1.msra.mxu0 0.0
    %3201 = vmatprep.subr.mxu0 0.0
    %3202 = vmatpush1.msra.mxu0 0.0
    %3203 = vmatprep.subr.mxu0 0.0
    %3204 = vmatpush1.msra.mxu0 0.0
    %3205 = vmatprep.subr.mxu0 0.0
    %3206 = vmatpush1.msra.mxu0 0.0
    %3207 = vmatprep.subr.mxu0 0.0
    %3208 = vmatpush1.msra.mxu0 0.0
    %3209 = vmatprep.subr.mxu0 0.0
    %3210 = vmatpush1.msra.mxu0 0.0
    %3211 = vmatprep.subr.mxu0 0.0
    %3212 = vmatpush1.msra.mxu0 0.0
    %3213 = vmatprep.subr.mxu0 0.0
    %3214 = vmatpush1.msra.mxu0 0.0
    %3215 = vmatprep.subr.mxu0 0.0
    %3216 = vmatpush1.msra.mxu0 0.0
    %3217 = vmatprep.subr.mxu0 0.0
    %3218 = vmatpush1.msra.mxu0 0.0
    %3219 = vmatprep.subr.mxu0 0.0
    %3220 = vmatpush1.msra.mxu0 0.0
    %3221 = vmatprep.subr.mxu0 0.0
    %3222 = vmatpush1.msra.mxu0 0.0
    %3223 = vmatprep.subr.mxu0 0.0
    %3224 = vmatpush1.msra.mxu0 0.0
    %3225 = vmatprep.subr.mxu0 0.0
    %3226 = vmatpush1.msra.mxu0 0.0
    %3227 = vmatprep.subr.mxu0 0.0
    %3228 = vmatpush1.msra.mxu0 0.0
    %3229 = vmatprep.subr.mxu0 0.0
    %3230 = vmatpush1.msra.mxu0 0.0
    %3231 = vmatprep.subr.mxu0 0.0
    %3232 = vmatpush1.msra.mxu0 0.0
    %3233 = vmatprep.subr.mxu0 0.0
    %3234 = vmatpush1.msra.mxu0 0.0
    %3235 = vmatprep.subr.mxu0 0.0
    %3236 = vmatpush1.msra.mxu0 0.0
    %3237 = vmatprep.subr.mxu0 0.0
    %3238 = vmatpush1.msra.mxu0 0.0
    %3239 = vmatprep.subr.mxu0 0.0
    %3240 = vmatpush1.msra.mxu0 0.0
    %3241 = vmatprep.subr.mxu0 0.0
    %3242 = vmatpush1.msra.mxu0 0.0
    %3243 = vmatprep.subr.mxu0 0.0
    %3244 = vmatpush1.msra.mxu0 0.0
    %3245 = vmatprep.subr.mxu0 0.0
    %3246 = vmatpush1.msra.mxu0 0.0
    %3247 = vmatprep.subr.mxu0 0.0
    %3248 = vmatpush1.msra.mxu0 0.0
    %3249 = vmatprep.subr.mxu0 0.0
    %3250 = vmatpush1.msra.mxu0 0.0
    %3251 = vmatprep.mubr.f32.mxu0 0.0
    %3252 = vmatmul.mubr.f32.gmra.mrb[0].mxu0 %v888
    %v3253 = vpop.f32.mrb[0].mxu0
    %v3254 = vadd.f32 0.0, %v3253
    %v3255 = vpop.f32.mrb[0].mxu0
    %3256 = vmatprep.mubr.f32.mxu0 0.0
    %3257 = vmatmul.mubr.f32.gmra.mrb[0].mxu0 %v891
    %v3258 = vpop.f32.mrb[0].mxu0
    %v3259 = vadd.f32 0.0, %v3258
    %v3260 = vpop.f32.mrb[0].mxu0
    %3261 = vdwg.mxu0
    %v3262 = vmul.f32 %v3254, %v3006
    %v3263 = vmul.f32 %v3259, %v3007
    %3266 = vrot.lane.b32.xlu0 %v3262, 96
    %v3267 = vpop.permute.xlu0 %3266
    %3268 = vrot.lane.b32.xlu0 %v3263, 96
    %v3269 = vpop.permute.xlu0 %3268
    %3272 = vmatprep.subr.mxu0 0.0
    %3273 = vmatpush1.msra.mxu0 %v3267
    %3274 = vmatprep.subr.mxu0 0.0
    %3275 = vmatpush1.msra.mxu0 %v3269
    %3276 = vmatprep.subr.mxu0 0.0
    %3277 = vmatpush1.msra.mxu0 0.0
    %3278 = vmatprep.subr.mxu0 0.0
    %3279 = vmatpush1.msra.mxu0 0.0
    %3280 = vmatprep.subr.mxu0 0.0
    %3281 = vmatpush1.msra.mxu0 0.0
    %3282 = vmatprep.subr.mxu0 0.0
    %3283 = vmatpush1.msra.mxu0 0.0
    %3284 = vmatprep.subr.mxu0 0.0
    %3285 = vmatpush1.msra.mxu0 0.0
    %3286 = vmatprep.subr.mxu0 0.0
    %3287 = vmatpush1.msra.mxu0 0.0
    %3288 = vmatprep.subr.mxu0 0.0
    %3289 = vmatpush1.msra.mxu0 0.0
    %3290 = vmatprep.subr.mxu0 0.0
    %3291 = vmatpush1.msra.mxu0 0.0
    %3292 = vmatprep.subr.mxu0 0.0
    %3293 = vmatpush1.msra.mxu0 0.0
    %3294 = vmatprep.subr.mxu0 0.0
    %3295 = vmatpush1.msra.mxu0 0.0
    %3296 = vmatprep.subr.mxu0 0.0
    %3297 = vmatpush1.msra.mxu0 0.0
    %3298 = vmatprep.subr.mxu0 0.0
    %3299 = vmatpush1.msra.mxu0 0.0
    %3300 = vmatprep.subr.mxu0 0.0
    %3301 = vmatpush1.msra.mxu0 0.0
    %3302 = vmatprep.subr.mxu0 0.0
    %3303 = vmatpush1.msra.mxu0 0.0
    %3304 = vmatprep.subr.mxu0 0.0
    %3305 = vmatpush1.msra.mxu0 0.0
    %3306 = vmatprep.subr.mxu0 0.0
    %3307 = vmatpush1.msra.mxu0 0.0
    %3308 = vmatprep.subr.mxu0 0.0
    %3309 = vmatpush1.msra.mxu0 0.0
    %3310 = vmatprep.subr.mxu0 0.0
    %3311 = vmatpush1.msra.mxu0 0.0
    %3312 = vmatprep.subr.mxu0 0.0
    %3313 = vmatpush1.msra.mxu0 0.0
    %3314 = vmatprep.subr.mxu0 0.0
    %3315 = vmatpush1.msra.mxu0 0.0
    %3316 = vmatprep.subr.mxu0 0.0
    %3317 = vmatpush1.msra.mxu0 0.0
    %3318 = vmatprep.subr.mxu0 0.0
    %3319 = vmatpush1.msra.mxu0 0.0
    %3320 = vmatprep.subr.mxu0 0.0
    %3321 = vmatpush1.msra.mxu0 0.0
    %3322 = vmatprep.subr.mxu0 0.0
    %3323 = vmatpush1.msra.mxu0 0.0
    %3324 = vmatprep.subr.mxu0 0.0
    %3325 = vmatpush1.msra.mxu0 0.0
    %3326 = vmatprep.subr.mxu0 0.0
    %3327 = vmatpush1.msra.mxu0 0.0
    %3328 = vmatprep.subr.mxu0 0.0
    %3329 = vmatpush1.msra.mxu0 0.0
    %3330 = vmatprep.subr.mxu0 0.0
    %3331 = vmatpush1.msra.mxu0 0.0
    %3332 = vmatprep.subr.mxu0 0.0
    %3333 = vmatpush1.msra.mxu0 0.0
    %3334 = vmatprep.subr.mxu0 0.0
    %3335 = vmatpush1.msra.mxu0 0.0
    %3336 = vmatprep.mubr.f32.mxu0 0.0
    %3337 = vmatmul.mubr.f32.gmra.mrb[0].mxu0 %v980
    %v3338 = vpop.f32.mrb[0].mxu0
    %v3339 = vadd.f32 0.0, %v3338
    %v3340 = vpop.f32.mrb[0].mxu0
    %3341 = vdwg.mxu0
    %v3342 = vadd.f32 %v2909, %v3339
    %3343 = vmatprep.subr.mxu0 0.0
    %3344 = vmatpush1.msra.mxu0 %v2913
    %3345 = vmatprep.subr.mxu0 0.0
    %3346 = vmatpush1.msra.mxu0 %v2914
    %3347 = vmatprep.subr.mxu0 0.0
    %3348 = vmatpush1.msra.mxu0 %v2915
    %3349 = vmatprep.subr.mxu0 0.0
    %3350 = vmatpush1.msra.mxu0 0.0
    %3351 = vmatprep.subr.mxu0 0.0
    %3352 = vmatpush1.msra.mxu0 0.0
    %3353 = vmatprep.subr.mxu0 0.0
    %3354 = vmatpush1.msra.mxu0 0.0
    %3355 = vmatprep.subr.mxu0 0.0
    %3356 = vmatpush1.msra.mxu0 0.0
    %3357 = vmatprep.subr.mxu0 0.0
    %3358 = vmatpush1.msra.mxu0 0.0
    %3359 = vmatprep.subr.mxu0 0.0
    %3360 = vmatpush1.msra.mxu0 0.0
    %3361 = vmatprep.subr.mxu0 0.0
    %3362 = vmatpush1.msra.mxu0 0.0
    %3363 = vmatprep.subr.mxu0 0.0
    %3364 = vmatpush1.msra.mxu0 0.0
    %3365 = vmatprep.subr.mxu0 0.0
    %3366 = vmatpush1.msra.mxu0 0.0
    %3367 = vmatprep.subr.mxu0 0.0
    %3368 = vmatpush1.msra.mxu0 0.0
    %3369 = vmatprep.subr.mxu0 0.0
    %3370 = vmatpush1.msra.mxu0 0.0
    %3371 = vmatprep.subr.mxu0 0.0
    %3372 = vmatpush1.msra.mxu0 0.0
    %3373 = vmatprep.subr.mxu0 0.0
    %3374 = vmatpush1.msra.mxu0 0.0
    %3375 = vmatprep.subr.mxu0 0.0
    %3376 = vmatpush1.msra.mxu0 0.0
    %3377 = vmatprep.subr.mxu0 0.0
    %3378 = vmatpush1.msra.mxu0 0.0
    %3379 = vmatprep.subr.mxu0 0.0
    %3380 = vmatpush1.msra.mxu0 0.0
    %3381 = vmatprep.subr.mxu0 0.0
    %3382 = vmatpush1.msra.mxu0 0.0
    %3383 = vmatprep.subr.mxu0 0.0
    %3384 = vmatpush1.msra.mxu0 0.0
    %3385 = vmatprep.subr.mxu0 0.0
    %3386 = vmatpush1.msra.mxu0 0.0
    %3387 = vmatprep.subr.mxu0 0.0
    %3388 = vmatpush1.msra.mxu0 0.0
    %3389 = vmatprep.subr.mxu0 0.0
    %3390 = vmatpush1.msra.mxu0 0.0
    %3391 = vmatprep.subr.mxu0 0.0
    %3392 = vmatpush1.msra.mxu0 0.0
    %3393 = vmatprep.subr.mxu0 0.0
    %3394 = vmatpush1.msra.mxu0 0.0
    %3395 = vmatprep.subr.mxu0 0.0
    %3396 = vmatpush1.msra.mxu0 0.0
    %3397 = vmatprep.subr.mxu0 0.0
    %3398 = vmatpush1.msra.mxu0 0.0
    %3399 = vmatprep.subr.mxu0 0.0
    %3400 = vmatpush1.msra.mxu0 0.0
    %3401 = vmatprep.subr.mxu0 0.0
    %3402 = vmatpush1.msra.mxu0 0.0
    %3403 = vmatprep.subr.mxu0 0.0
    %3404 = vmatpush1.msra.mxu0 0.0
    %3405 = vmatprep.subr.mxu0 0.0
    %3406 = vmatpush1.msra.mxu0 0.0
    %3407 = vmatprep.mubr.f32.mxu0 0.0
    %3408 = vmatmul.mubr.f32.gmra.mrb[0].mxu0 %v1055
    %v3409 = vpop.f32.mrb[0].mxu0
    %v3410 = vadd.f32 0.0, %v3409
    %v3411 = vpop.f32.mrb[0].mxu0
    %3412 = vmatprep.mubr.f32.mxu0 0.0
    %3413 = vmatmul.mubr.f32.gmra.mrb[0].mxu0 %v1058
    %v3414 = vpop.f32.mrb[0].mxu0
    %v3415 = vadd.f32 0.0, %v3414
    %v3416 = vpop.f32.mrb[0].mxu0
    %3417 = vmatprep.mubr.f32.mxu0 0.0
    %3418 = vmatmul.mubr.f32.gmra.mrb[0].mxu0 %v1061
    %v3419 = vpop.f32.mrb[0].mxu0
    %v3420 = vadd.f32 0.0, %v3419
    %v3421 = vpop.f32.mrb[0].mxu0
    %3422 = vmatprep.mubr.f32.mxu0 0.0
    %3423 = vmatmul.mubr.f32.gmra.mrb[0].mxu0 %v1064
    %v3424 = vpop.f32.mrb[0].mxu0
    %v3425 = vadd.f32 0.0, %v3424
    %v3426 = vpop.f32.mrb[0].mxu0
    %3427 = vmatprep.mubr.f32.mxu0 0.0
    %3428 = vmatmul.mubr.f32.gmra.mrb[0].mxu0 %v1067
    %v3429 = vpop.f32.mrb[0].mxu0
    %v3430 = vadd.f32 0.0, %v3429
    %v3431 = vpop.f32.mrb[0].mxu0
    %3432 = vmatprep.mubr.f32.mxu0 0.0
    %3433 = vmatmul.mubr.f32.gmra.mrb[0].mxu0 %v1070
    %v3434 = vpop.f32.mrb[0].mxu0
    %v3435 = vadd.f32 0.0, %v3434
    %v3436 = vpop.f32.mrb[0].mxu0
    %3437 = vdwg.mxu0
    %v3438 = vmul.f32 %v3262, %v3410
    %v3439 = vmul.f32 %v3263, %v3415
    %v3440 = vmul.f32 %v3262, %v3420
    %v3441 = vmul.f32 %v3263, %v3425
    %v3442 = vmul.f32 %v3262, %v3430
    %v3443 = vmul.f32 %v3263, %v3435
    %v3444 = vmul.f32 %v3262, %v1175
    %v3445 = vmul.f32 %v3263, %v1179
    %v3446 = vmul.f32 %v3262, %v1183
    %v3447 = vmul.f32 %v3263, %v1187
    %v3448 = vmul.f32 %v3262, %v1191
    %v3449 = vmul.f32 %v3263, %v1195
    %3456 = vrot.lane.b32.xlu0 %v3444, 64
    %v3457 = vpop.permute.xlu0 %3456
    %3458 = vrot.lane.b32.xlu0 %v3445, 64
    %v3459 = vpop.permute.xlu0 %3458
    %3460 = vrot.lane.b32.xlu0 %v3446, 64
    %v3461 = vpop.permute.xlu0 %3460
    %3462 = vrot.lane.b32.xlu0 %v3447, 64
    %v3463 = vpop.permute.xlu0 %3462
    %3464 = vrot.lane.b32.xlu0 %v3448, 64
    %v3465 = vpop.permute.xlu0 %3464
    %3466 = vrot.lane.b32.xlu0 %v3449, 64
    %v3467 = vpop.permute.xlu0 %3466
    %v3474 = vadd.f32 %v3438, %v3457
    %v3475 = vadd.f32 %v3439, %v3459
    %v3476 = vadd.f32 %v3440, %v3461
    %v3477 = vadd.f32 %v3441, %v3463
    %v3478 = vadd.f32 %v3442, %v3465
    %v3479 = vadd.f32 %v3443, %v3467
    %3480 = vmatprep.subr.mxu0 0.0
    %3481 = vmatpush1.msra.mxu0 %v3474
    %3482 = vmatprep.subr.mxu0 0.0
    %3483 = vmatpush1.msra.mxu0 %v3475
    %3484 = vmatprep.subr.mxu0 0.0
    %3485 = vmatpush1.msra.mxu0 %v3476
    %3486 = vmatprep.subr.mxu0 0.0
    %3487 = vmatpush1.msra.mxu0 %v3477
    %3488 = vmatprep.subr.mxu0 0.0
    %3489 = vmatpush1.msra.mxu0 %v3478
    %3490 = vmatprep.subr.mxu0 0.0
    %3491 = vmatpush1.msra.mxu0 %v3479
    %3492 = vmatprep.subr.mxu0 0.0
    %3493 = vmatpush1.msra.mxu0 0.0
    %3494 = vmatprep.subr.mxu0 0.0
    %3495 = vmatpush1.msra.mxu0 0.0
    %3496 = vmatprep.subr.mxu0 0.0
    %3497 = vmatpush1.msra.mxu0 0.0
    %3498 = vmatprep.subr.mxu0 0.0
    %3499 = vmatpush1.msra.mxu0 0.0
    %3500 = vmatprep.subr.mxu0 0.0
    %3501 = vmatpush1.msra.mxu0 0.0
    %3502 = vmatprep.subr.mxu0 0.0
    %3503 = vmatpush1.msra.mxu0 0.0
    %3504 = vmatprep.subr.mxu0 0.0
    %3505 = vmatpush1.msra.mxu0 0.0
    %3506 = vmatprep.subr.mxu0 0.0
    %3507 = vmatpush1.msra.mxu0 0.0
    %3508 = vmatprep.subr.mxu0 0.0
    %3509 = vmatpush1.msra.mxu0 0.0
    %3510 = vmatprep.subr.mxu0 0.0
    %3511 = vmatpush1.msra.mxu0 0.0
    %3512 = vmatprep.subr.mxu0 0.0
    %3513 = vmatpush1.msra.mxu0 0.0
    %3514 = vmatprep.subr.mxu0 0.0
    %3515 = vmatpush1.msra.mxu0 0.0
    %3516 = vmatprep.subr.mxu0 0.0
    %3517 = vmatpush1.msra.mxu0 0.0
    %3518 = vmatprep.subr.mxu0 0.0
    %3519 = vmatpush1.msra.mxu0 0.0
    %3520 = vmatprep.subr.mxu0 0.0
    %3521 = vmatpush1.msra.mxu0 0.0
    %3522 = vmatprep.subr.mxu0 0.0
    %3523 = vmatpush1.msra.mxu0 0.0
    %3524 = vmatprep.subr.mxu0 0.0
    %3525 = vmatpush1.msra.mxu0 0.0
    %3526 = vmatprep.subr.mxu0 0.0
    %3527 = vmatpush1.msra.mxu0 0.0
    %3528 = vmatprep.subr.mxu0 0.0
    %3529 = vmatpush1.msra.mxu0 0.0
    %3530 = vmatprep.subr.mxu0 0.0
    %3531 = vmatpush1.msra.mxu0 0.0
    %3532 = vmatprep.subr.mxu0 0.0
    %3533 = vmatpush1.msra.mxu0 0.0
    %3534 = vmatprep.subr.mxu0 0.0
    %3535 = vmatpush1.msra.mxu0 0.0
    %3536 = vmatprep.subr.mxu0 0.0
    %3537 = vmatpush1.msra.mxu0 0.0
    %3538 = vmatprep.subr.mxu0 0.0
    %3539 = vmatpush1.msra.mxu0 0.0
    %3540 = vmatprep.subr.mxu0 0.0
    %3541 = vmatpush1.msra.mxu0 0.0
    %3542 = vmatprep.subr.mxu0 0.0
    %3543 = vmatpush1.msra.mxu0 0.0
    %3544 = vmatprep.mubr.f32.mxu0 0.0
    %3545 = vmatmul.mubr.f32.gmra.mrb[0].mxu0 %v1235
    %v3546 = vpop.f32.mrb[0].mxu0
    %v3547 = vadd.f32 0.0, %v3546
    %v3548 = vpop.f32.mrb[0].mxu0
    %3549 = vmatprep.mubr.f32.mxu0 0.0
    %3550 = vmatmul.mubr.f32.gmra.mrb[0].mxu0 %v1238
    %v3551 = vpop.f32.mrb[0].mxu0
    %v3552 = vadd.f32 0.0, %v3551
    %v3553 = vpop.f32.mrb[0].mxu0
    %3554 = vmatprep.mubr.f32.mxu0 0.0
    %3555 = vmatmul.mubr.f32.gmra.mrb[0].mxu0 %v1241
    %v3556 = vpop.f32.mrb[0].mxu0
    %v3557 = vadd.f32 0.0, %v3556
    %v3558 = vpop.f32.mrb[0].mxu0
    %3559 = vdwg.mxu0
    %v3560 = vadd.f32 %v2913, %v3547
    %v3561 = vadd.f32 %v2914, %v3552
    %v3562 = vadd.f32 %v2915, %v3557
    %s3563 = scalar_lea.vmem %s14, 64
    %v3564 = vld [vmem:[%s3563] sm:$0xff]
    %v3565 = vld [vmem:[%s3563 + $0x8] sm:$0xff]
    %v3566 = vld [vmem:[%s3563 + $0x10] sm:$0xff]
    %v3567 = vld [vmem:[%s3563 + $0x18] sm:$0xff]
    %v3569 = vsel %vm721, %v3560, 0
    %v3572 = vsel %vm721, %v3561, 0
    %v3575 = vsel %vm721, %v3562, 0
    %3577 = vmatprep.subr.mxu0 0.0
    %3578 = vmatpush1.msra.mxu0 %v3564
    %3579 = vmatprep.subr.mxu0 0.0
    %3580 = vmatpush1.msra.mxu0 %v3565
    %3581 = vmatprep.subr.mxu0 0.0
    %3582 = vmatpush1.msra.mxu0 %v3566
    %3583 = vmatprep.subr.mxu0 0.0
    %3584 = vmatpush1.msra.mxu0 %v3567
    %3585 = vmatprep.subr.mxu0 0.0
    %3586 = vmatpush1.msra.mxu0 0.0
    %3587 = vmatprep.subr.mxu0 0.0
    %3588 = vmatpush1.msra.mxu0 0.0
    %3589 = vmatprep.subr.mxu0 0.0
    %3590 = vmatpush1.msra.mxu0 0.0
    %3591 = vmatprep.subr.mxu0 0.0
    %3592 = vmatpush1.msra.mxu0 0.0
    %3593 = vmatprep.subr.mxu0 0.0
    %3594 = vmatpush1.msra.mxu0 0.0
    %3595 = vmatprep.subr.mxu0 0.0
    %3596 = vmatpush1.msra.mxu0 0.0
    %3597 = vmatprep.subr.mxu0 0.0
    %3598 = vmatpush1.msra.mxu0 0.0
    %3599 = vmatprep.subr.mxu0 0.0
    %3600 = vmatpush1.msra.mxu0 0.0
    %3601 = vmatprep.subr.mxu0 0.0
    %3602 = vmatpush1.msra.mxu0 0.0
    %3603 = vmatprep.subr.mxu0 0.0
    %3604 = vmatpush1.msra.mxu0 0.0
    %3605 = vmatprep.subr.mxu0 0.0
    %3606 = vmatpush1.msra.mxu0 0.0
    %3607 = vmatprep.subr.mxu0 0.0
    %3608 = vmatpush1.msra.mxu0 0.0
    %3609 = vmatprep.subr.mxu0 0.0
    %3610 = vmatpush1.msra.mxu0 0.0
    %3611 = vmatprep.subr.mxu0 0.0
    %3612 = vmatpush1.msra.mxu0 0.0
    %3613 = vmatprep.subr.mxu0 0.0
    %3614 = vmatpush1.msra.mxu0 0.0
    %3615 = vmatprep.subr.mxu0 0.0
    %3616 = vmatpush1.msra.mxu0 0.0
    %3617 = vmatprep.subr.mxu0 0.0
    %3618 = vmatpush1.msra.mxu0 0.0
    %3619 = vmatprep.subr.mxu0 0.0
    %3620 = vmatpush1.msra.mxu0 0.0
    %3621 = vmatprep.subr.mxu0 0.0
    %3622 = vmatpush1.msra.mxu0 0.0
    %3623 = vmatprep.subr.mxu0 0.0
    %3624 = vmatpush1.msra.mxu0 0.0
    %3625 = vmatprep.subr.mxu0 0.0
    %3626 = vmatpush1.msra.mxu0 0.0
    %3627 = vmatprep.subr.mxu0 0.0
    %3628 = vmatpush1.msra.mxu0 0.0
    %3629 = vmatprep.subr.mxu0 0.0
    %3630 = vmatpush1.msra.mxu0 0.0
    %3631 = vmatprep.subr.mxu0 0.0
    %3632 = vmatpush1.msra.mxu0 0.0
    %3633 = vmatprep.subr.mxu0 0.0
    %3634 = vmatpush1.msra.mxu0 0.0
    %3635 = vmatprep.subr.mxu0 0.0
    %3636 = vmatpush1.msra.mxu0 0.0
    %3637 = vmatprep.subr.mxu0 0.0
    %3638 = vmatpush1.msra.mxu0 0.0
    %3639 = vmatprep.subr.mxu0 0.0
    %3640 = vmatpush1.msra.mxu0 0.0
    %3641 = vmatprep.mubr.f32.mxu0 0.0
    %3642 = vmatmul.mubr.f32.gmra.mrb[0].mxu0 %v3569
    %v3643 = vpop.f32.mrb[0].mxu0
    %v3644 = vadd.f32 0.0, %v3643
    %v3645 = vpop.f32.mrb[0].mxu0
    %3646 = vmatprep.mubr.f32.mxu0 0.0
    %3647 = vmatmul.mubr.f32.gmra.mrb[0].mxu0 %v3572
    %v3648 = vpop.f32.mrb[0].mxu0
    %v3649 = vadd.f32 0.0, %v3648
    %v3650 = vpop.f32.mrb[0].mxu0
    %3651 = vmatprep.mubr.f32.mxu0 0.0
    %3652 = vmatmul.mubr.f32.gmra.mrb[0].mxu0 %v3575
    %v3653 = vpop.f32.mrb[0].mxu0
    %v3654 = vadd.f32 0.0, %v3653
    %v3655 = vpop.f32.mrb[0].mxu0
    %3656 = vdwg.mxu0
    %s3657 = scalar_lea.vmem %s15, 64
    %v3658 = vld [vmem:[%s3657] sm:$0xff]
    %v3659 = vld [vmem:[%s3657 + $0x8] sm:$0xff]
    %v3660 = vld [vmem:[%s3657 + $0x10] sm:$0xff]
    %v3661 = vld [vmem:[%s3657 + $0x18] sm:$0xff]
    %3662 = vmatprep.subr.mxu0 0.0
    %3663 = vmatpush1.msra.mxu0 %v3658
    %3664 = vmatprep.subr.mxu0 0.0
    %3665 = vmatpush1.msra.mxu0 %v3659
    %3666 = vmatprep.subr.mxu0 0.0
    %3667 = vmatpush1.msra.mxu0 %v3660
    %3668 = vmatprep.subr.mxu0 0.0
    %3669 = vmatpush1.msra.mxu0 %v3661
    %3670 = vmatprep.subr.mxu0 0.0
    %3671 = vmatpush1.msra.mxu0 0.0
    %3672 = vmatprep.subr.mxu0 0.0
    %3673 = vmatpush1.msra.mxu0 0.0
    %3674 = vmatprep.subr.mxu0 0.0
    %3675 = vmatpush1.msra.mxu0 0.0
    %3676 = vmatprep.subr.mxu0 0.0
    %3677 = vmatpush1.msra.mxu0 0.0
    %3678 = vmatprep.subr.mxu0 0.0
    %3679 = vmatpush1.msra.mxu0 0.0
    %3680 = vmatprep.subr.mxu0 0.0
    %3681 = vmatpush1.msra.mxu0 0.0
    %3682 = vmatprep.subr.mxu0 0.0
    %3683 = vmatpush1.msra.mxu0 0.0
    %3684 = vmatprep.subr.mxu0 0.0
    %3685 = vmatpush1.msra.mxu0 0.0
    %3686 = vmatprep.subr.mxu0 0.0
    %3687 = vmatpush1.msra.mxu0 0.0
    %3688 = vmatprep.subr.mxu0 0.0
    %3689 = vmatpush1.msra.mxu0 0.0
    %3690 = vmatprep.subr.mxu0 0.0
    %3691 = vmatpush1.msra.mxu0 0.0
    %3692 = vmatprep.subr.mxu0 0.0
    %3693 = vmatpush1.msra.mxu0 0.0
    %3694 = vmatprep.subr.mxu0 0.0
    %3695 = vmatpush1.msra.mxu0 0.0
    %3696 = vmatprep.subr.mxu0 0.0
    %3697 = vmatpush1.msra.mxu0 0.0
    %3698 = vmatprep.subr.mxu0 0.0
    %3699 = vmatpush1.msra.mxu0 0.0
    %3700 = vmatprep.subr.mxu0 0.0
    %3701 = vmatpush1.msra.mxu0 0.0
    %3702 = vmatprep.subr.mxu0 0.0
    %3703 = vmatpush1.msra.mxu0 0.0
    %3704 = vmatprep.subr.mxu0 0.0
    %3705 = vmatpush1.msra.mxu0 0.0
    %3706 = vmatprep.subr.mxu0 0.0
    %3707 = vmatpush1.msra.mxu0 0.0
    %3708 = vmatprep.subr.mxu0 0.0
    %3709 = vmatpush1.msra.mxu0 0.0
    %3710 = vmatprep.subr.mxu0 0.0
    %3711 = vmatpush1.msra.mxu0 0.0
    %3712 = vmatprep.subr.mxu0 0.0
    %3713 = vmatpush1.msra.mxu0 0.0
    %3714 = vmatprep.subr.mxu0 0.0
    %3715 = vmatpush1.msra.mxu0 0.0
    %3716 = vmatprep.subr.mxu0 0.0
    %3717 = vmatpush1.msra.mxu0 0.0
    %3718 = vmatprep.subr.mxu0 0.0
    %3719 = vmatpush1.msra.mxu0 0.0
    %3720 = vmatprep.subr.mxu0 0.0
    %3721 = vmatpush1.msra.mxu0 0.0
    %3722 = vmatprep.subr.mxu0 0.0
    %3723 = vmatpush1.msra.mxu0 0.0
    %3724 = vmatprep.subr.mxu0 0.0
    %3725 = vmatpush1.msra.mxu0 0.0
    %3726 = vmatprep.mubr.f32.mxu0 0.0
    %3727 = vmatmul.mubr.f32.gmra.mrb[0].mxu0 %v3569
    %v3728 = vpop.f32.mrb[0].mxu0
    %v3729 = vadd.f32 0.0, %v3728
    %v3730 = vpop.f32.mrb[0].mxu0
    %3731 = vmatprep.mubr.f32.mxu0 0.0
    %3732 = vmatmul.mubr.f32.gmra.mrb[0].mxu0 %v3572
    %v3733 = vpop.f32.mrb[0].mxu0
    %v3734 = vadd.f32 0.0, %v3733
    %v3735 = vpop.f32.mrb[0].mxu0
    %3736 = vmatprep.mubr.f32.mxu0 0.0
    %3737 = vmatmul.mubr.f32.gmra.mrb[0].mxu0 %v3575
    %v3738 = vpop.f32.mrb[0].mxu0
    %v3739 = vadd.f32 0.0, %v3738
    %v3740 = vpop.f32.mrb[0].mxu0
    %3741 = vdwg.mxu0
    %v3742 = vmul.f32 %v3644, %v3729
    %v3743 = vmul.f32 %v3649, %v3734
    %v3744 = vadd.f32 %v3742, %v3743
    %v3745 = vmul.f32 %v3654, %v3739
    %v3746 = vadd.f32 %v3744, %v3745
    %v3747 = vmul.f32 %v3729, %v3729
    %v3748 = vmul.f32 %v3734, %v3734
    %v3749 = vadd.f32 %v3747, %v3748
    %v3750 = vmul.f32 %v3739, %v3739
    %v3751 = vadd.f32 %v3749, %v3750
    %v3752 = vrsqrt.pop %v3751
    %v3753 = vmul.f32 %v3751, %v3752
    %vm3754 = vcmp.eq.f32.partialorder %v3751, inf
    %v3755 = vsel %vm3754, %v3751, %v3753
    %vm3756 = vcmp.eq.f32.partialorder %v3751, 0.0
    %v3757 = vand.u32 %v3751, 2147483648
    %v3758 = vsel %vm3756, %v3757, %v3755
    %s3759 = scalar_lea.vmem %s16, 64
    %v3760 = vld [vmem:[%s3759] sm:$0xff]
    %v3761 = vld [vmem:[%s3759 + $0x8] sm:$0xff]
    %v3762 = vld [vmem:[%s3759 + $0x10] sm:$0xff]
    %v3763 = vld [vmem:[%s3759 + $0x18] sm:$0xff]
    %s3764 = scalar_lea.vmem %s17, 64
    %v3765 = vld [vmem:[%s3764] sm:$0xff]
    %v3766 = vld [vmem:[%s3764 + $0x8] sm:$0xff]
    %v3767 = vld [vmem:[%s3764 + $0x10] sm:$0xff]
    %v3768 = vld [vmem:[%s3764 + $0x18] sm:$0xff]
    %v3770 = vsel %vm721, %v3758, 0
    %3772 = vmatprep.subr.mxu0 0.0
    %3773 = vmatpush1.msra.mxu0 %v3765
    %3774 = vmatprep.subr.mxu0 0.0
    %3775 = vmatpush1.msra.mxu0 %v3766
    %3776 = vmatprep.subr.mxu0 0.0
    %3777 = vmatpush1.msra.mxu0 %v3767
    %3778 = vmatprep.subr.mxu0 0.0
    %3779 = vmatpush1.msra.mxu0 %v3768
    %3780 = vmatprep.subr.mxu0 0.0
    %3781 = vmatpush1.msra.mxu0 0.0
    %3782 = vmatprep.subr.mxu0 0.0
    %3783 = vmatpush1.msra.mxu0 0.0
    %3784 = vmatprep.subr.mxu0 0.0
    %3785 = vmatpush1.msra.mxu0 0.0
    %3786 = vmatprep.subr.mxu0 0.0
    %3787 = vmatpush1.msra.mxu0 0.0
    %3788 = vmatprep.subr.mxu0 0.0
    %3789 = vmatpush1.msra.mxu0 0.0
    %3790 = vmatprep.subr.mxu0 0.0
    %3791 = vmatpush1.msra.mxu0 0.0
    %3792 = vmatprep.subr.mxu0 0.0
    %3793 = vmatpush1.msra.mxu0 0.0
    %3794 = vmatprep.subr.mxu0 0.0
    %3795 = vmatpush1.msra.mxu0 0.0
    %3796 = vmatprep.subr.mxu0 0.0
    %3797 = vmatpush1.msra.mxu0 0.0
    %3798 = vmatprep.subr.mxu0 0.0
    %3799 = vmatpush1.msra.mxu0 0.0
    %3800 = vmatprep.subr.mxu0 0.0
    %3801 = vmatpush1.msra.mxu0 0.0
    %3802 = vmatprep.subr.mxu0 0.0
    %3803 = vmatpush1.msra.mxu0 0.0
    %3804 = vmatprep.subr.mxu0 0.0
    %3805 = vmatpush1.msra.mxu0 0.0
    %3806 = vmatprep.subr.mxu0 0.0
    %3807 = vmatpush1.msra.mxu0 0.0
    %3808 = vmatprep.subr.mxu0 0.0
    %3809 = vmatpush1.msra.mxu0 0.0
    %3810 = vmatprep.subr.mxu0 0.0
    %3811 = vmatpush1.msra.mxu0 0.0
    %3812 = vmatprep.subr.mxu0 0.0
    %3813 = vmatpush1.msra.mxu0 0.0
    %3814 = vmatprep.subr.mxu0 0.0
    %3815 = vmatpush1.msra.mxu0 0.0
    %3816 = vmatprep.subr.mxu0 0.0
    %3817 = vmatpush1.msra.mxu0 0.0
    %3818 = vmatprep.subr.mxu0 0.0
    %3819 = vmatpush1.msra.mxu0 0.0
    %3820 = vmatprep.subr.mxu0 0.0
    %3821 = vmatpush1.msra.mxu0 0.0
    %3822 = vmatprep.subr.mxu0 0.0
    %3823 = vmatpush1.msra.mxu0 0.0
    %3824 = vmatprep.subr.mxu0 0.0
    %3825 = vmatpush1.msra.mxu0 0.0
    %3826 = vmatprep.subr.mxu0 0.0
    %3827 = vmatpush1.msra.mxu0 0.0
    %3828 = vmatprep.subr.mxu0 0.0
    %3829 = vmatpush1.msra.mxu0 0.0
    %3830 = vmatprep.subr.mxu0 0.0
    %3831 = vmatpush1.msra.mxu0 0.0
    %3832 = vmatprep.subr.mxu0 0.0
    %3833 = vmatpush1.msra.mxu0 0.0
    %3834 = vmatprep.subr.mxu0 0.0
    %3835 = vmatpush1.msra.mxu0 0.0
    %3836 = vmatprep.mubr.f32.mxu0 0.0
    %3837 = vmatmul.mubr.f32.gmra.mrb[0].mxu0 %v3770
    %v3838 = vpop.f32.mrb[0].mxu0
    %v3839 = vadd.f32 0.0, %v3838
    %v3840 = vpop.f32.mrb[0].mxu0
    %3841 = vdwg.mxu0
    %v3843 = vsel %vm721, %v3342, 0
    %3845 = vmatprep.subr.mxu0 0.0
    %3846 = vmatpush1.msra.mxu0 %v3760
    %3847 = vmatprep.subr.mxu0 0.0
    %3848 = vmatpush1.msra.mxu0 %v3761
    %3849 = vmatprep.subr.mxu0 0.0
    %3850 = vmatpush1.msra.mxu0 %v3762
    %3851 = vmatprep.subr.mxu0 0.0
    %3852 = vmatpush1.msra.mxu0 %v3763
    %3853 = vmatprep.subr.mxu0 0.0
    %3854 = vmatpush1.msra.mxu0 0.0
    %3855 = vmatprep.subr.mxu0 0.0
    %3856 = vmatpush1.msra.mxu0 0.0
    %3857 = vmatprep.subr.mxu0 0.0
    %3858 = vmatpush1.msra.mxu0 0.0
    %3859 = vmatprep.subr.mxu0 0.0
    %3860 = vmatpush1.msra.mxu0 0.0
    %3861 = vmatprep.subr.mxu0 0.0
    %3862 = vmatpush1.msra.mxu0 0.0
    %3863 = vmatprep.subr.mxu0 0.0
    %3864 = vmatpush1.msra.mxu0 0.0
    %3865 = vmatprep.subr.mxu0 0.0
    %3866 = vmatpush1.msra.mxu0 0.0
    %3867 = vmatprep.subr.mxu0 0.0
    %3868 = vmatpush1.msra.mxu0 0.0
    %3869 = vmatprep.subr.mxu0 0.0
    %3870 = vmatpush1.msra.mxu0 0.0
    %3871 = vmatprep.subr.mxu0 0.0
    %3872 = vmatpush1.msra.mxu0 0.0
    %3873 = vmatprep.subr.mxu0 0.0
    %3874 = vmatpush1.msra.mxu0 0.0
    %3875 = vmatprep.subr.mxu0 0.0
    %3876 = vmatpush1.msra.mxu0 0.0
    %3877 = vmatprep.subr.mxu0 0.0
    %3878 = vmatpush1.msra.mxu0 0.0
    %3879 = vmatprep.subr.mxu0 0.0
    %3880 = vmatpush1.msra.mxu0 0.0
    %3881 = vmatprep.subr.mxu0 0.0
    %3882 = vmatpush1.msra.mxu0 0.0
    %3883 = vmatprep.subr.mxu0 0.0
    %3884 = vmatpush1.msra.mxu0 0.0
    %3885 = vmatprep.subr.mxu0 0.0
    %3886 = vmatpush1.msra.mxu0 0.0
    %3887 = vmatprep.subr.mxu0 0.0
    %3888 = vmatpush1.msra.mxu0 0.0
    %3889 = vmatprep.subr.mxu0 0.0
    %3890 = vmatpush1.msra.mxu0 0.0
    %3891 = vmatprep.subr.mxu0 0.0
    %3892 = vmatpush1.msra.mxu0 0.0
    %3893 = vmatprep.subr.mxu0 0.0
    %3894 = vmatpush1.msra.mxu0 0.0
    %3895 = vmatprep.subr.mxu0 0.0
    %3896 = vmatpush1.msra.mxu0 0.0
    %3897 = vmatprep.subr.mxu0 0.0
    %3898 = vmatpush1.msra.mxu0 0.0
    %3899 = vmatprep.subr.mxu0 0.0
    %3900 = vmatpush1.msra.mxu0 0.0
    %3901 = vmatprep.subr.mxu0 0.0
    %3902 = vmatpush1.msra.mxu0 0.0
    %3903 = vmatprep.subr.mxu0 0.0
    %3904 = vmatpush1.msra.mxu0 0.0
    %3905 = vmatprep.subr.mxu0 0.0
    %3906 = vmatpush1.msra.mxu0 0.0
    %3907 = vmatprep.subr.mxu0 0.0
    %3908 = vmatpush1.msra.mxu0 0.0
    %3909 = vmatprep.mubr.f32.mxu0 0.0
    %3910 = vmatmul.mubr.f32.gmra.mrb[0].mxu0 %v3843
    %v3911 = vpop.f32.mrb[0].mxu0
    %v3912 = vadd.f32 %v3839, %v3911
    %v3913 = vpop.f32.mrb[0].mxu0
    %3914 = vdwg.mxu0
    %s3915 = scalar_lea.vmem %s18, 2
    %v3916 = vld [vmem:[%s3915] sm:$0x1]
    %v3918 = vlaneseq
    %v3919 = vshrl.u32 %v3918, 7
    %v3920 = vsub.s32 0, %v3919
    %v3921 = vrot.slane %v3916, %v3920
    %v3923 = vadd.f32 %v3912, %v3921
    %v3924 = vxor.u32 %v3923, 2147483648
    %v3925 = vmul.f32 %v3924, 1.442695
    %v3926 = vpow.pop %v3925
    %v3927 = vadd.f32 %v3926, 1.0
    %v3928 = vrcp.pop %v3927
    %v3929 = vmul.f32 1.0, %v3928
    %v3930 = vmul.f32 %v3923, %v3929
    %s3931 = scalar_lea.vmem [#allocation7], 64
    %v3932 = vld [vmem:[%s3931] sm:$0xff]
    %v3933 = vld [vmem:[%s3931 + $0x8] sm:$0xff]
    %v3934 = vld [vmem:[%s3931 + $0x10] sm:$0xff]
    %v3935 = vld [vmem:[%s3931 + $0x18] sm:$0xff]
    %s3936 = scalar_lea.vmem %s20, 2
    %v3937 = vld [vmem:[%s3936] sm:$0x1]
    %v3939 = vlaneseq
    %v3940 = vshrl.u32 %v3939, 7
    %v3941 = vsub.s32 0, %v3940
    %v3942 = vrot.slane %v3937, %v3941
    %v3945 = vsel %vm721, %v3930, 0
    %3947 = vmatprep.subr.mxu0 0.0
    %3948 = vmatpush1.msra.mxu0 %v3932
    %3949 = vmatprep.subr.mxu0 0.0
    %3950 = vmatpush1.msra.mxu0 %v3933
    %3951 = vmatprep.subr.mxu0 0.0
    %3952 = vmatpush1.msra.mxu0 %v3934
    %3953 = vmatprep.subr.mxu0 0.0
    %3954 = vmatpush1.msra.mxu0 %v3935
    %3955 = vmatprep.subr.mxu0 0.0
    %3956 = vmatpush1.msra.mxu0 0.0
    %3957 = vmatprep.subr.mxu0 0.0
    %3958 = vmatpush1.msra.mxu0 0.0
    %3959 = vmatprep.subr.mxu0 0.0
    %3960 = vmatpush1.msra.mxu0 0.0
    %3961 = vmatprep.subr.mxu0 0.0
    %3962 = vmatpush1.msra.mxu0 0.0
    %3963 = vmatprep.subr.mxu0 0.0
    %3964 = vmatpush1.msra.mxu0 0.0
    %3965 = vmatprep.subr.mxu0 0.0
    %3966 = vmatpush1.msra.mxu0 0.0
    %3967 = vmatprep.subr.mxu0 0.0
    %3968 = vmatpush1.msra.mxu0 0.0
    %3969 = vmatprep.subr.mxu0 0.0
    %3970 = vmatpush1.msra.mxu0 0.0
    %3971 = vmatprep.subr.mxu0 0.0
    %3972 = vmatpush1.msra.mxu0 0.0
    %3973 = vmatprep.subr.mxu0 0.0
    %3974 = vmatpush1.msra.mxu0 0.0
    %3975 = vmatprep.subr.mxu0 0.0
    %3976 = vmatpush1.msra.mxu0 0.0
    %3977 = vmatprep.subr.mxu0 0.0
    %3978 = vmatpush1.msra.mxu0 0.0
    %3979 = vmatprep.subr.mxu0 0.0
    %3980 = vmatpush1.msra.mxu0 0.0
    %3981 = vmatprep.subr.mxu0 0.0
    %3982 = vmatpush1.msra.mxu0 0.0
    %3983 = vmatprep.subr.mxu0 0.0
    %3984 = vmatpush1.msra.mxu0 0.0
    %3985 = vmatprep.subr.mxu0 0.0
    %3986 = vmatpush1.msra.mxu0 0.0
    %3987 = vmatprep.subr.mxu0 0.0
    %3988 = vmatpush1.msra.mxu0 0.0
    %3989 = vmatprep.subr.mxu0 0.0
    %3990 = vmatpush1.msra.mxu0 0.0
    %3991 = vmatprep.subr.mxu0 0.0
    %3992 = vmatpush1.msra.mxu0 0.0
    %3993 = vmatprep.subr.mxu0 0.0
    %3994 = vmatpush1.msra.mxu0 0.0
    %3995 = vmatprep.subr.mxu0 0.0
    %3996 = vmatpush1.msra.mxu0 0.0
    %3997 = vmatprep.subr.mxu0 0.0
    %3998 = vmatpush1.msra.mxu0 0.0
    %3999 = vmatprep.subr.mxu0 0.0
    %4000 = vmatpush1.msra.mxu0 0.0
    %4001 = vmatprep.subr.mxu0 0.0
    %4002 = vmatpush1.msra.mxu0 0.0
    %4003 = vmatprep.subr.mxu0 0.0
    %4004 = vmatpush1.msra.mxu0 0.0
    %4005 = vmatprep.subr.mxu0 0.0
    %4006 = vmatpush1.msra.mxu0 0.0
    %4007 = vmatprep.subr.mxu0 0.0
    %4008 = vmatpush1.msra.mxu0 0.0
    %4009 = vmatprep.subr.mxu0 0.0
    %4010 = vmatpush1.msra.mxu0 0.0
    %4011 = vmatprep.mubr.f32.mxu0 0.0
    %4012 = vmatmul.mubr.f32.gmra.mrb[0].mxu0 %v3945
    %v4013 = vpop.f32.mrb[0].mxu0
    %v4014 = vadd.f32 %v3942, %v4013
    %v4015 = vpop.f32.mrb[0].mxu0
    %4016 = vdwg.mxu0
    %4018 = vrot.lane.b32.xlu0 %v3746, 32
    %v4019 = vpop.permute.xlu0 %4018
    %v4021 = vmul.f32 %v4014, %v4019
    %4023 = vrot.lane.b32.xlu0 %v4021, 96
    %v4024 = vpop.permute.xlu0 %4023
    %v4026 = vadd.f32 %v3342, %v4024
    %4028 = vrot.lane.b32.xlu0 %v4014, 64
    %v4029 = vpop.permute.xlu0 %4028
    %v4031 = vadd.f32 %v4026, %v4029
    %v4032 = vld [vmem:[%s21] sm:$0xff]
    %v4033 = vld [vmem:[%s21 + $0x8] sm:$0xff]
    %v4034 = vld [vmem:[%s21 + $0x10] sm:$0xff]
    %v4035 = vld [vmem:[%s21 + $0x18] sm:$0xff]
    %v4036 = vld [vmem:[%s22] sm:$0x1]
    %v4038 = vlaneseq
    %v4039 = vshrl.u32 %v4038, 7
    %v4040 = vsub.s32 0, %v4039
    %v4041 = vrot.slane %v4036, %v4040
    %v4044 = vsel %vm721, %v4031, 0
    %4046 = vmatprep.subr.mxu0 0.0
    %4047 = vmatpush1.msra.mxu0 %v4032
    %4048 = vmatprep.subr.mxu0 0.0
    %4049 = vmatpush1.msra.mxu0 %v4033
    %4050 = vmatprep.subr.mxu0 0.0
    %4051 = vmatpush1.msra.mxu0 %v4034
    %4052 = vmatprep.subr.mxu0 0.0
    %4053 = vmatpush1.msra.mxu0 %v4035
    %4054 = vmatprep.subr.mxu0 0.0
    %4055 = vmatpush1.msra.mxu0 0.0
    %4056 = vmatprep.subr.mxu0 0.0
    %4057 = vmatpush1.msra.mxu0 0.0
    %4058 = vmatprep.subr.mxu0 0.0
    %4059 = vmatpush1.msra.mxu0 0.0
    %4060 = vmatprep.subr.mxu0 0.0
    %4061 = vmatpush1.msra.mxu0 0.0
    %4062 = vmatprep.subr.mxu0 0.0
    %4063 = vmatpush1.msra.mxu0 0.0
    %4064 = vmatprep.subr.mxu0 0.0
    %4065 = vmatpush1.msra.mxu0 0.0
    %4066 = vmatprep.subr.mxu0 0.0
    %4067 = vmatpush1.msra.mxu0 0.0
    %4068 = vmatprep.subr.mxu0 0.0
    %4069 = vmatpush1.msra.mxu0 0.0
    %4070 = vmatprep.subr.mxu0 0.0
    %4071 = vmatpush1.msra.mxu0 0.0
    %4072 = vmatprep.subr.mxu0 0.0
    %4073 = vmatpush1.msra.mxu0 0.0
    %4074 = vmatprep.subr.mxu0 0.0
    %4075 = vmatpush1.msra.mxu0 0.0
    %4076 = vmatprep.subr.mxu0 0.0
    %4077 = vmatpush1.msra.mxu0 0.0
    %4078 = vmatprep.subr.mxu0 0.0
    %4079 = vmatpush1.msra.mxu0 0.0
    %4080 = vmatprep.subr.mxu0 0.0
    %4081 = vmatpush1.msra.mxu0 0.0
    %4082 = vmatprep.subr.mxu0 0.0
    %4083 = vmatpush1.msra.mxu0 0.0
    %4084 = vmatprep.subr.mxu0 0.0
    %4085 = vmatpush1.msra.mxu0 0.0
    %4086 = vmatprep.subr.mxu0 0.0
    %4087 = vmatpush1.msra.mxu0 0.0
    %4088 = vmatprep.subr.mxu0 0.0
    %4089 = vmatpush1.msra.mxu0 0.0
    %4090 = vmatprep.subr.mxu0 0.0
    %4091 = vmatpush1.msra.mxu0 0.0
    %4092 = vmatprep.subr.mxu0 0.0
    %4093 = vmatpush1.msra.mxu0 0.0
    %4094 = vmatprep.subr.mxu0 0.0
    %4095 = vmatpush1.msra.mxu0 0.0
    %4096 = vmatprep.subr.mxu0 0.0
    %4097 = vmatpush1.msra.mxu0 0.0
    %4098 = vmatprep.subr.mxu0 0.0
    %4099 = vmatpush1.msra.mxu0 0.0
    %4100 = vmatprep.subr.mxu0 0.0
    %4101 = vmatpush1.msra.mxu0 0.0
    %4102 = vmatprep.subr.mxu0 0.0
    %4103 = vmatpush1.msra.mxu0 0.0
    %4104 = vmatprep.subr.mxu0 0.0
    %4105 = vmatpush1.msra.mxu0 0.0
    %4106 = vmatprep.subr.mxu0 0.0
    %4107 = vmatpush1.msra.mxu0 0.0
    %4108 = vmatprep.subr.mxu0 0.0
    %4109 = vmatpush1.msra.mxu0 0.0
    %4110 = vmatprep.mubr.f32.mxu0 0.0
    %4111 = vmatmul.mubr.f32.gmra.mrb[0].mxu0 %v4044
    %v4112 = vpop.f32.mrb[0].mxu0
    %v4113 = vadd.f32 %v4041, %v4112
    %v4114 = vpop.f32.mrb[0].mxu0
    %4115 = vdwg.mxu0
    %v4116 = vxor.u32 %v4113, 2147483648
    %v4117 = vmul.f32 %v4116, 1.442695
    %v4118 = vpow.pop %v4117
    %v4119 = vadd.f32 %v4118, 1.0
    %v4120 = vrcp.pop %v4119
    %v4121 = vmul.f32 1.0, %v4120
    %v4122 = vmul.f32 %v4113, %v4121
    %v4124 = vsel %vm721, %v4122, 0
    %4126 = vmatprep.subr.mxu0 0.0
    %4127 = vmatpush1.msra.mxu0 %v4032
    %4128 = vmatprep.subr.mxu0 0.0
    %4129 = vmatpush1.msra.mxu0 %v4033
    %4130 = vmatprep.subr.mxu0 0.0
    %4131 = vmatpush1.msra.mxu0 %v4034
    %4132 = vmatprep.subr.mxu0 0.0
    %4133 = vmatpush1.msra.mxu0 %v4035
    %4134 = vmatprep.subr.mxu0 0.0
    %4135 = vmatpush1.msra.mxu0 0.0
    %4136 = vmatprep.subr.mxu0 0.0
    %4137 = vmatpush1.msra.mxu0 0.0
    %4138 = vmatprep.subr.mxu0 0.0
    %4139 = vmatpush1.msra.mxu0 0.0
    %4140 = vmatprep.subr.mxu0 0.0
    %4141 = vmatpush1.msra.mxu0 0.0
    %4142 = vmatprep.subr.mxu0 0.0
    %4143 = vmatpush1.msra.mxu0 0.0
    %4144 = vmatprep.subr.mxu0 0.0
    %4145 = vmatpush1.msra.mxu0 0.0
    %4146 = vmatprep.subr.mxu0 0.0
    %4147 = vmatpush1.msra.mxu0 0.0
    %4148 = vmatprep.subr.mxu0 0.0
    %4149 = vmatpush1.msra.mxu0 0.0
    %4150 = vmatprep.subr.mxu0 0.0
    %4151 = vmatpush1.msra.mxu0 0.0
    %4152 = vmatprep.subr.mxu0 0.0
    %4153 = vmatpush1.msra.mxu0 0.0
    %4154 = vmatprep.subr.mxu0 0.0
    %4155 = vmatpush1.msra.mxu0 0.0
    %4156 = vmatprep.subr.mxu0 0.0
    %4157 = vmatpush1.msra.mxu0 0.0
    %4158 = vmatprep.subr.mxu0 0.0
    %4159 = vmatpush1.msra.mxu0 0.0
    %4160 = vmatprep.subr.mxu0 0.0
    %4161 = vmatpush1.msra.mxu0 0.0
    %4162 = vmatprep.subr.mxu0 0.0
    %4163 = vmatpush1.msra.mxu0 0.0
    %4164 = vmatprep.subr.mxu0 0.0
    %4165 = vmatpush1.msra.mxu0 0.0
    %4166 = vmatprep.subr.mxu0 0.0
    %4167 = vmatpush1.msra.mxu0 0.0
    %4168 = vmatprep.subr.mxu0 0.0
    %4169 = vmatpush1.msra.mxu0 0.0
    %4170 = vmatprep.subr.mxu0 0.0
    %4171 = vmatpush1.msra.mxu0 0.0
    %4172 = vmatprep.subr.mxu0 0.0
    %4173 = vmatpush1.msra.mxu0 0.0
    %4174 = vmatprep.subr.mxu0 0.0
    %4175 = vmatpush1.msra.mxu0 0.0
    %4176 = vmatprep.subr.mxu0 0.0
    %4177 = vmatpush1.msra.mxu0 0.0
    %4178 = vmatprep.subr.mxu0 0.0
    %4179 = vmatpush1.msra.mxu0 0.0
    %4180 = vmatprep.subr.mxu0 0.0
    %4181 = vmatpush1.msra.mxu0 0.0
    %4182 = vmatprep.subr.mxu0 0.0
    %4183 = vmatpush1.msra.mxu0 0.0
    %4184 = vmatprep.subr.mxu0 0.0
    %4185 = vmatpush1.msra.mxu0 0.0
    %4186 = vmatprep.subr.mxu0 0.0
    %4187 = vmatpush1.msra.mxu0 0.0
    %4188 = vmatprep.subr.mxu0 0.0
    %4189 = vmatpush1.msra.mxu0 0.0
    %4190 = vmatprep.mubr.f32.mxu0 0.0
    %4191 = vmatmul.mubr.f32.gmra.mrb[0].mxu0 %v4124
    %v4192 = vpop.f32.mrb[0].mxu0
    %v4193 = vadd.f32 %v4041, %v4192
    %v4194 = vpop.f32.mrb[0].mxu0
    %4195 = vdwg.mxu0
    %4196 = vst.msk [vmem:[#allocation8] sm:$0xff] %vm721, %v4193
    // Predicated region
    $region106: #{painn_forward.1} parent=1 // pred_check
      _
    $region107: #{painn_forward.1} parent=1 // pred_check_branch
      %4198 = sbr.rel (0) target = $region109
    $region108: #{painn_forward.1} parent=1 // pred_region
      %s4200 = ssub.s32 128, 128
      %4201 = vsyncadd [#allocation4], %s4200
      %s4203 = sshll.u32 [#allocation8], 4
      %s4204 = int_to_ptr.vmem [resolvable:$true] %s4203
      %4206 = dma.vmem_to_hbm [thread:$0]  %s4204, 128, %s23, [#allocation4]
    $region109: #{painn_forward.1} parent=1 // pred_fallthru
      _
    // Predicated region
    $region110: #{painn_forward.1} parent=1 // pred_check
      _
    $region111: #{painn_forward.1} parent=1 // pred_check_branch
      %4208 = sbr.rel (0) target = $region113
    $region112: #{painn_forward.1} parent=1 // pred_region
      %4209 = dma.done [#allocation4], 128
    $region113: #{painn_forward.1} parent=1 // pred_fallthru
      _
    %4210 = vsyncpa [#allocation3], 1
    %4211 = vsyncpa [#allocation6], 1
    %4212 = vsyncpa [#allocation4], 1

</llo_original>
